<compile_context>
chip_gen: v7x
topology: tpu7x:2x2x1
jax: 0.10.0
libtpu: 0.0.40
codegen_flags: <defaults>
</compile_context>

<pallas_src>
import numpy as np

import jax
import jax.numpy as jnp
from jax.experimental import pallas as pl
from jax.experimental.pallas import tpu as pltpu


# --------------------------- host-side constants --------------------------- #
def _build_tap_selectors(h, w):
    """0/1 matrices implementing the 3x3 / stride-2 / pad-1 patch gather.

    Returns (sel, oh, ow) with sel of shape (9, oh*ow, h*w) and
      sel[kh*3+kw, i*ow+j, r*w+c] = 1  iff  (r, c) == (2i+kh-1, 2j+kw-1) is in-bounds.
    Out-of-bounds (padding) taps are all-zero rows -> contribute exactly 0.
    """
    oh, ow = (h - 1) // 2 + 1, (w - 1) // 2 + 1
    sel = np.zeros((9, oh * ow, h * w), np.float32)
    for kh in range(3):
        for kw in range(3):
            k = kh * 3 + kw
            for i in range(oh):
                r = 2 * i + kh - 1
                if not 0 <= r < h:
                    continue
                for j in range(ow):
                    c = 2 * j + kw - 1
                    if 0 <= c < w:
                        sel[k, i * ow + j, r * w + c] = 1.0
    return sel, oh, ow


# ------------------------------ Pallas kernel ------------------------------ #
def _conv_layer(x_bf16, sel_ref, w_ref, b_ref):
    """One Conv2d(3x3, s=2, p=1) + bias + ReLU on a flattened (M_in, Cin) image.

    x_bf16 : (M_in, Cin)  bfloat16 value
    sel_ref: (9, M_out, M_in) bfloat16 ref (0/1 tap selectors)
    w_ref  : (9, Cin, Cout)  bfloat16 ref
    b_ref  : (1, Cout)       float32 ref
    returns: (M_out, Cout)   float32 value
    """
    m_out = sel_ref.shape[1]
    cout = w_ref.shape[-1]
    acc = jnp.zeros((m_out, cout), jnp.float32)
    for k in range(9):  # static unroll: 9 accumulating MXU matmuls per layer
        # Gather the k-th tap's rows (exact: one 0/1 hit per row, zeros at padding).
        patch = jnp.dot(sel_ref[k], x_bf16, preferred_element_type=jnp.float32)
        acc = acc + jnp.dot(patch.astype(jnp.bfloat16), w_ref[k],
                            preferred_element_type=jnp.float32)
    acc = acc + b_ref[...]
    return jnp.maximum(acc, 0.0)


def _downsample_fused_kernel(x_ref,
                             s1, w1, b1, s2, w2, b2, s3, w3, b3, s4, w4, b4,
                             o_ref):
    """All four conv+ReLU layers for one batch element; activations stay on-chip."""
    layers = ((s1, w1, b1), (s2, w2, b2), (s3, w3, b3), (s4, w4, b4))
    x = x_ref[0]                                   # (H*W, Cin) bf16
    y = None
    for sel_ref, w_ref, b_ref in layers:
        y = _conv_layer(x, sel_ref, w_ref, b_ref)  # f32
        x = y.astype(jnp.bfloat16)                 # feed next layer in bf16
    o_ref[0] = y.astype(o_ref.dtype)               # final layer stored in f32


# ------------------------------- JAX wrapper -------------------------------- #
@jax.jit
def downsample_net_forward(x_nchw, params):
    """Full DownsampleNet forward. Input/output in NCHW (PyTorch convention)."""
    assert len(params) == 4
    n, cin0, h, w = x_nchw.shape

    # Single tiny boundary transpose (input only); nothing is reshuffled between layers.
    x = jnp.transpose(x_nchw, (0, 2, 3, 1))                     # NCHW -> NHWC
    x = x.reshape(n, h * w, cin0).astype(jnp.bfloat16)          # flatten spatial

    sels, wgts, biases = [], [], []
    hh, ww = h, w
    for w_hwio, b in params:
        ci, co = int(w_hwio.shape[2]), int(w_hwio.shape[3])
        sel_np, hh, ww = _build_tap_selectors(hh, ww)           # static, host-side
        sels.append(jnp.asarray(sel_np, jnp.bfloat16))          # 0/1 exact in bf16
        wgts.append(w_hwio.reshape(9, ci, co).astype(jnp.bfloat16))
        biases.append(b.reshape(1, co).astype(jnp.float32))

    cout_final = int(params[-1][0].shape[-1])
    m_final = hh * ww                                           # final spatial positions

    in_specs = [pl.BlockSpec((1, h * w, cin0), lambda i: (i, 0, 0))]
    operands = [x]
    for sel, wgt, bias in zip(sels, wgts, biases):
        in_specs.append(pl.BlockSpec(sel.shape, lambda i: (0, 0, 0)))   # resident
        in_specs.append(pl.BlockSpec(wgt.shape, lambda i: (0, 0, 0)))   # resident
        in_specs.append(pl.BlockSpec(bias.shape, lambda i: (0, 0)))     # resident
        operands.extend([sel, wgt, bias])

    out = pl.pallas_call(
        _downsample_fused_kernel,
        out_shape=jax.ShapeDtypeStruct((n, m_final, cout_final), jnp.float32),
        grid_spec=pltpu.PrefetchScalarGridSpec(
            num_scalar_prefetch=0,
            grid=(n,),                                          # >= 2 programs -> both v7x TCs
            in_specs=in_specs,
            out_specs=pl.BlockSpec((1, m_final, cout_final), lambda i: (i, 0, 0)),
        ),
        compiler_params=pltpu.CompilerParams(
            dimension_semantics=("parallel",),
            vmem_limit_bytes=32 * 1024 * 1024,                  # safe on v5e/v6e/v7x
        ),
    )(*operands)

    out = out.reshape(n, hh, ww, cout_final)
    return jnp.transpose(out, (0, 3, 1, 2))                     # NHWC -> NCHW


# ----------------------------- parameter init ------------------------------- #
def init_params(key, input_channels=3, output_channels=(16, 32, 64, 128)):
    """Deterministic init mimicking nn.Conv2d default (uniform +/- 1/sqrt(fan_in))."""
    params = []
    cin = input_channels
    for cout in output_channels:
        key, kw_key, kb_key = jax.random.split(key, 3)
        bound = 1.0 / jnp.sqrt(cin * 3.0 * 3.0)
        w = jax.random.uniform(kw_key, (3, 3, cin, cout), jnp.float32,
                               minval=-bound, maxval=bound)     # HWIO
        b = jax.random.uniform(kb_key, (cout,), jnp.float32,
                               minval=-bound, maxval=bound)
        params.append((w, b))
        cin = cout
    return params


# -------------------------------- reference --------------------------------- #
def reference_forward(x_nchw, params):
    x = jnp.transpose(x_nchw, (0, 2, 3, 1))
    for w_hwio, b in params:
        x = jax.lax.conv_general_dilated(
            x, w_hwio, window_strides=(2, 2), padding=((1, 1), (1, 1)),
            dimension_numbers=("NHWC", "HWIO", "NHWC"))
        x = jnp.maximum(x + b, 0.0)
    return jnp.transpose(x, (0, 3, 1, 2))


if __name__ == "__main__":
    key = jax.random.PRNGKey(0)
    key, xkey = jax.random.split(key)

    # Small shapes consistent with the module: batch=2, 3 channels, 16x16 spatial.
    x = jax.random.normal(xkey, (2, 3, 16, 16), dtype=jnp.float32)   # NCHW
    params = init_params(key)

    out = jax.block_until_ready(downsample_net_forward(x, params))
    assert out.shape == (2, 128, 1, 1), out.shape

    ref = jax.block_until_ready(reference_forward(x, params))
    # Tolerance loosened slightly vs. the pure-f32 version: the kernel runs the
    # four chained GEMMs in bfloat16 (f32 accumulation), per the perf review.
    assert jnp.allclose(out, ref, atol=2e-2, rtol=2e-2), "mismatch vs XLA conv reference"

    print("KERNEL_OK")
</pallas_src>

<mosaic_0001>
module attributes {stable_mosaic.version = 11 : i64} {
  func.func @_downsample_fused_kernel(%arg0: i32, %arg1: memref<1x256x3xbf16, #tpu.memory_space<vmem>>, %arg2: memref<9x64x256xbf16, #tpu.memory_space<vmem>>, %arg3: memref<9x3x16xbf16, #tpu.memory_space<vmem>>, %arg4: memref<1x16xf32, #tpu.memory_space<vmem>>, %arg5: memref<9x16x64xbf16, #tpu.memory_space<vmem>>, %arg6: memref<9x16x32xbf16, #tpu.memory_space<vmem>>, %arg7: memref<1x32xf32, #tpu.memory_space<vmem>>, %arg8: memref<9x4x16xbf16, #tpu.memory_space<vmem>>, %arg9: memref<9x32x64xbf16, #tpu.memory_space<vmem>>, %arg10: memref<1x64xf32, #tpu.memory_space<vmem>>, %arg11: memref<9x1x4xbf16, #tpu.memory_space<vmem>>, %arg12: memref<9x64x128xbf16, #tpu.memory_space<vmem>>, %arg13: memref<1x128xf32, #tpu.memory_space<vmem>>, %arg14: memref<1x1x128xf32, #tpu.memory_space<vmem>>) attributes {dimension_semantics = [#tpu.dimension_semantics<parallel>], iteration_bounds = array<i64: 2>, scalar_prefetch = 0 : i64, scratch_operands = 0 : i64, tpu.core_type = #tpu.core_type<tc>, window_params = [{transform_indices = @transform_0, window_bounds = array<i64: 1, 256, 3>}, {pipeline_mode = #tpu.pipeline_mode<synchronous>, transform_indices = @transform_1, window_bounds = array<i64: 9, 64, 256>}, {pipeline_mode = #tpu.pipeline_mode<synchronous>, transform_indices = @transform_2, window_bounds = array<i64: 9, 3, 16>}, {pipeline_mode = #tpu.pipeline_mode<synchronous>, transform_indices = @transform_3, window_bounds = array<i64: 1, 16>}, {pipeline_mode = #tpu.pipeline_mode<synchronous>, transform_indices = @transform_4, window_bounds = array<i64: 9, 16, 64>}, {pipeline_mode = #tpu.pipeline_mode<synchronous>, transform_indices = @transform_5, window_bounds = array<i64: 9, 16, 32>}, {pipeline_mode = #tpu.pipeline_mode<synchronous>, transform_indices = @transform_6, window_bounds = array<i64: 1, 32>}, {pipeline_mode = #tpu.pipeline_mode<synchronous>, transform_indices = @transform_7, window_bounds = array<i64: 9, 4, 16>}, {pipeline_mode = #tpu.pipeline_mode<synchronous>, transform_indices = @transform_8, window_bounds = array<i64: 9, 32, 64>}, {pipeline_mode = #tpu.pipeline_mode<synchronous>, transform_indices = @transform_9, window_bounds = array<i64: 1, 64>}, {pipeline_mode = #tpu.pipeline_mode<synchronous>, transform_indices = @transform_10, window_bounds = array<i64: 9, 1, 4>}, {pipeline_mode = #tpu.pipeline_mode<synchronous>, transform_indices = @transform_11, window_bounds = array<i64: 9, 64, 128>}, {pipeline_mode = #tpu.pipeline_mode<synchronous>, transform_indices = @transform_12, window_bounds = array<i64: 1, 128>}, {transform_indices = @transform_13, window_bounds = array<i64: 1, 1, 128>}]} {
    %c0 = arith.constant 0 : index
    %c0_0 = arith.constant 0 : index
    %c0_1 = arith.constant 0 : index
    %0 = vector.load %arg1[%c0, %c0_0, %c0_1] : memref<1x256x3xbf16, #tpu.memory_space<vmem>>, vector<1x256x3xbf16>
    %1 = vector.shape_cast %0 : vector<1x256x3xbf16> to vector<256x3xbf16>
    %cst = arith.constant 0.000000e+00 : f32
    %2 = vector.broadcast %cst : f32 to vector<64x16xf32>
    %c0_2 = arith.constant 0 : index
    %c0_3 = arith.constant 0 : index
    %c0_4 = arith.constant 0 : index
    %3 = vector.load %arg2[%c0_2, %c0_3, %c0_4] : memref<9x64x256xbf16, #tpu.memory_space<vmem>>, vector<1x64x256xbf16>
    %4 = vector.shape_cast %3 : vector<1x64x256xbf16> to vector<64x256xbf16>
    %cst_5 = arith.constant dense<0.000000e+00> : vector<64x3xf32>
    %5 = tpu.matmul %4, %1, %cst_5 {dimension_numbers = #tpu.dot_dimension_numbers<[1], [0], [0], [1], [0, 0, 1, 1], [], []>} : vector<64x256xbf16>, vector<256x3xbf16>, vector<64x3xf32> -> vector<64x3xf32>
    %6 = arith.truncf %5 : vector<64x3xf32> to vector<64x3xbf16>
    %c0_6 = arith.constant 0 : index
    %c0_7 = arith.constant 0 : index
    %c0_8 = arith.constant 0 : index
    %7 = vector.load %arg3[%c0_6, %c0_7, %c0_8] : memref<9x3x16xbf16, #tpu.memory_space<vmem>>, vector<1x3x16xbf16>
    %8 = vector.shape_cast %7 : vector<1x3x16xbf16> to vector<3x16xbf16>
    %cst_9 = arith.constant dense<0.000000e+00> : vector<64x16xf32>
    %9 = tpu.matmul %6, %8, %cst_9 {dimension_numbers = #tpu.dot_dimension_numbers<[1], [0], [0], [1], [0, 0, 1, 1], [], []>} : vector<64x3xbf16>, vector<3x16xbf16>, vector<64x16xf32> -> vector<64x16xf32>
    %10 = arith.addf %2, %9 : vector<64x16xf32>
    %c1 = arith.constant 1 : index
    %c0_10 = arith.constant 0 : index
    %c0_11 = arith.constant 0 : index
    %11 = vector.load %arg2[%c1, %c0_10, %c0_11] : memref<9x64x256xbf16, #tpu.memory_space<vmem>>, vector<1x64x256xbf16>
    %12 = vector.shape_cast %11 : vector<1x64x256xbf16> to vector<64x256xbf16>
    %cst_12 = arith.constant dense<0.000000e+00> : vector<64x3xf32>
    %13 = tpu.matmul %12, %1, %cst_12 {dimension_numbers = #tpu.dot_dimension_numbers<[1], [0], [0], [1], [0, 0, 1, 1], [], []>} : vector<64x256xbf16>, vector<256x3xbf16>, vector<64x3xf32> -> vector<64x3xf32>
    %14 = arith.truncf %13 : vector<64x3xf32> to vector<64x3xbf16>
    %c1_13 = arith.constant 1 : index
    %c0_14 = arith.constant 0 : index
    %c0_15 = arith.constant 0 : index
    %15 = vector.load %arg3[%c1_13, %c0_14, %c0_15] : memref<9x3x16xbf16, #tpu.memory_space<vmem>>, vector<1x3x16xbf16>
    %16 = vector.shape_cast %15 : vector<1x3x16xbf16> to vector<3x16xbf16>
    %cst_16 = arith.constant dense<0.000000e+00> : vector<64x16xf32>
    %17 = tpu.matmul %14, %16, %cst_16 {dimension_numbers = #tpu.dot_dimension_numbers<[1], [0], [0], [1], [0, 0, 1, 1], [], []>} : vector<64x3xbf16>, vector<3x16xbf16>, vector<64x16xf32> -> vector<64x16xf32>
    %18 = arith.addf %10, %17 : vector<64x16xf32>
    %c2 = arith.constant 2 : index
    %c0_17 = arith.constant 0 : index
    %c0_18 = arith.constant 0 : index
    %19 = vector.load %arg2[%c2, %c0_17, %c0_18] : memref<9x64x256xbf16, #tpu.memory_space<vmem>>, vector<1x64x256xbf16>
    %20 = vector.shape_cast %19 : vector<1x64x256xbf16> to vector<64x256xbf16>
    %cst_19 = arith.constant dense<0.000000e+00> : vector<64x3xf32>
    %21 = tpu.matmul %20, %1, %cst_19 {dimension_numbers = #tpu.dot_dimension_numbers<[1], [0], [0], [1], [0, 0, 1, 1], [], []>} : vector<64x256xbf16>, vector<256x3xbf16>, vector<64x3xf32> -> vector<64x3xf32>
    %22 = arith.truncf %21 : vector<64x3xf32> to vector<64x3xbf16>
    %c2_20 = arith.constant 2 : index
    %c0_21 = arith.constant 0 : index
    %c0_22 = arith.constant 0 : index
    %23 = vector.load %arg3[%c2_20, %c0_21, %c0_22] : memref<9x3x16xbf16, #tpu.memory_space<vmem>>, vector<1x3x16xbf16>
    %24 = vector.shape_cast %23 : vector<1x3x16xbf16> to vector<3x16xbf16>
    %cst_23 = arith.constant dense<0.000000e+00> : vector<64x16xf32>
    %25 = tpu.matmul %22, %24, %cst_23 {dimension_numbers = #tpu.dot_dimension_numbers<[1], [0], [0], [1], [0, 0, 1, 1], [], []>} : vector<64x3xbf16>, vector<3x16xbf16>, vector<64x16xf32> -> vector<64x16xf32>
    %26 = arith.addf %18, %25 : vector<64x16xf32>
    %c3 = arith.constant 3 : index
    %c0_24 = arith.constant 0 : index
    %c0_25 = arith.constant 0 : index
    %27 = vector.load %arg2[%c3, %c0_24, %c0_25] : memref<9x64x256xbf16, #tpu.memory_space<vmem>>, vector<1x64x256xbf16>
    %28 = vector.shape_cast %27 : vector<1x64x256xbf16> to vector<64x256xbf16>
    %cst_26 = arith.constant dense<0.000000e+00> : vector<64x3xf32>
    %29 = tpu.matmul %28, %1, %cst_26 {dimension_numbers = #tpu.dot_dimension_numbers<[1], [0], [0], [1], [0, 0, 1, 1], [], []>} : vector<64x256xbf16>, vector<256x3xbf16>, vector<64x3xf32> -> vector<64x3xf32>
    %30 = arith.truncf %29 : vector<64x3xf32> to vector<64x3xbf16>
    %c3_27 = arith.constant 3 : index
    %c0_28 = arith.constant 0 : index
    %c0_29 = arith.constant 0 : index
    %31 = vector.load %arg3[%c3_27, %c0_28, %c0_29] : memref<9x3x16xbf16, #tpu.memory_space<vmem>>, vector<1x3x16xbf16>
    %32 = vector.shape_cast %31 : vector<1x3x16xbf16> to vector<3x16xbf16>
    %cst_30 = arith.constant dense<0.000000e+00> : vector<64x16xf32>
    %33 = tpu.matmul %30, %32, %cst_30 {dimension_numbers = #tpu.dot_dimension_numbers<[1], [0], [0], [1], [0, 0, 1, 1], [], []>} : vector<64x3xbf16>, vector<3x16xbf16>, vector<64x16xf32> -> vector<64x16xf32>
    %34 = arith.addf %26, %33 : vector<64x16xf32>
    %c4 = arith.constant 4 : index
    %c0_31 = arith.constant 0 : index
    %c0_32 = arith.constant 0 : index
    %35 = vector.load %arg2[%c4, %c0_31, %c0_32] : memref<9x64x256xbf16, #tpu.memory_space<vmem>>, vector<1x64x256xbf16>
    %36 = vector.shape_cast %35 : vector<1x64x256xbf16> to vector<64x256xbf16>
    %cst_33 = arith.constant dense<0.000000e+00> : vector<64x3xf32>
    %37 = tpu.matmul %36, %1, %cst_33 {dimension_numbers = #tpu.dot_dimension_numbers<[1], [0], [0], [1], [0, 0, 1, 1], [], []>} : vector<64x256xbf16>, vector<256x3xbf16>, vector<64x3xf32> -> vector<64x3xf32>
    %38 = arith.truncf %37 : vector<64x3xf32> to vector<64x3xbf16>
    %c4_34 = arith.constant 4 : index
    %c0_35 = arith.constant 0 : index
    %c0_36 = arith.constant 0 : index
    %39 = vector.load %arg3[%c4_34, %c0_35, %c0_36] : memref<9x3x16xbf16, #tpu.memory_space<vmem>>, vector<1x3x16xbf16>
    %40 = vector.shape_cast %39 : vector<1x3x16xbf16> to vector<3x16xbf16>
    %cst_37 = arith.constant dense<0.000000e+00> : vector<64x16xf32>
    %41 = tpu.matmul %38, %40, %cst_37 {dimension_numbers = #tpu.dot_dimension_numbers<[1], [0], [0], [1], [0, 0, 1, 1], [], []>} : vector<64x3xbf16>, vector<3x16xbf16>, vector<64x16xf32> -> vector<64x16xf32>
    %42 = arith.addf %34, %41 : vector<64x16xf32>
    %c5 = arith.constant 5 : index
    %c0_38 = arith.constant 0 : index
    %c0_39 = arith.constant 0 : index
    %43 = vector.load %arg2[%c5, %c0_38, %c0_39] : memref<9x64x256xbf16, #tpu.memory_space<vmem>>, vector<1x64x256xbf16>
    %44 = vector.shape_cast %43 : vector<1x64x256xbf16> to vector<64x256xbf16>
    %cst_40 = arith.constant dense<0.000000e+00> : vector<64x3xf32>
    %45 = tpu.matmul %44, %1, %cst_40 {dimension_numbers = #tpu.dot_dimension_numbers<[1], [0], [0], [1], [0, 0, 1, 1], [], []>} : vector<64x256xbf16>, vector<256x3xbf16>, vector<64x3xf32> -> vector<64x3xf32>
    %46 = arith.truncf %45 : vector<64x3xf32> to vector<64x3xbf16>
    %c5_41 = arith.constant 5 : index
    %c0_42 = arith.constant 0 : index
    %c0_43 = arith.constant 0 : index
    %47 = vector.load %arg3[%c5_41, %c0_42, %c0_43] : memref<9x3x16xbf16, #tpu.memory_space<vmem>>, vector<1x3x16xbf16>
    %48 = vector.shape_cast %47 : vector<1x3x16xbf16> to vector<3x16xbf16>
    %cst_44 = arith.constant dense<0.000000e+00> : vector<64x16xf32>
    %49 = tpu.matmul %46, %48, %cst_44 {dimension_numbers = #tpu.dot_dimension_numbers<[1], [0], [0], [1], [0, 0, 1, 1], [], []>} : vector<64x3xbf16>, vector<3x16xbf16>, vector<64x16xf32> -> vector<64x16xf32>
    %50 = arith.addf %42, %49 : vector<64x16xf32>
    %c6 = arith.constant 6 : index
    %c0_45 = arith.constant 0 : index
    %c0_46 = arith.constant 0 : index
    %51 = vector.load %arg2[%c6, %c0_45, %c0_46] : memref<9x64x256xbf16, #tpu.memory_space<vmem>>, vector<1x64x256xbf16>
    %52 = vector.shape_cast %51 : vector<1x64x256xbf16> to vector<64x256xbf16>
    %cst_47 = arith.constant dense<0.000000e+00> : vector<64x3xf32>
    %53 = tpu.matmul %52, %1, %cst_47 {dimension_numbers = #tpu.dot_dimension_numbers<[1], [0], [0], [1], [0, 0, 1, 1], [], []>} : vector<64x256xbf16>, vector<256x3xbf16>, vector<64x3xf32> -> vector<64x3xf32>
    %54 = arith.truncf %53 : vector<64x3xf32> to vector<64x3xbf16>
    %c6_48 = arith.constant 6 : index
    %c0_49 = arith.constant 0 : index
    %c0_50 = arith.constant 0 : index
    %55 = vector.load %arg3[%c6_48, %c0_49, %c0_50] : memref<9x3x16xbf16, #tpu.memory_space<vmem>>, vector<1x3x16xbf16>
    %56 = vector.shape_cast %55 : vector<1x3x16xbf16> to vector<3x16xbf16>
    %cst_51 = arith.constant dense<0.000000e+00> : vector<64x16xf32>
    %57 = tpu.matmul %54, %56, %cst_51 {dimension_numbers = #tpu.dot_dimension_numbers<[1], [0], [0], [1], [0, 0, 1, 1], [], []>} : vector<64x3xbf16>, vector<3x16xbf16>, vector<64x16xf32> -> vector<64x16xf32>
    %58 = arith.addf %50, %57 : vector<64x16xf32>
    %c7 = arith.constant 7 : index
    %c0_52 = arith.constant 0 : index
    %c0_53 = arith.constant 0 : index
    %59 = vector.load %arg2[%c7, %c0_52, %c0_53] : memref<9x64x256xbf16, #tpu.memory_space<vmem>>, vector<1x64x256xbf16>
    %60 = vector.shape_cast %59 : vector<1x64x256xbf16> to vector<64x256xbf16>
    %cst_54 = arith.constant dense<0.000000e+00> : vector<64x3xf32>
    %61 = tpu.matmul %60, %1, %cst_54 {dimension_numbers = #tpu.dot_dimension_numbers<[1], [0], [0], [1], [0, 0, 1, 1], [], []>} : vector<64x256xbf16>, vector<256x3xbf16>, vector<64x3xf32> -> vector<64x3xf32>
    %62 = arith.truncf %61 : vector<64x3xf32> to vector<64x3xbf16>
    %c7_55 = arith.constant 7 : index
    %c0_56 = arith.constant 0 : index
    %c0_57 = arith.constant 0 : index
    %63 = vector.load %arg3[%c7_55, %c0_56, %c0_57] : memref<9x3x16xbf16, #tpu.memory_space<vmem>>, vector<1x3x16xbf16>
    %64 = vector.shape_cast %63 : vector<1x3x16xbf16> to vector<3x16xbf16>
    %cst_58 = arith.constant dense<0.000000e+00> : vector<64x16xf32>
    %65 = tpu.matmul %62, %64, %cst_58 {dimension_numbers = #tpu.dot_dimension_numbers<[1], [0], [0], [1], [0, 0, 1, 1], [], []>} : vector<64x3xbf16>, vector<3x16xbf16>, vector<64x16xf32> -> vector<64x16xf32>
    %66 = arith.addf %58, %65 : vector<64x16xf32>
    %c8 = arith.constant 8 : index
    %c0_59 = arith.constant 0 : index
    %c0_60 = arith.constant 0 : index
    %67 = vector.load %arg2[%c8, %c0_59, %c0_60] : memref<9x64x256xbf16, #tpu.memory_space<vmem>>, vector<1x64x256xbf16>
    %68 = vector.shape_cast %67 : vector<1x64x256xbf16> to vector<64x256xbf16>
    %cst_61 = arith.constant dense<0.000000e+00> : vector<64x3xf32>
    %69 = tpu.matmul %68, %1, %cst_61 {dimension_numbers = #tpu.dot_dimension_numbers<[1], [0], [0], [1], [0, 0, 1, 1], [], []>} : vector<64x256xbf16>, vector<256x3xbf16>, vector<64x3xf32> -> vector<64x3xf32>
    %70 = arith.truncf %69 : vector<64x3xf32> to vector<64x3xbf16>
    %c8_62 = arith.constant 8 : index
    %c0_63 = arith.constant 0 : index
    %c0_64 = arith.constant 0 : index
    %71 = vector.load %arg3[%c8_62, %c0_63, %c0_64] : memref<9x3x16xbf16, #tpu.memory_space<vmem>>, vector<1x3x16xbf16>
    %72 = vector.shape_cast %71 : vector<1x3x16xbf16> to vector<3x16xbf16>
    %cst_65 = arith.constant dense<0.000000e+00> : vector<64x16xf32>
    %73 = tpu.matmul %70, %72, %cst_65 {dimension_numbers = #tpu.dot_dimension_numbers<[1], [0], [0], [1], [0, 0, 1, 1], [], []>} : vector<64x3xbf16>, vector<3x16xbf16>, vector<64x16xf32> -> vector<64x16xf32>
    %74 = arith.addf %66, %73 : vector<64x16xf32>
    %c0_66 = arith.constant 0 : index
    %c0_67 = arith.constant 0 : index
    %75 = vector.load %arg4[%c0_66, %c0_67] : memref<1x16xf32, #tpu.memory_space<vmem>>, vector<1x16xf32>
    %76 = vector.broadcast %75 : vector<1x16xf32> to vector<64x16xf32>
    %77 = arith.addf %74, %76 : vector<64x16xf32>
    %cst_68 = arith.constant 0.000000e+00 : f32
    %78 = vector.broadcast %cst_68 : f32 to vector<64x16xf32>
    %79 = arith.maximumf %77, %78 : vector<64x16xf32>
    %80 = arith.truncf %79 : vector<64x16xf32> to vector<64x16xbf16>
    %cst_69 = arith.constant 0.000000e+00 : f32
    %81 = vector.broadcast %cst_69 : f32 to vector<16x32xf32>
    %c0_70 = arith.constant 0 : index
    %c0_71 = arith.constant 0 : index
    %c0_72 = arith.constant 0 : index
    %82 = vector.load %arg5[%c0_70, %c0_71, %c0_72] : memref<9x16x64xbf16, #tpu.memory_space<vmem>>, vector<1x16x64xbf16>
    %83 = vector.shape_cast %82 : vector<1x16x64xbf16> to vector<16x64xbf16>
    %cst_73 = arith.constant dense<0.000000e+00> : vector<16x16xf32>
    %84 = tpu.matmul %83, %80, %cst_73 {dimension_numbers = #tpu.dot_dimension_numbers<[1], [0], [0], [1], [0, 0, 1, 1], [], []>} : vector<16x64xbf16>, vector<64x16xbf16>, vector<16x16xf32> -> vector<16x16xf32>
    %85 = arith.truncf %84 : vector<16x16xf32> to vector<16x16xbf16>
    %c0_74 = arith.constant 0 : index
    %c0_75 = arith.constant 0 : index
    %c0_76 = arith.constant 0 : index
    %86 = vector.load %arg6[%c0_74, %c0_75, %c0_76] : memref<9x16x32xbf16, #tpu.memory_space<vmem>>, vector<1x16x32xbf16>
    %87 = vector.shape_cast %86 : vector<1x16x32xbf16> to vector<16x32xbf16>
    %cst_77 = arith.constant dense<0.000000e+00> : vector<16x32xf32>
    %88 = tpu.matmul %85, %87, %cst_77 {dimension_numbers = #tpu.dot_dimension_numbers<[1], [0], [0], [1], [0, 0, 1, 1], [], []>} : vector<16x16xbf16>, vector<16x32xbf16>, vector<16x32xf32> -> vector<16x32xf32>
    %89 = arith.addf %81, %88 : vector<16x32xf32>
    %c1_78 = arith.constant 1 : index
    %c0_79 = arith.constant 0 : index
    %c0_80 = arith.constant 0 : index
    %90 = vector.load %arg5[%c1_78, %c0_79, %c0_80] : memref<9x16x64xbf16, #tpu.memory_space<vmem>>, vector<1x16x64xbf16>
    %91 = vector.shape_cast %90 : vector<1x16x64xbf16> to vector<16x64xbf16>
    %cst_81 = arith.constant dense<0.000000e+00> : vector<16x16xf32>
    %92 = tpu.matmul %91, %80, %cst_81 {dimension_numbers = #tpu.dot_dimension_numbers<[1], [0], [0], [1], [0, 0, 1, 1], [], []>} : vector<16x64xbf16>, vector<64x16xbf16>, vector<16x16xf32> -> vector<16x16xf32>
    %93 = arith.truncf %92 : vector<16x16xf32> to vector<16x16xbf16>
    %c1_82 = arith.constant 1 : index
    %c0_83 = arith.constant 0 : index
    %c0_84 = arith.constant 0 : index
    %94 = vector.load %arg6[%c1_82, %c0_83, %c0_84] : memref<9x16x32xbf16, #tpu.memory_space<vmem>>, vector<1x16x32xbf16>
    %95 = vector.shape_cast %94 : vector<1x16x32xbf16> to vector<16x32xbf16>
    %cst_85 = arith.constant dense<0.000000e+00> : vector<16x32xf32>
    %96 = tpu.matmul %93, %95, %cst_85 {dimension_numbers = #tpu.dot_dimension_numbers<[1], [0], [0], [1], [0, 0, 1, 1], [], []>} : vector<16x16xbf16>, vector<16x32xbf16>, vector<16x32xf32> -> vector<16x32xf32>
    %97 = arith.addf %89, %96 : vector<16x32xf32>
    %c2_86 = arith.constant 2 : index
    %c0_87 = arith.constant 0 : index
    %c0_88 = arith.constant 0 : index
    %98 = vector.load %arg5[%c2_86, %c0_87, %c0_88] : memref<9x16x64xbf16, #tpu.memory_space<vmem>>, vector<1x16x64xbf16>
    %99 = vector.shape_cast %98 : vector<1x16x64xbf16> to vector<16x64xbf16>
    %cst_89 = arith.constant dense<0.000000e+00> : vector<16x16xf32>
    %100 = tpu.matmul %99, %80, %cst_89 {dimension_numbers = #tpu.dot_dimension_numbers<[1], [0], [0], [1], [0, 0, 1, 1], [], []>} : vector<16x64xbf16>, vector<64x16xbf16>, vector<16x16xf32> -> vector<16x16xf32>
    %101 = arith.truncf %100 : vector<16x16xf32> to vector<16x16xbf16>
    %c2_90 = arith.constant 2 : index
    %c0_91 = arith.constant 0 : index
    %c0_92 = arith.constant 0 : index
    %102 = vector.load %arg6[%c2_90, %c0_91, %c0_92] : memref<9x16x32xbf16, #tpu.memory_space<vmem>>, vector<1x16x32xbf16>
    %103 = vector.shape_cast %102 : vector<1x16x32xbf16> to vector<16x32xbf16>
    %cst_93 = arith.constant dense<0.000000e+00> : vector<16x32xf32>
    %104 = tpu.matmul %101, %103, %cst_93 {dimension_numbers = #tpu.dot_dimension_numbers<[1], [0], [0], [1], [0, 0, 1, 1], [], []>} : vector<16x16xbf16>, vector<16x32xbf16>, vector<16x32xf32> -> vector<16x32xf32>
    %105 = arith.addf %97, %104 : vector<16x32xf32>
    %c3_94 = arith.constant 3 : index
    %c0_95 = arith.constant 0 : index
    %c0_96 = arith.constant 0 : index
    %106 = vector.load %arg5[%c3_94, %c0_95, %c0_96] : memref<9x16x64xbf16, #tpu.memory_space<vmem>>, vector<1x16x64xbf16>
    %107 = vector.shape_cast %106 : vector<1x16x64xbf16> to vector<16x64xbf16>
    %cst_97 = arith.constant dense<0.000000e+00> : vector<16x16xf32>
    %108 = tpu.matmul %107, %80, %cst_97 {dimension_numbers = #tpu.dot_dimension_numbers<[1], [0], [0], [1], [0, 0, 1, 1], [], []>} : vector<16x64xbf16>, vector<64x16xbf16>, vector<16x16xf32> -> vector<16x16xf32>
    %109 = arith.truncf %108 : vector<16x16xf32> to vector<16x16xbf16>
    %c3_98 = arith.constant 3 : index
    %c0_99 = arith.constant 0 : index
    %c0_100 = arith.constant 0 : index
    %110 = vector.load %arg6[%c3_98, %c0_99, %c0_100] : memref<9x16x32xbf16, #tpu.memory_space<vmem>>, vector<1x16x32xbf16>
    %111 = vector.shape_cast %110 : vector<1x16x32xbf16> to vector<16x32xbf16>
    %cst_101 = arith.constant dense<0.000000e+00> : vector<16x32xf32>
    %112 = tpu.matmul %109, %111, %cst_101 {dimension_numbers = #tpu.dot_dimension_numbers<[1], [0], [0], [1], [0, 0, 1, 1], [], []>} : vector<16x16xbf16>, vector<16x32xbf16>, vector<16x32xf32> -> vector<16x32xf32>
    %113 = arith.addf %105, %112 : vector<16x32xf32>
    %c4_102 = arith.constant 4 : index
    %c0_103 = arith.constant 0 : index
    %c0_104 = arith.constant 0 : index
    %114 = vector.load %arg5[%c4_102, %c0_103, %c0_104] : memref<9x16x64xbf16, #tpu.memory_space<vmem>>, vector<1x16x64xbf16>
    %115 = vector.shape_cast %114 : vector<1x16x64xbf16> to vector<16x64xbf16>
    %cst_105 = arith.constant dense<0.000000e+00> : vector<16x16xf32>
    %116 = tpu.matmul %115, %80, %cst_105 {dimension_numbers = #tpu.dot_dimension_numbers<[1], [0], [0], [1], [0, 0, 1, 1], [], []>} : vector<16x64xbf16>, vector<64x16xbf16>, vector<16x16xf32> -> vector<16x16xf32>
    %117 = arith.truncf %116 : vector<16x16xf32> to vector<16x16xbf16>
    %c4_106 = arith.constant 4 : index
    %c0_107 = arith.constant 0 : index
    %c0_108 = arith.constant 0 : index
    %118 = vector.load %arg6[%c4_106, %c0_107, %c0_108] : memref<9x16x32xbf16, #tpu.memory_space<vmem>>, vector<1x16x32xbf16>
    %119 = vector.shape_cast %118 : vector<1x16x32xbf16> to vector<16x32xbf16>
    %cst_109 = arith.constant dense<0.000000e+00> : vector<16x32xf32>
    %120 = tpu.matmul %117, %119, %cst_109 {dimension_numbers = #tpu.dot_dimension_numbers<[1], [0], [0], [1], [0, 0, 1, 1], [], []>} : vector<16x16xbf16>, vector<16x32xbf16>, vector<16x32xf32> -> vector<16x32xf32>
    %121 = arith.addf %113, %120 : vector<16x32xf32>
    %c5_110 = arith.constant 5 : index
    %c0_111 = arith.constant 0 : index
    %c0_112 = arith.constant 0 : index
    %122 = vector.load %arg5[%c5_110, %c0_111, %c0_112] : memref<9x16x64xbf16, #tpu.memory_space<vmem>>, vector<1x16x64xbf16>
    %123 = vector.shape_cast %122 : vector<1x16x64xbf16> to vector<16x64xbf16>
    %cst_113 = arith.constant dense<0.000000e+00> : vector<16x16xf32>
    %124 = tpu.matmul %123, %80, %cst_113 {dimension_numbers = #tpu.dot_dimension_numbers<[1], [0], [0], [1], [0, 0, 1, 1], [], []>} : vector<16x64xbf16>, vector<64x16xbf16>, vector<16x16xf32> -> vector<16x16xf32>
    %125 = arith.truncf %124 : vector<16x16xf32> to vector<16x16xbf16>
    %c5_114 = arith.constant 5 : index
    %c0_115 = arith.constant 0 : index
    %c0_116 = arith.constant 0 : index
    %126 = vector.load %arg6[%c5_114, %c0_115, %c0_116] : memref<9x16x32xbf16, #tpu.memory_space<vmem>>, vector<1x16x32xbf16>
    %127 = vector.shape_cast %126 : vector<1x16x32xbf16> to vector<16x32xbf16>
    %cst_117 = arith.constant dense<0.000000e+00> : vector<16x32xf32>
    %128 = tpu.matmul %125, %127, %cst_117 {dimension_numbers = #tpu.dot_dimension_numbers<[1], [0], [0], [1], [0, 0, 1, 1], [], []>} : vector<16x16xbf16>, vector<16x32xbf16>, vector<16x32xf32> -> vector<16x32xf32>
    %129 = arith.addf %121, %128 : vector<16x32xf32>
    %c6_118 = arith.constant 6 : index
    %c0_119 = arith.constant 0 : index
    %c0_120 = arith.constant 0 : index
    %130 = vector.load %arg5[%c6_118, %c0_119, %c0_120] : memref<9x16x64xbf16, #tpu.memory_space<vmem>>, vector<1x16x64xbf16>
    %131 = vector.shape_cast %130 : vector<1x16x64xbf16> to vector<16x64xbf16>
    %cst_121 = arith.constant dense<0.000000e+00> : vector<16x16xf32>
    %132 = tpu.matmul %131, %80, %cst_121 {dimension_numbers = #tpu.dot_dimension_numbers<[1], [0], [0], [1], [0, 0, 1, 1], [], []>} : vector<16x64xbf16>, vector<64x16xbf16>, vector<16x16xf32> -> vector<16x16xf32>
    %133 = arith.truncf %132 : vector<16x16xf32> to vector<16x16xbf16>
    %c6_122 = arith.constant 6 : index
    %c0_123 = arith.constant 0 : index
    %c0_124 = arith.constant 0 : index
    %134 = vector.load %arg6[%c6_122, %c0_123, %c0_124] : memref<9x16x32xbf16, #tpu.memory_space<vmem>>, vector<1x16x32xbf16>
    %135 = vector.shape_cast %134 : vector<1x16x32xbf16> to vector<16x32xbf16>
    %cst_125 = arith.constant dense<0.000000e+00> : vector<16x32xf32>
    %136 = tpu.matmul %133, %135, %cst_125 {dimension_numbers = #tpu.dot_dimension_numbers<[1], [0], [0], [1], [0, 0, 1, 1], [], []>} : vector<16x16xbf16>, vector<16x32xbf16>, vector<16x32xf32> -> vector<16x32xf32>
    %137 = arith.addf %129, %136 : vector<16x32xf32>
    %c7_126 = arith.constant 7 : index
    %c0_127 = arith.constant 0 : index
    %c0_128 = arith.constant 0 : index
    %138 = vector.load %arg5[%c7_126, %c0_127, %c0_128] : memref<9x16x64xbf16, #tpu.memory_space<vmem>>, vector<1x16x64xbf16>
    %139 = vector.shape_cast %138 : vector<1x16x64xbf16> to vector<16x64xbf16>
    %cst_129 = arith.constant dense<0.000000e+00> : vector<16x16xf32>
    %140 = tpu.matmul %139, %80, %cst_129 {dimension_numbers = #tpu.dot_dimension_numbers<[1], [0], [0], [1], [0, 0, 1, 1], [], []>} : vector<16x64xbf16>, vector<64x16xbf16>, vector<16x16xf32> -> vector<16x16xf32>
    %141 = arith.truncf %140 : vector<16x16xf32> to vector<16x16xbf16>
    %c7_130 = arith.constant 7 : index
    %c0_131 = arith.constant 0 : index
    %c0_132 = arith.constant 0 : index
    %142 = vector.load %arg6[%c7_130, %c0_131, %c0_132] : memref<9x16x32xbf16, #tpu.memory_space<vmem>>, vector<1x16x32xbf16>
    %143 = vector.shape_cast %142 : vector<1x16x32xbf16> to vector<16x32xbf16>
    %cst_133 = arith.constant dense<0.000000e+00> : vector<16x32xf32>
    %144 = tpu.matmul %141, %143, %cst_133 {dimension_numbers = #tpu.dot_dimension_numbers<[1], [0], [0], [1], [0, 0, 1, 1], [], []>} : vector<16x16xbf16>, vector<16x32xbf16>, vector<16x32xf32> -> vector<16x32xf32>
    %145 = arith.addf %137, %144 : vector<16x32xf32>
    %c8_134 = arith.constant 8 : index
    %c0_135 = arith.constant 0 : index
    %c0_136 = arith.constant 0 : index
    %146 = vector.load %arg5[%c8_134, %c0_135, %c0_136] : memref<9x16x64xbf16, #tpu.memory_space<vmem>>, vector<1x16x64xbf16>
    %147 = vector.shape_cast %146 : vector<1x16x64xbf16> to vector<16x64xbf16>
    %cst_137 = arith.constant dense<0.000000e+00> : vector<16x16xf32>
    %148 = tpu.matmul %147, %80, %cst_137 {dimension_numbers = #tpu.dot_dimension_numbers<[1], [0], [0], [1], [0, 0, 1, 1], [], []>} : vector<16x64xbf16>, vector<64x16xbf16>, vector<16x16xf32> -> vector<16x16xf32>
    %149 = arith.truncf %148 : vector<16x16xf32> to vector<16x16xbf16>
    %c8_138 = arith.constant 8 : index
    %c0_139 = arith.constant 0 : index
    %c0_140 = arith.constant 0 : index
    %150 = vector.load %arg6[%c8_138, %c0_139, %c0_140] : memref<9x16x32xbf16, #tpu.memory_space<vmem>>, vector<1x16x32xbf16>
    %151 = vector.shape_cast %150 : vector<1x16x32xbf16> to vector<16x32xbf16>
    %cst_141 = arith.constant dense<0.000000e+00> : vector<16x32xf32>
    %152 = tpu.matmul %149, %151, %cst_141 {dimension_numbers = #tpu.dot_dimension_numbers<[1], [0], [0], [1], [0, 0, 1, 1], [], []>} : vector<16x16xbf16>, vector<16x32xbf16>, vector<16x32xf32> -> vector<16x32xf32>
    %153 = arith.addf %145, %152 : vector<16x32xf32>
    %c0_142 = arith.constant 0 : index
    %c0_143 = arith.constant 0 : index
    %154 = vector.load %arg7[%c0_142, %c0_143] : memref<1x32xf32, #tpu.memory_space<vmem>>, vector<1x32xf32>
    %155 = vector.broadcast %154 : vector<1x32xf32> to vector<16x32xf32>
    %156 = arith.addf %153, %155 : vector<16x32xf32>
    %cst_144 = arith.constant 0.000000e+00 : f32
    %157 = vector.broadcast %cst_144 : f32 to vector<16x32xf32>
    %158 = arith.maximumf %156, %157 : vector<16x32xf32>
    %159 = arith.truncf %158 : vector<16x32xf32> to vector<16x32xbf16>
    %cst_145 = arith.constant 0.000000e+00 : f32
    %160 = vector.broadcast %cst_145 : f32 to vector<4x64xf32>
    %c0_146 = arith.constant 0 : index
    %c0_147 = arith.constant 0 : index
    %c0_148 = arith.constant 0 : index
    %161 = vector.load %arg8[%c0_146, %c0_147, %c0_148] : memref<9x4x16xbf16, #tpu.memory_space<vmem>>, vector<1x4x16xbf16>
    %162 = vector.shape_cast %161 : vector<1x4x16xbf16> to vector<4x16xbf16>
    %cst_149 = arith.constant dense<0.000000e+00> : vector<4x32xf32>
    %163 = tpu.matmul %162, %159, %cst_149 {dimension_numbers = #tpu.dot_dimension_numbers<[1], [0], [0], [1], [0, 0, 1, 1], [], []>} : vector<4x16xbf16>, vector<16x32xbf16>, vector<4x32xf32> -> vector<4x32xf32>
    %164 = arith.truncf %163 : vector<4x32xf32> to vector<4x32xbf16>
    %c0_150 = arith.constant 0 : index
    %c0_151 = arith.constant 0 : index
    %c0_152 = arith.constant 0 : index
    %165 = vector.load %arg9[%c0_150, %c0_151, %c0_152] : memref<9x32x64xbf16, #tpu.memory_space<vmem>>, vector<1x32x64xbf16>
    %166 = vector.shape_cast %165 : vector<1x32x64xbf16> to vector<32x64xbf16>
    %cst_153 = arith.constant dense<0.000000e+00> : vector<4x64xf32>
    %167 = tpu.matmul %164, %166, %cst_153 {dimension_numbers = #tpu.dot_dimension_numbers<[1], [0], [0], [1], [0, 0, 1, 1], [], []>} : vector<4x32xbf16>, vector<32x64xbf16>, vector<4x64xf32> -> vector<4x64xf32>
    %168 = arith.addf %160, %167 : vector<4x64xf32>
    %c1_154 = arith.constant 1 : index
    %c0_155 = arith.constant 0 : index
    %c0_156 = arith.constant 0 : index
    %169 = vector.load %arg8[%c1_154, %c0_155, %c0_156] : memref<9x4x16xbf16, #tpu.memory_space<vmem>>, vector<1x4x16xbf16>
    %170 = vector.shape_cast %169 : vector<1x4x16xbf16> to vector<4x16xbf16>
    %cst_157 = arith.constant dense<0.000000e+00> : vector<4x32xf32>
    %171 = tpu.matmul %170, %159, %cst_157 {dimension_numbers = #tpu.dot_dimension_numbers<[1], [0], [0], [1], [0, 0, 1, 1], [], []>} : vector<4x16xbf16>, vector<16x32xbf16>, vector<4x32xf32> -> vector<4x32xf32>
    %172 = arith.truncf %171 : vector<4x32xf32> to vector<4x32xbf16>
    %c1_158 = arith.constant 1 : index
    %c0_159 = arith.constant 0 : index
    %c0_160 = arith.constant 0 : index
    %173 = vector.load %arg9[%c1_158, %c0_159, %c0_160] : memref<9x32x64xbf16, #tpu.memory_space<vmem>>, vector<1x32x64xbf16>
    %174 = vector.shape_cast %173 : vector<1x32x64xbf16> to vector<32x64xbf16>
    %cst_161 = arith.constant dense<0.000000e+00> : vector<4x64xf32>
    %175 = tpu.matmul %172, %174, %cst_161 {dimension_numbers = #tpu.dot_dimension_numbers<[1], [0], [0], [1], [0, 0, 1, 1], [], []>} : vector<4x32xbf16>, vector<32x64xbf16>, vector<4x64xf32> -> vector<4x64xf32>
    %176 = arith.addf %168, %175 : vector<4x64xf32>
    %c2_162 = arith.constant 2 : index
    %c0_163 = arith.constant 0 : index
    %c0_164 = arith.constant 0 : index
    %177 = vector.load %arg8[%c2_162, %c0_163, %c0_164] : memref<9x4x16xbf16, #tpu.memory_space<vmem>>, vector<1x4x16xbf16>
    %178 = vector.shape_cast %177 : vector<1x4x16xbf16> to vector<4x16xbf16>
    %cst_165 = arith.constant dense<0.000000e+00> : vector<4x32xf32>
    %179 = tpu.matmul %178, %159, %cst_165 {dimension_numbers = #tpu.dot_dimension_numbers<[1], [0], [0], [1], [0, 0, 1, 1], [], []>} : vector<4x16xbf16>, vector<16x32xbf16>, vector<4x32xf32> -> vector<4x32xf32>
    %180 = arith.truncf %179 : vector<4x32xf32> to vector<4x32xbf16>
    %c2_166 = arith.constant 2 : index
    %c0_167 = arith.constant 0 : index
    %c0_168 = arith.constant 0 : index
    %181 = vector.load %arg9[%c2_166, %c0_167, %c0_168] : memref<9x32x64xbf16, #tpu.memory_space<vmem>>, vector<1x32x64xbf16>
    %182 = vector.shape_cast %181 : vector<1x32x64xbf16> to vector<32x64xbf16>
    %cst_169 = arith.constant dense<0.000000e+00> : vector<4x64xf32>
    %183 = tpu.matmul %180, %182, %cst_169 {dimension_numbers = #tpu.dot_dimension_numbers<[1], [0], [0], [1], [0, 0, 1, 1], [], []>} : vector<4x32xbf16>, vector<32x64xbf16>, vector<4x64xf32> -> vector<4x64xf32>
    %184 = arith.addf %176, %183 : vector<4x64xf32>
    %c3_170 = arith.constant 3 : index
    %c0_171 = arith.constant 0 : index
    %c0_172 = arith.constant 0 : index
    %185 = vector.load %arg8[%c3_170, %c0_171, %c0_172] : memref<9x4x16xbf16, #tpu.memory_space<vmem>>, vector<1x4x16xbf16>
    %186 = vector.shape_cast %185 : vector<1x4x16xbf16> to vector<4x16xbf16>
    %cst_173 = arith.constant dense<0.000000e+00> : vector<4x32xf32>
    %187 = tpu.matmul %186, %159, %cst_173 {dimension_numbers = #tpu.dot_dimension_numbers<[1], [0], [0], [1], [0, 0, 1, 1], [], []>} : vector<4x16xbf16>, vector<16x32xbf16>, vector<4x32xf32> -> vector<4x32xf32>
    %188 = arith.truncf %187 : vector<4x32xf32> to vector<4x32xbf16>
    %c3_174 = arith.constant 3 : index
    %c0_175 = arith.constant 0 : index
    %c0_176 = arith.constant 0 : index
    %189 = vector.load %arg9[%c3_174, %c0_175, %c0_176] : memref<9x32x64xbf16, #tpu.memory_space<vmem>>, vector<1x32x64xbf16>
    %190 = vector.shape_cast %189 : vector<1x32x64xbf16> to vector<32x64xbf16>
    %cst_177 = arith.constant dense<0.000000e+00> : vector<4x64xf32>
    %191 = tpu.matmul %188, %190, %cst_177 {dimension_numbers = #tpu.dot_dimension_numbers<[1], [0], [0], [1], [0, 0, 1, 1], [], []>} : vector<4x32xbf16>, vector<32x64xbf16>, vector<4x64xf32> -> vector<4x64xf32>
    %192 = arith.addf %184, %191 : vector<4x64xf32>
    %c4_178 = arith.constant 4 : index
    %c0_179 = arith.constant 0 : index
    %c0_180 = arith.constant 0 : index
    %193 = vector.load %arg8[%c4_178, %c0_179, %c0_180] : memref<9x4x16xbf16, #tpu.memory_space<vmem>>, vector<1x4x16xbf16>
    %194 = vector.shape_cast %193 : vector<1x4x16xbf16> to vector<4x16xbf16>
    %cst_181 = arith.constant dense<0.000000e+00> : vector<4x32xf32>
    %195 = tpu.matmul %194, %159, %cst_181 {dimension_numbers = #tpu.dot_dimension_numbers<[1], [0], [0], [1], [0, 0, 1, 1], [], []>} : vector<4x16xbf16>, vector<16x32xbf16>, vector<4x32xf32> -> vector<4x32xf32>
    %196 = arith.truncf %195 : vector<4x32xf32> to vector<4x32xbf16>
    %c4_182 = arith.constant 4 : index
    %c0_183 = arith.constant 0 : index
    %c0_184 = arith.constant 0 : index
    %197 = vector.load %arg9[%c4_182, %c0_183, %c0_184] : memref<9x32x64xbf16, #tpu.memory_space<vmem>>, vector<1x32x64xbf16>
    %198 = vector.shape_cast %197 : vector<1x32x64xbf16> to vector<32x64xbf16>
    %cst_185 = arith.constant dense<0.000000e+00> : vector<4x64xf32>
    %199 = tpu.matmul %196, %198, %cst_185 {dimension_numbers = #tpu.dot_dimension_numbers<[1], [0], [0], [1], [0, 0, 1, 1], [], []>} : vector<4x32xbf16>, vector<32x64xbf16>, vector<4x64xf32> -> vector<4x64xf32>
    %200 = arith.addf %192, %199 : vector<4x64xf32>
    %c5_186 = arith.constant 5 : index
    %c0_187 = arith.constant 0 : index
    %c0_188 = arith.constant 0 : index
    %201 = vector.load %arg8[%c5_186, %c0_187, %c0_188] : memref<9x4x16xbf16, #tpu.memory_space<vmem>>, vector<1x4x16xbf16>
    %202 = vector.shape_cast %201 : vector<1x4x16xbf16> to vector<4x16xbf16>
    %cst_189 = arith.constant dense<0.000000e+00> : vector<4x32xf32>
    %203 = tpu.matmul %202, %159, %cst_189 {dimension_numbers = #tpu.dot_dimension_numbers<[1], [0], [0], [1], [0, 0, 1, 1], [], []>} : vector<4x16xbf16>, vector<16x32xbf16>, vector<4x32xf32> -> vector<4x32xf32>
    %204 = arith.truncf %203 : vector<4x32xf32> to vector<4x32xbf16>
    %c5_190 = arith.constant 5 : index
    %c0_191 = arith.constant 0 : index
    %c0_192 = arith.constant 0 : index
    %205 = vector.load %arg9[%c5_190, %c0_191, %c0_192] : memref<9x32x64xbf16, #tpu.memory_space<vmem>>, vector<1x32x64xbf16>
    %206 = vector.shape_cast %205 : vector<1x32x64xbf16> to vector<32x64xbf16>
    %cst_193 = arith.constant dense<0.000000e+00> : vector<4x64xf32>
    %207 = tpu.matmul %204, %206, %cst_193 {dimension_numbers = #tpu.dot_dimension_numbers<[1], [0], [0], [1], [0, 0, 1, 1], [], []>} : vector<4x32xbf16>, vector<32x64xbf16>, vector<4x64xf32> -> vector<4x64xf32>
    %208 = arith.addf %200, %207 : vector<4x64xf32>
    %c6_194 = arith.constant 6 : index
    %c0_195 = arith.constant 0 : index
    %c0_196 = arith.constant 0 : index
    %209 = vector.load %arg8[%c6_194, %c0_195, %c0_196] : memref<9x4x16xbf16, #tpu.memory_space<vmem>>, vector<1x4x16xbf16>
    %210 = vector.shape_cast %209 : vector<1x4x16xbf16> to vector<4x16xbf16>
    %cst_197 = arith.constant dense<0.000000e+00> : vector<4x32xf32>
    %211 = tpu.matmul %210, %159, %cst_197 {dimension_numbers = #tpu.dot_dimension_numbers<[1], [0], [0], [1], [0, 0, 1, 1], [], []>} : vector<4x16xbf16>, vector<16x32xbf16>, vector<4x32xf32> -> vector<4x32xf32>
    %212 = arith.truncf %211 : vector<4x32xf32> to vector<4x32xbf16>
    %c6_198 = arith.constant 6 : index
    %c0_199 = arith.constant 0 : index
    %c0_200 = arith.constant 0 : index
    %213 = vector.load %arg9[%c6_198, %c0_199, %c0_200] : memref<9x32x64xbf16, #tpu.memory_space<vmem>>, vector<1x32x64xbf16>
    %214 = vector.shape_cast %213 : vector<1x32x64xbf16> to vector<32x64xbf16>
    %cst_201 = arith.constant dense<0.000000e+00> : vector<4x64xf32>
    %215 = tpu.matmul %212, %214, %cst_201 {dimension_numbers = #tpu.dot_dimension_numbers<[1], [0], [0], [1], [0, 0, 1, 1], [], []>} : vector<4x32xbf16>, vector<32x64xbf16>, vector<4x64xf32> -> vector<4x64xf32>
    %216 = arith.addf %208, %215 : vector<4x64xf32>
    %c7_202 = arith.constant 7 : index
    %c0_203 = arith.constant 0 : index
    %c0_204 = arith.constant 0 : index
    %217 = vector.load %arg8[%c7_202, %c0_203, %c0_204] : memref<9x4x16xbf16, #tpu.memory_space<vmem>>, vector<1x4x16xbf16>
    %218 = vector.shape_cast %217 : vector<1x4x16xbf16> to vector<4x16xbf16>
    %cst_205 = arith.constant dense<0.000000e+00> : vector<4x32xf32>
    %219 = tpu.matmul %218, %159, %cst_205 {dimension_numbers = #tpu.dot_dimension_numbers<[1], [0], [0], [1], [0, 0, 1, 1], [], []>} : vector<4x16xbf16>, vector<16x32xbf16>, vector<4x32xf32> -> vector<4x32xf32>
    %220 = arith.truncf %219 : vector<4x32xf32> to vector<4x32xbf16>
    %c7_206 = arith.constant 7 : index
    %c0_207 = arith.constant 0 : index
    %c0_208 = arith.constant 0 : index
    %221 = vector.load %arg9[%c7_206, %c0_207, %c0_208] : memref<9x32x64xbf16, #tpu.memory_space<vmem>>, vector<1x32x64xbf16>
    %222 = vector.shape_cast %221 : vector<1x32x64xbf16> to vector<32x64xbf16>
    %cst_209 = arith.constant dense<0.000000e+00> : vector<4x64xf32>
    %223 = tpu.matmul %220, %222, %cst_209 {dimension_numbers = #tpu.dot_dimension_numbers<[1], [0], [0], [1], [0, 0, 1, 1], [], []>} : vector<4x32xbf16>, vector<32x64xbf16>, vector<4x64xf32> -> vector<4x64xf32>
    %224 = arith.addf %216, %223 : vector<4x64xf32>
    %c8_210 = arith.constant 8 : index
    %c0_211 = arith.constant 0 : index
    %c0_212 = arith.constant 0 : index
    %225 = vector.load %arg8[%c8_210, %c0_211, %c0_212] : memref<9x4x16xbf16, #tpu.memory_space<vmem>>, vector<1x4x16xbf16>
    %226 = vector.shape_cast %225 : vector<1x4x16xbf16> to vector<4x16xbf16>
    %cst_213 = arith.constant dense<0.000000e+00> : vector<4x32xf32>
    %227 = tpu.matmul %226, %159, %cst_213 {dimension_numbers = #tpu.dot_dimension_numbers<[1], [0], [0], [1], [0, 0, 1, 1], [], []>} : vector<4x16xbf16>, vector<16x32xbf16>, vector<4x32xf32> -> vector<4x32xf32>
    %228 = arith.truncf %227 : vector<4x32xf32> to vector<4x32xbf16>
    %c8_214 = arith.constant 8 : index
    %c0_215 = arith.constant 0 : index
    %c0_216 = arith.constant 0 : index
    %229 = vector.load %arg9[%c8_214, %c0_215, %c0_216] : memref<9x32x64xbf16, #tpu.memory_space<vmem>>, vector<1x32x64xbf16>
    %230 = vector.shape_cast %229 : vector<1x32x64xbf16> to vector<32x64xbf16>
    %cst_217 = arith.constant dense<0.000000e+00> : vector<4x64xf32>
    %231 = tpu.matmul %228, %230, %cst_217 {dimension_numbers = #tpu.dot_dimension_numbers<[1], [0], [0], [1], [0, 0, 1, 1], [], []>} : vector<4x32xbf16>, vector<32x64xbf16>, vector<4x64xf32> -> vector<4x64xf32>
    %232 = arith.addf %224, %231 : vector<4x64xf32>
    %c0_218 = arith.constant 0 : index
    %c0_219 = arith.constant 0 : index
    %233 = vector.load %arg10[%c0_218, %c0_219] : memref<1x64xf32, #tpu.memory_space<vmem>>, vector<1x64xf32>
    %234 = vector.broadcast %233 : vector<1x64xf32> to vector<4x64xf32>
    %235 = arith.addf %232, %234 : vector<4x64xf32>
    %cst_220 = arith.constant 0.000000e+00 : f32
    %236 = vector.broadcast %cst_220 : f32 to vector<4x64xf32>
    %237 = arith.maximumf %235, %236 : vector<4x64xf32>
    %238 = arith.truncf %237 : vector<4x64xf32> to vector<4x64xbf16>
    %cst_221 = arith.constant 0.000000e+00 : f32
    %239 = vector.broadcast %cst_221 : f32 to vector<1x128xf32>
    %c0_222 = arith.constant 0 : index
    %c0_223 = arith.constant 0 : index
    %c0_224 = arith.constant 0 : index
    %240 = vector.load %arg11[%c0_222, %c0_223, %c0_224] : memref<9x1x4xbf16, #tpu.memory_space<vmem>>, vector<1x1x4xbf16>
    %241 = vector.shape_cast %240 : vector<1x1x4xbf16> to vector<1x4xbf16>
    %cst_225 = arith.constant dense<0.000000e+00> : vector<1x64xf32>
    %242 = tpu.matmul %241, %238, %cst_225 {dimension_numbers = #tpu.dot_dimension_numbers<[1], [0], [0], [1], [0, 0, 1, 1], [], []>} : vector<1x4xbf16>, vector<4x64xbf16>, vector<1x64xf32> -> vector<1x64xf32>
    %243 = arith.truncf %242 : vector<1x64xf32> to vector<1x64xbf16>
    %c0_226 = arith.constant 0 : index
    %c0_227 = arith.constant 0 : index
    %c0_228 = arith.constant 0 : index
    %244 = vector.load %arg12[%c0_226, %c0_227, %c0_228] : memref<9x64x128xbf16, #tpu.memory_space<vmem>>, vector<1x64x128xbf16>
    %245 = vector.shape_cast %244 : vector<1x64x128xbf16> to vector<64x128xbf16>
    %cst_229 = arith.constant dense<0.000000e+00> : vector<1x128xf32>
    %246 = tpu.matmul %243, %245, %cst_229 {dimension_numbers = #tpu.dot_dimension_numbers<[1], [0], [0], [1], [0, 0, 1, 1], [], []>} : vector<1x64xbf16>, vector<64x128xbf16>, vector<1x128xf32> -> vector<1x128xf32>
    %247 = arith.addf %239, %246 : vector<1x128xf32>
    %c1_230 = arith.constant 1 : index
    %c0_231 = arith.constant 0 : index
    %c0_232 = arith.constant 0 : index
    %248 = vector.load %arg11[%c1_230, %c0_231, %c0_232] : memref<9x1x4xbf16, #tpu.memory_space<vmem>>, vector<1x1x4xbf16>
    %249 = vector.shape_cast %248 : vector<1x1x4xbf16> to vector<1x4xbf16>
    %cst_233 = arith.constant dense<0.000000e+00> : vector<1x64xf32>
    %250 = tpu.matmul %249, %238, %cst_233 {dimension_numbers = #tpu.dot_dimension_numbers<[1], [0], [0], [1], [0, 0, 1, 1], [], []>} : vector<1x4xbf16>, vector<4x64xbf16>, vector<1x64xf32> -> vector<1x64xf32>
    %251 = arith.truncf %250 : vector<1x64xf32> to vector<1x64xbf16>
    %c1_234 = arith.constant 1 : index
    %c0_235 = arith.constant 0 : index
    %c0_236 = arith.constant 0 : index
    %252 = vector.load %arg12[%c1_234, %c0_235, %c0_236] : memref<9x64x128xbf16, #tpu.memory_space<vmem>>, vector<1x64x128xbf16>
    %253 = vector.shape_cast %252 : vector<1x64x128xbf16> to vector<64x128xbf16>
    %cst_237 = arith.constant dense<0.000000e+00> : vector<1x128xf32>
    %254 = tpu.matmul %251, %253, %cst_237 {dimension_numbers = #tpu.dot_dimension_numbers<[1], [0], [0], [1], [0, 0, 1, 1], [], []>} : vector<1x64xbf16>, vector<64x128xbf16>, vector<1x128xf32> -> vector<1x128xf32>
    %255 = arith.addf %247, %254 : vector<1x128xf32>
    %c2_238 = arith.constant 2 : index
    %c0_239 = arith.constant 0 : index
    %c0_240 = arith.constant 0 : index
    %256 = vector.load %arg11[%c2_238, %c0_239, %c0_240] : memref<9x1x4xbf16, #tpu.memory_space<vmem>>, vector<1x1x4xbf16>
    %257 = vector.shape_cast %256 : vector<1x1x4xbf16> to vector<1x4xbf16>
    %cst_241 = arith.constant dense<0.000000e+00> : vector<1x64xf32>
    %258 = tpu.matmul %257, %238, %cst_241 {dimension_numbers = #tpu.dot_dimension_numbers<[1], [0], [0], [1], [0, 0, 1, 1], [], []>} : vector<1x4xbf16>, vector<4x64xbf16>, vector<1x64xf32> -> vector<1x64xf32>
    %259 = arith.truncf %258 : vector<1x64xf32> to vector<1x64xbf16>
    %c2_242 = arith.constant 2 : index
    %c0_243 = arith.constant 0 : index
    %c0_244 = arith.constant 0 : index
    %260 = vector.load %arg12[%c2_242, %c0_243, %c0_244] : memref<9x64x128xbf16, #tpu.memory_space<vmem>>, vector<1x64x128xbf16>
    %261 = vector.shape_cast %260 : vector<1x64x128xbf16> to vector<64x128xbf16>
    %cst_245 = arith.constant dense<0.000000e+00> : vector<1x128xf32>
    %262 = tpu.matmul %259, %261, %cst_245 {dimension_numbers = #tpu.dot_dimension_numbers<[1], [0], [0], [1], [0, 0, 1, 1], [], []>} : vector<1x64xbf16>, vector<64x128xbf16>, vector<1x128xf32> -> vector<1x128xf32>
    %263 = arith.addf %255, %262 : vector<1x128xf32>
    %c3_246 = arith.constant 3 : index
    %c0_247 = arith.constant 0 : index
    %c0_248 = arith.constant 0 : index
    %264 = vector.load %arg11[%c3_246, %c0_247, %c0_248] : memref<9x1x4xbf16, #tpu.memory_space<vmem>>, vector<1x1x4xbf16>
    %265 = vector.shape_cast %264 : vector<1x1x4xbf16> to vector<1x4xbf16>
    %cst_249 = arith.constant dense<0.000000e+00> : vector<1x64xf32>
    %266 = tpu.matmul %265, %238, %cst_249 {dimension_numbers = #tpu.dot_dimension_numbers<[1], [0], [0], [1], [0, 0, 1, 1], [], []>} : vector<1x4xbf16>, vector<4x64xbf16>, vector<1x64xf32> -> vector<1x64xf32>
    %267 = arith.truncf %266 : vector<1x64xf32> to vector<1x64xbf16>
    %c3_250 = arith.constant 3 : index
    %c0_251 = arith.constant 0 : index
    %c0_252 = arith.constant 0 : index
    %268 = vector.load %arg12[%c3_250, %c0_251, %c0_252] : memref<9x64x128xbf16, #tpu.memory_space<vmem>>, vector<1x64x128xbf16>
    %269 = vector.shape_cast %268 : vector<1x64x128xbf16> to vector<64x128xbf16>
    %cst_253 = arith.constant dense<0.000000e+00> : vector<1x128xf32>
    %270 = tpu.matmul %267, %269, %cst_253 {dimension_numbers = #tpu.dot_dimension_numbers<[1], [0], [0], [1], [0, 0, 1, 1], [], []>} : vector<1x64xbf16>, vector<64x128xbf16>, vector<1x128xf32> -> vector<1x128xf32>
    %271 = arith.addf %263, %270 : vector<1x128xf32>
    %c4_254 = arith.constant 4 : index
    %c0_255 = arith.constant 0 : index
    %c0_256 = arith.constant 0 : index
    %272 = vector.load %arg11[%c4_254, %c0_255, %c0_256] : memref<9x1x4xbf16, #tpu.memory_space<vmem>>, vector<1x1x4xbf16>
    %273 = vector.shape_cast %272 : vector<1x1x4xbf16> to vector<1x4xbf16>
    %cst_257 = arith.constant dense<0.000000e+00> : vector<1x64xf32>
    %274 = tpu.matmul %273, %238, %cst_257 {dimension_numbers = #tpu.dot_dimension_numbers<[1], [0], [0], [1], [0, 0, 1, 1], [], []>} : vector<1x4xbf16>, vector<4x64xbf16>, vector<1x64xf32> -> vector<1x64xf32>
    %275 = arith.truncf %274 : vector<1x64xf32> to vector<1x64xbf16>
    %c4_258 = arith.constant 4 : index
    %c0_259 = arith.constant 0 : index
    %c0_260 = arith.constant 0 : index
    %276 = vector.load %arg12[%c4_258, %c0_259, %c0_260] : memref<9x64x128xbf16, #tpu.memory_space<vmem>>, vector<1x64x128xbf16>
    %277 = vector.shape_cast %276 : vector<1x64x128xbf16> to vector<64x128xbf16>
    %cst_261 = arith.constant dense<0.000000e+00> : vector<1x128xf32>
    %278 = tpu.matmul %275, %277, %cst_261 {dimension_numbers = #tpu.dot_dimension_numbers<[1], [0], [0], [1], [0, 0, 1, 1], [], []>} : vector<1x64xbf16>, vector<64x128xbf16>, vector<1x128xf32> -> vector<1x128xf32>
    %279 = arith.addf %271, %278 : vector<1x128xf32>
    %c5_262 = arith.constant 5 : index
    %c0_263 = arith.constant 0 : index
    %c0_264 = arith.constant 0 : index
    %280 = vector.load %arg11[%c5_262, %c0_263, %c0_264] : memref<9x1x4xbf16, #tpu.memory_space<vmem>>, vector<1x1x4xbf16>
    %281 = vector.shape_cast %280 : vector<1x1x4xbf16> to vector<1x4xbf16>
    %cst_265 = arith.constant dense<0.000000e+00> : vector<1x64xf32>
    %282 = tpu.matmul %281, %238, %cst_265 {dimension_numbers = #tpu.dot_dimension_numbers<[1], [0], [0], [1], [0, 0, 1, 1], [], []>} : vector<1x4xbf16>, vector<4x64xbf16>, vector<1x64xf32> -> vector<1x64xf32>
    %283 = arith.truncf %282 : vector<1x64xf32> to vector<1x64xbf16>
    %c5_266 = arith.constant 5 : index
    %c0_267 = arith.constant 0 : index
    %c0_268 = arith.constant 0 : index
    %284 = vector.load %arg12[%c5_266, %c0_267, %c0_268] : memref<9x64x128xbf16, #tpu.memory_space<vmem>>, vector<1x64x128xbf16>
    %285 = vector.shape_cast %284 : vector<1x64x128xbf16> to vector<64x128xbf16>
    %cst_269 = arith.constant dense<0.000000e+00> : vector<1x128xf32>
    %286 = tpu.matmul %283, %285, %cst_269 {dimension_numbers = #tpu.dot_dimension_numbers<[1], [0], [0], [1], [0, 0, 1, 1], [], []>} : vector<1x64xbf16>, vector<64x128xbf16>, vector<1x128xf32> -> vector<1x128xf32>
    %287 = arith.addf %279, %286 : vector<1x128xf32>
    %c6_270 = arith.constant 6 : index
    %c0_271 = arith.constant 0 : index
    %c0_272 = arith.constant 0 : index
    %288 = vector.load %arg11[%c6_270, %c0_271, %c0_272] : memref<9x1x4xbf16, #tpu.memory_space<vmem>>, vector<1x1x4xbf16>
    %289 = vector.shape_cast %288 : vector<1x1x4xbf16> to vector<1x4xbf16>
    %cst_273 = arith.constant dense<0.000000e+00> : vector<1x64xf32>
    %290 = tpu.matmul %289, %238, %cst_273 {dimension_numbers = #tpu.dot_dimension_numbers<[1], [0], [0], [1], [0, 0, 1, 1], [], []>} : vector<1x4xbf16>, vector<4x64xbf16>, vector<1x64xf32> -> vector<1x64xf32>
    %291 = arith.truncf %290 : vector<1x64xf32> to vector<1x64xbf16>
    %c6_274 = arith.constant 6 : index
    %c0_275 = arith.constant 0 : index
    %c0_276 = arith.constant 0 : index
    %292 = vector.load %arg12[%c6_274, %c0_275, %c0_276] : memref<9x64x128xbf16, #tpu.memory_space<vmem>>, vector<1x64x128xbf16>
    %293 = vector.shape_cast %292 : vector<1x64x128xbf16> to vector<64x128xbf16>
    %cst_277 = arith.constant dense<0.000000e+00> : vector<1x128xf32>
    %294 = tpu.matmul %291, %293, %cst_277 {dimension_numbers = #tpu.dot_dimension_numbers<[1], [0], [0], [1], [0, 0, 1, 1], [], []>} : vector<1x64xbf16>, vector<64x128xbf16>, vector<1x128xf32> -> vector<1x128xf32>
    %295 = arith.addf %287, %294 : vector<1x128xf32>
    %c7_278 = arith.constant 7 : index
    %c0_279 = arith.constant 0 : index
    %c0_280 = arith.constant 0 : index
    %296 = vector.load %arg11[%c7_278, %c0_279, %c0_280] : memref<9x1x4xbf16, #tpu.memory_space<vmem>>, vector<1x1x4xbf16>
    %297 = vector.shape_cast %296 : vector<1x1x4xbf16> to vector<1x4xbf16>
    %cst_281 = arith.constant dense<0.000000e+00> : vector<1x64xf32>
    %298 = tpu.matmul %297, %238, %cst_281 {dimension_numbers = #tpu.dot_dimension_numbers<[1], [0], [0], [1], [0, 0, 1, 1], [], []>} : vector<1x4xbf16>, vector<4x64xbf16>, vector<1x64xf32> -> vector<1x64xf32>
    %299 = arith.truncf %298 : vector<1x64xf32> to vector<1x64xbf16>
    %c7_282 = arith.constant 7 : index
    %c0_283 = arith.constant 0 : index
    %c0_284 = arith.constant 0 : index
    %300 = vector.load %arg12[%c7_282, %c0_283, %c0_284] : memref<9x64x128xbf16, #tpu.memory_space<vmem>>, vector<1x64x128xbf16>
    %301 = vector.shape_cast %300 : vector<1x64x128xbf16> to vector<64x128xbf16>
    %cst_285 = arith.constant dense<0.000000e+00> : vector<1x128xf32>
    %302 = tpu.matmul %299, %301, %cst_285 {dimension_numbers = #tpu.dot_dimension_numbers<[1], [0], [0], [1], [0, 0, 1, 1], [], []>} : vector<1x64xbf16>, vector<64x128xbf16>, vector<1x128xf32> -> vector<1x128xf32>
    %303 = arith.addf %295, %302 : vector<1x128xf32>
    %c8_286 = arith.constant 8 : index
    %c0_287 = arith.constant 0 : index
    %c0_288 = arith.constant 0 : index
    %304 = vector.load %arg11[%c8_286, %c0_287, %c0_288] : memref<9x1x4xbf16, #tpu.memory_space<vmem>>, vector<1x1x4xbf16>
    %305 = vector.shape_cast %304 : vector<1x1x4xbf16> to vector<1x4xbf16>
    %cst_289 = arith.constant dense<0.000000e+00> : vector<1x64xf32>
    %306 = tpu.matmul %305, %238, %cst_289 {dimension_numbers = #tpu.dot_dimension_numbers<[1], [0], [0], [1], [0, 0, 1, 1], [], []>} : vector<1x4xbf16>, vector<4x64xbf16>, vector<1x64xf32> -> vector<1x64xf32>
    %307 = arith.truncf %306 : vector<1x64xf32> to vector<1x64xbf16>
    %c8_290 = arith.constant 8 : index
    %c0_291 = arith.constant 0 : index
    %c0_292 = arith.constant 0 : index
    %308 = vector.load %arg12[%c8_290, %c0_291, %c0_292] : memref<9x64x128xbf16, #tpu.memory_space<vmem>>, vector<1x64x128xbf16>
    %309 = vector.shape_cast %308 : vector<1x64x128xbf16> to vector<64x128xbf16>
    %cst_293 = arith.constant dense<0.000000e+00> : vector<1x128xf32>
    %310 = tpu.matmul %307, %309, %cst_293 {dimension_numbers = #tpu.dot_dimension_numbers<[1], [0], [0], [1], [0, 0, 1, 1], [], []>} : vector<1x64xbf16>, vector<64x128xbf16>, vector<1x128xf32> -> vector<1x128xf32>
    %311 = arith.addf %303, %310 : vector<1x128xf32>
    %c0_294 = arith.constant 0 : index
    %c0_295 = arith.constant 0 : index
    %312 = vector.load %arg13[%c0_294, %c0_295] : memref<1x128xf32, #tpu.memory_space<vmem>>, vector<1x128xf32>
    %313 = arith.addf %311, %312 : vector<1x128xf32>
    %cst_296 = arith.constant 0.000000e+00 : f32
    %314 = vector.broadcast %cst_296 : f32 to vector<1x128xf32>
    %315 = arith.maximumf %313, %314 : vector<1x128xf32>
    %c0_297 = arith.constant 0 : index
    %c0_298 = arith.constant 0 : index
    %c0_299 = arith.constant 0 : index
    %316 = vector.load %arg14[%c0_297, %c0_298, %c0_299] : memref<1x1x128xf32, #tpu.memory_space<vmem>>, vector<1x1x128xf32>
    %317 = vector.shape_cast %316 : vector<1x1x128xf32> to vector<1x128xf32>
    %318 = vector.shape_cast %315 : vector<1x128xf32> to vector<1x1x128xf32>
    tpu.vector_store %arg14[%c0_297, %c0_298, %c0_299], %318 {strides = array<i32>} : memref<1x1x128xf32, #tpu.memory_space<vmem>>, vector<1x1x128xf32>,
    return
  }
  func.func @transform_0(%arg0: i32) -> (i32, i32, i32) {
    %c0_i32 = arith.constant 0 : i32
    %c0_i32_0 = arith.constant 0 : i32
    %c0_i32_1 = arith.constant 0 : i32
    return %arg0, %c0_i32, %c0_i32_0 : i32, i32, i32
  }
  func.func @transform_1(%arg0: i32) -> (i32, i32, i32) {
    %c0_i32 = arith.constant 0 : i32
    %c0_i32_0 = arith.constant 0 : i32
    %c0_i32_1 = arith.constant 0 : i32
    %c0_i32_2 = arith.constant 0 : i32
    return %c0_i32, %c0_i32_0, %c0_i32_1 : i32, i32, i32
  }
  func.func @transform_2(%arg0: i32) -> (i32, i32, i32) {
    %c0_i32 = arith.constant 0 : i32
    %c0_i32_0 = arith.constant 0 : i32
    %c0_i32_1 = arith.constant 0 : i32
    %c0_i32_2 = arith.constant 0 : i32
    return %c0_i32, %c0_i32_0, %c0_i32_1 : i32, i32, i32
  }
  func.func @transform_3(%arg0: i32) -> (i32, i32) {
    %c0_i32 = arith.constant 0 : i32
    %c0_i32_0 = arith.constant 0 : i32
    %c0_i32_1 = arith.constant 0 : i32
    return %c0_i32, %c0_i32_0 : i32, i32
  }
  func.func @transform_4(%arg0: i32) -> (i32, i32, i32) {
    %c0_i32 = arith.constant 0 : i32
    %c0_i32_0 = arith.constant 0 : i32
    %c0_i32_1 = arith.constant 0 : i32
    %c0_i32_2 = arith.constant 0 : i32
    return %c0_i32, %c0_i32_0, %c0_i32_1 : i32, i32, i32
  }
  func.func @transform_5(%arg0: i32) -> (i32, i32, i32) {
    %c0_i32 = arith.constant 0 : i32
    %c0_i32_0 = arith.constant 0 : i32
    %c0_i32_1 = arith.constant 0 : i32
    %c0_i32_2 = arith.constant 0 : i32
    return %c0_i32, %c0_i32_0, %c0_i32_1 : i32, i32, i32
  }
  func.func @transform_6(%arg0: i32) -> (i32, i32) {
    %c0_i32 = arith.constant 0 : i32
    %c0_i32_0 = arith.constant 0 : i32
    %c0_i32_1 = arith.constant 0 : i32
    return %c0_i32, %c0_i32_0 : i32, i32
  }
  func.func @transform_7(%arg0: i32) -> (i32, i32, i32) {
    %c0_i32 = arith.constant 0 : i32
    %c0_i32_0 = arith.constant 0 : i32
    %c0_i32_1 = arith.constant 0 : i32
    %c0_i32_2 = arith.constant 0 : i32
    return %c0_i32, %c0_i32_0, %c0_i32_1 : i32, i32, i32
  }
  func.func @transform_8(%arg0: i32) -> (i32, i32, i32) {
    %c0_i32 = arith.constant 0 : i32
    %c0_i32_0 = arith.constant 0 : i32
    %c0_i32_1 = arith.constant 0 : i32
    %c0_i32_2 = arith.constant 0 : i32
    return %c0_i32, %c0_i32_0, %c0_i32_1 : i32, i32, i32
  }
  func.func @transform_9(%arg0: i32) -> (i32, i32) {
    %c0_i32 = arith.constant 0 : i32
    %c0_i32_0 = arith.constant 0 : i32
    %c0_i32_1 = arith.constant 0 : i32
    return %c0_i32, %c0_i32_0 : i32, i32
  }
  func.func @transform_10(%arg0: i32) -> (i32, i32, i32) {
    %c0_i32 = arith.constant 0 : i32
    %c0_i32_0 = arith.constant 0 : i32
    %c0_i32_1 = arith.constant 0 : i32
    %c0_i32_2 = arith.constant 0 : i32
    return %c0_i32, %c0_i32_0, %c0_i32_1 : i32, i32, i32
  }
  func.func @transform_11(%arg0: i32) -> (i32, i32, i32) {
    %c0_i32 = arith.constant 0 : i32
    %c0_i32_0 = arith.constant 0 : i32
    %c0_i32_1 = arith.constant 0 : i32
    %c0_i32_2 = arith.constant 0 : i32
    return %c0_i32, %c0_i32_0, %c0_i32_1 : i32, i32, i32
  }
  func.func @transform_12(%arg0: i32) -> (i32, i32) {
    %c0_i32 = arith.constant 0 : i32
    %c0_i32_0 = arith.constant 0 : i32
    %c0_i32_1 = arith.constant 0 : i32
    return %c0_i32, %c0_i32_0 : i32, i32
  }
  func.func @transform_13(%arg0: i32) -> (i32, i32, i32) {
    %c0_i32 = arith.constant 0 : i32
    %c0_i32_0 = arith.constant 0 : i32
    %c0_i32_1 = arith.constant 0 : i32
    return %arg0, %c0_i32, %c0_i32_0 : i32, i32, i32
  }
}

</mosaic_0001>

<llo_original>
// kernel: downsample_net_forward.1
$region0: #{downsample_net_forward.1}
  #allocation0 [shape = 'u32[]', space=smem, size = 0x4, offset = 0x4, fixed_abs, tag = 'smem constant byte address 0x4 - core index']
  #allocation1 [shape = 'u32[144,128]{1,0:T(1,128)}', space=vmem, size = 0x12000, scoped, tag = 'internal scratch']
  %s0 = inlined_call_operand.vmem [shape: bf16[2,256,3], index: 0, kind: input, shape index: {}]
  %s1 = inlined_call_operand.vmem [shape: bf16[9,64,256], index: 1, kind: input, shape index: {}]
  %s2 = inlined_call_operand.vmem [shape: bf16[9,3,16], index: 2, kind: input, shape index: {}]
  %s3 = inlined_call_operand.vmem [shape: f32[1,16], index: 3, kind: input, shape index: {}]
  %s4 = inlined_call_operand.vmem [shape: bf16[9,16,64], index: 4, kind: input, shape index: {}]
  %s5 = inlined_call_operand.vmem [shape: bf16[9,16,32], index: 5, kind: input, shape index: {}]
  %s6 = inlined_call_operand.vmem [shape: f32[1,32], index: 6, kind: input, shape index: {}]
  %s7 = inlined_call_operand.vmem [shape: bf16[9,4,16], index: 7, kind: input, shape index: {}]
  %s8 = inlined_call_operand.vmem [shape: bf16[9,32,64], index: 8, kind: input, shape index: {}]
  %s9 = inlined_call_operand.vmem [shape: f32[1,64], index: 9, kind: input, shape index: {}]
  %s10 = inlined_call_operand.vmem [shape: bf16[9,1,4], index: 10, kind: input, shape index: {}]
  %s11 = inlined_call_operand.vmem [shape: bf16[9,64,128], index: 11, kind: input, shape index: {}]
  %s12 = inlined_call_operand.vmem [shape: f32[1,128], index: 12, kind: input, shape index: {}]
  %s13 = inlined_call_operand.hbm [shape: f32[2,1,128], index: 13, kind: output, shape index: {}]
  %s14 = sld [smem:[#allocation0]]
  $region85: #{downsample_net_forward.1} parent=0
    _
  %s16 = ssub.s32 1, %s14
  %s17 = scalar_select 0, %s16, %s14
  $region1: #{downsample_net_forward.1} parent=0
    #allocation2 [shape = 'u8[1024]{0}', space=vmem, size = 0x400, scoped, tag = 'output window, operand 0']
    #allocation3 [shape = 's32[2]{0}', space=sflag, size = 0x8, scoped, tag = 'scoped memory for downsample_net_forward.1']
    %18 = vsyncpa [#allocation3], 0
    %s19 = scalar_lea.sflag [#allocation3], 1
    %20 = vsyncpa %s19, 0
    loop: start=0, step=1, limit=4
    $region2: #{downsample_net_forward.1} parent=1 // loop_pre_header
      _
    $region3: #{downsample_net_forward.1} parent=1 // loop_header
      %s22 = sphi 0, %s26
      %p23 = scmp.ge.s32.totalorder %s22, 4
      %s32 = sphi 0, %s34
      %s35 = sphi 0, %s32
      %s36 = sphi 0, %s35
      %s52 = sphi 0, %s36
      %s56 = sphi 0, %s56
      %s58 = sphi 0, %s56
      %s59 = sphi 0, %s58
      %s73 = sphi 0, %s59
      %s77 = sphi 0, %s77
      %s79 = sphi 0, %s77
      %s80 = sphi 0, %s79
      %s94 = sphi 0, %s80
      %s98 = sphi 0, %s98
      %s100 = sphi 0, %s98
      %s101 = sphi 0, %s100
      %s115 = sphi 0, %s101
      %s119 = sphi 0, %s119
      %s121 = sphi 0, %s119
      %s122 = sphi 0, %s121
      %s136 = sphi 0, %s122
      %s140 = sphi 0, %s140
      %s142 = sphi 0, %s140
      %s143 = sphi 0, %s142
      %s157 = sphi 0, %s143
      %s161 = sphi 0, %s161
      %s163 = sphi 0, %s161
      %s164 = sphi 0, %s163
      %s178 = sphi 0, %s164
      %s182 = sphi 0, %s182
      %s184 = sphi 0, %s182
      %s185 = sphi 0, %s184
      %s199 = sphi 0, %s185
      %s203 = sphi 0, %s203
      %s205 = sphi 0, %s203
      %s206 = sphi 0, %s205
      %s220 = sphi 0, %s206
      %s224 = sphi 0, %s224
      %s226 = sphi 0, %s224
      %s227 = sphi 0, %s226
      %s241 = sphi 0, %s227
      %s245 = sphi 0, %s245
      %s247 = sphi 0, %s245
      %s248 = sphi 0, %s247
      %s262 = sphi 0, %s248
      %s266 = sphi 0, %s266
      %s268 = sphi 0, %s266
      %s269 = sphi 0, %s268
      %s283 = sphi 0, %s269
      %s287 = sphi 0, %s287
      %s289 = sphi 0, %s287
      %s290 = sphi 0, %s289
      %s304 = sphi 0, %s290
      %s310 = sphi 0, %s312
      %s313 = sphi 0, %s310
      %s314 = sphi 0, %s313
      %s330 = sphi 0, %s314
    $region4: #{downsample_net_forward.1} parent=1 // loop_header_branch
      %25 = sbr.rel (%p23) target = $region8
    $region5: #{downsample_net_forward.1} parent=1 // loop_body
      %s27 = ssub.s32 %s22, 1
      %s28 = ssub.s32 %s22, 2
      %s29 = sadd.s32 %s22, 1
      %s30 = ssub.s32 %s22, %s29
      %p31 = scmp.eq.s32.totalorder %s30, 0
      %s33 = sadd.s32 %s32, 1
      %s34 = scalar_select %p31, %s32, %s33
      %p37 = pneg %p31
      %p38 = scmp.eq.s32.totalorder %s22, 1
      %p39 = por %p37, %p38
      %p40 = scmp.ne.s32.totalorder %s32, %s35
      %p41 = scmp.eq.s32.totalorder %s22, 0
      %p42 = por %p40, %p41
      %p43 = scmp.ne.s32.totalorder %s32, %s35
      %p44 = scmp.eq.s32.totalorder %s27, 1
      %p45 = por %p43, %p44
      %p46 = scmp.ne.s32.totalorder %s35, %s36
      %p47 = scmp.eq.s32.totalorder %s27, 0
      %p48 = por %p46, %p47
      %p49 = scmp.ne.s32.totalorder %s35, %s36
      %p50 = scmp.eq.s32.totalorder %s28, 1
      %p51 = por %p49, %p50
      %p53 = scmp.ne.s32.totalorder %s36, %s52
      %p54 = scmp.eq.s32.totalorder %s28, 0
      %p55 = por %p53, %p54
      %s57 = sadd.s32 %s56, 1
      %p60 = scmp.eq.s32.totalorder %s22, 1
      %p61 = scmp.ne.s32.totalorder %s56, %s58
      %p62 = scmp.eq.s32.totalorder %s22, 0
      %p63 = por %p61, %p62
      %p64 = scmp.ne.s32.totalorder %s56, %s58
      %p65 = scmp.eq.s32.totalorder %s27, 1
      %p66 = por %p64, %p65
      %p67 = scmp.ne.s32.totalorder %s58, %s59
      %p68 = scmp.eq.s32.totalorder %s27, 0
      %p69 = por %p67, %p68
      %p70 = scmp.ne.s32.totalorder %s58, %s59
      %p71 = scmp.eq.s32.totalorder %s28, 1
      %p72 = por %p70, %p71
      %p74 = scmp.ne.s32.totalorder %s59, %s73
      %p75 = scmp.eq.s32.totalorder %s28, 0
      %p76 = por %p74, %p75
      %s78 = sadd.s32 %s77, 1
      %p81 = scmp.eq.s32.totalorder %s22, 1
      %p82 = scmp.ne.s32.totalorder %s77, %s79
      %p83 = scmp.eq.s32.totalorder %s22, 0
      %p84 = por %p82, %p83
      %p85 = scmp.ne.s32.totalorder %s77, %s79
      %p86 = scmp.eq.s32.totalorder %s27, 1
      %p87 = por %p85, %p86
      %p88 = scmp.ne.s32.totalorder %s79, %s80
      %p89 = scmp.eq.s32.totalorder %s27, 0
      %p90 = por %p88, %p89
      %p91 = scmp.ne.s32.totalorder %s79, %s80
      %p92 = scmp.eq.s32.totalorder %s28, 1
      %p93 = por %p91, %p92
      %p95 = scmp.ne.s32.totalorder %s80, %s94
      %p96 = scmp.eq.s32.totalorder %s28, 0
      %p97 = por %p95, %p96
      %s99 = sadd.s32 %s98, 1
      %p102 = scmp.eq.s32.totalorder %s22, 1
      %p103 = scmp.ne.s32.totalorder %s98, %s100
      %p104 = scmp.eq.s32.totalorder %s22, 0
      %p105 = por %p103, %p104
      %p106 = scmp.ne.s32.totalorder %s98, %s100
      %p107 = scmp.eq.s32.totalorder %s27, 1
      %p108 = por %p106, %p107
      %p109 = scmp.ne.s32.totalorder %s100, %s101
      %p110 = scmp.eq.s32.totalorder %s27, 0
      %p111 = por %p109, %p110
      %p112 = scmp.ne.s32.totalorder %s100, %s101
      %p113 = scmp.eq.s32.totalorder %s28, 1
      %p114 = por %p112, %p113
      %p116 = scmp.ne.s32.totalorder %s101, %s115
      %p117 = scmp.eq.s32.totalorder %s28, 0
      %p118 = por %p116, %p117
      %s120 = sadd.s32 %s119, 1
      %p123 = scmp.eq.s32.totalorder %s22, 1
      %p124 = scmp.ne.s32.totalorder %s119, %s121
      %p125 = scmp.eq.s32.totalorder %s22, 0
      %p126 = por %p124, %p125
      %p127 = scmp.ne.s32.totalorder %s119, %s121
      %p128 = scmp.eq.s32.totalorder %s27, 1
      %p129 = por %p127, %p128
      %p130 = scmp.ne.s32.totalorder %s121, %s122
      %p131 = scmp.eq.s32.totalorder %s27, 0
      %p132 = por %p130, %p131
      %p133 = scmp.ne.s32.totalorder %s121, %s122
      %p134 = scmp.eq.s32.totalorder %s28, 1
      %p135 = por %p133, %p134
      %p137 = scmp.ne.s32.totalorder %s122, %s136
      %p138 = scmp.eq.s32.totalorder %s28, 0
      %p139 = por %p137, %p138
      %s141 = sadd.s32 %s140, 1
      %p144 = scmp.eq.s32.totalorder %s22, 1
      %p145 = scmp.ne.s32.totalorder %s140, %s142
      %p146 = scmp.eq.s32.totalorder %s22, 0
      %p147 = por %p145, %p146
      %p148 = scmp.ne.s32.totalorder %s140, %s142
      %p149 = scmp.eq.s32.totalorder %s27, 1
      %p150 = por %p148, %p149
      %p151 = scmp.ne.s32.totalorder %s142, %s143
      %p152 = scmp.eq.s32.totalorder %s27, 0
      %p153 = por %p151, %p152
      %p154 = scmp.ne.s32.totalorder %s142, %s143
      %p155 = scmp.eq.s32.totalorder %s28, 1
      %p156 = por %p154, %p155
      %p158 = scmp.ne.s32.totalorder %s143, %s157
      %p159 = scmp.eq.s32.totalorder %s28, 0
      %p160 = por %p158, %p159
      %s162 = sadd.s32 %s161, 1
      %p165 = scmp.eq.s32.totalorder %s22, 1
      %p166 = scmp.ne.s32.totalorder %s161, %s163
      %p167 = scmp.eq.s32.totalorder %s22, 0
      %p168 = por %p166, %p167
      %p169 = scmp.ne.s32.totalorder %s161, %s163
      %p170 = scmp.eq.s32.totalorder %s27, 1
      %p171 = por %p169, %p170
      %p172 = scmp.ne.s32.totalorder %s163, %s164
      %p173 = scmp.eq.s32.totalorder %s27, 0
      %p174 = por %p172, %p173
      %p175 = scmp.ne.s32.totalorder %s163, %s164
      %p176 = scmp.eq.s32.totalorder %s28, 1
      %p177 = por %p175, %p176
      %p179 = scmp.ne.s32.totalorder %s164, %s178
      %p180 = scmp.eq.s32.totalorder %s28, 0
      %p181 = por %p179, %p180
      %s183 = sadd.s32 %s182, 1
      %p186 = scmp.eq.s32.totalorder %s22, 1
      %p187 = scmp.ne.s32.totalorder %s182, %s184
      %p188 = scmp.eq.s32.totalorder %s22, 0
      %p189 = por %p187, %p188
      %p190 = scmp.ne.s32.totalorder %s182, %s184
      %p191 = scmp.eq.s32.totalorder %s27, 1
      %p192 = por %p190, %p191
      %p193 = scmp.ne.s32.totalorder %s184, %s185
      %p194 = scmp.eq.s32.totalorder %s27, 0
      %p195 = por %p193, %p194
      %p196 = scmp.ne.s32.totalorder %s184, %s185
      %p197 = scmp.eq.s32.totalorder %s28, 1
      %p198 = por %p196, %p197
      %p200 = scmp.ne.s32.totalorder %s185, %s199
      %p201 = scmp.eq.s32.totalorder %s28, 0
      %p202 = por %p200, %p201
      %s204 = sadd.s32 %s203, 1
      %p207 = scmp.eq.s32.totalorder %s22, 1
      %p208 = scmp.ne.s32.totalorder %s203, %s205
      %p209 = scmp.eq.s32.totalorder %s22, 0
      %p210 = por %p208, %p209
      %p211 = scmp.ne.s32.totalorder %s203, %s205
      %p212 = scmp.eq.s32.totalorder %s27, 1
      %p213 = por %p211, %p212
      %p214 = scmp.ne.s32.totalorder %s205, %s206
      %p215 = scmp.eq.s32.totalorder %s27, 0
      %p216 = por %p214, %p215
      %p217 = scmp.ne.s32.totalorder %s205, %s206
      %p218 = scmp.eq.s32.totalorder %s28, 1
      %p219 = por %p217, %p218
      %p221 = scmp.ne.s32.totalorder %s206, %s220
      %p222 = scmp.eq.s32.totalorder %s28, 0
      %p223 = por %p221, %p222
      %s225 = sadd.s32 %s224, 1
      %p228 = scmp.eq.s32.totalorder %s22, 1
      %p229 = scmp.ne.s32.totalorder %s224, %s226
      %p230 = scmp.eq.s32.totalorder %s22, 0
      %p231 = por %p229, %p230
      %p232 = scmp.ne.s32.totalorder %s224, %s226
      %p233 = scmp.eq.s32.totalorder %s27, 1
      %p234 = por %p232, %p233
      %p235 = scmp.ne.s32.totalorder %s226, %s227
      %p236 = scmp.eq.s32.totalorder %s27, 0
      %p237 = por %p235, %p236
      %p238 = scmp.ne.s32.totalorder %s226, %s227
      %p239 = scmp.eq.s32.totalorder %s28, 1
      %p240 = por %p238, %p239
      %p242 = scmp.ne.s32.totalorder %s227, %s241
      %p243 = scmp.eq.s32.totalorder %s28, 0
      %p244 = por %p242, %p243
      %s246 = sadd.s32 %s245, 1
      %p249 = scmp.eq.s32.totalorder %s22, 1
      %p250 = scmp.ne.s32.totalorder %s245, %s247
      %p251 = scmp.eq.s32.totalorder %s22, 0
      %p252 = por %p250, %p251
      %p253 = scmp.ne.s32.totalorder %s245, %s247
      %p254 = scmp.eq.s32.totalorder %s27, 1
      %p255 = por %p253, %p254
      %p256 = scmp.ne.s32.totalorder %s247, %s248
      %p257 = scmp.eq.s32.totalorder %s27, 0
      %p258 = por %p256, %p257
      %p259 = scmp.ne.s32.totalorder %s247, %s248
      %p260 = scmp.eq.s32.totalorder %s28, 1
      %p261 = por %p259, %p260
      %p263 = scmp.ne.s32.totalorder %s248, %s262
      %p264 = scmp.eq.s32.totalorder %s28, 0
      %p265 = por %p263, %p264
      %s267 = sadd.s32 %s266, 1
      %p270 = scmp.eq.s32.totalorder %s22, 1
      %p271 = scmp.ne.s32.totalorder %s266, %s268
      %p272 = scmp.eq.s32.totalorder %s22, 0
      %p273 = por %p271, %p272
      %p274 = scmp.ne.s32.totalorder %s266, %s268
      %p275 = scmp.eq.s32.totalorder %s27, 1
      %p276 = por %p274, %p275
      %p277 = scmp.ne.s32.totalorder %s268, %s269
      %p278 = scmp.eq.s32.totalorder %s27, 0
      %p279 = por %p277, %p278
      %p280 = scmp.ne.s32.totalorder %s268, %s269
      %p281 = scmp.eq.s32.totalorder %s28, 1
      %p282 = por %p280, %p281
      %p284 = scmp.ne.s32.totalorder %s269, %s283
      %p285 = scmp.eq.s32.totalorder %s28, 0
      %p286 = por %p284, %p285
      %s288 = sadd.s32 %s287, 1
      %p291 = scmp.eq.s32.totalorder %s22, 1
      %p292 = scmp.ne.s32.totalorder %s287, %s289
      %p293 = scmp.eq.s32.totalorder %s22, 0
      %p294 = por %p292, %p293
      %p295 = scmp.ne.s32.totalorder %s287, %s289
      %p296 = scmp.eq.s32.totalorder %s27, 1
      %p297 = por %p295, %p296
      %p298 = scmp.ne.s32.totalorder %s289, %s290
      %p299 = scmp.eq.s32.totalorder %s27, 0
      %p300 = por %p298, %p299
      %p301 = scmp.ne.s32.totalorder %s289, %s290
      %p302 = scmp.eq.s32.totalorder %s28, 1
      %p303 = por %p301, %p302
      %p305 = scmp.ne.s32.totalorder %s290, %s304
      %p306 = scmp.eq.s32.totalorder %s28, 0
      %p307 = por %p305, %p306
      %s308 = ssub.s32 %s22, %s29
      %p309 = scmp.eq.s32.totalorder %s308, 0
      %s311 = sadd.s32 %s310, 1
      %s312 = scalar_select %p309, %s310, %s311
      %p315 = pneg %p309
      %p316 = scmp.eq.s32.totalorder %s22, 1
      %p317 = por %p315, %p316
      %p318 = scmp.ne.s32.totalorder %s310, %s313
      %p319 = scmp.eq.s32.totalorder %s22, 0
      %p320 = por %p318, %p319
      %p321 = scmp.ne.s32.totalorder %s310, %s313
      %p322 = scmp.eq.s32.totalorder %s27, 1
      %p323 = por %p321, %p322
      %p324 = scmp.ne.s32.totalorder %s313, %s314
      %p325 = scmp.eq.s32.totalorder %s27, 0
      %p326 = por %p324, %p325
      %p327 = scmp.ne.s32.totalorder %s313, %s314
      %p328 = scmp.eq.s32.totalorder %s28, 1
      %p329 = por %p327, %p328
      %p331 = scmp.ne.s32.totalorder %s314, %s330
      %p332 = scmp.eq.s32.totalorder %s28, 0
      %p333 = por %p331, %p332
      %p334 = scmp.le.s32.totalorder 1, %s22
      %p335 = scmp.lt.s32.totalorder %s22, 3
      %p336 = pnand %p334, %p335
      %p337 = pneg %p336
      // Predicated region
      $region9: #{downsample_net_forward.1} parent=5 // pred_check
        _
      $region10: #{downsample_net_forward.1} parent=5 // pred_check_branch
        %339 = sbr.rel (%p336) target = $region12
      $region11: #{downsample_net_forward.1} parent=5 // pred_region
        %s340 = ssub.s32 %s22, 1
        // Predicated region
        $region13: #{downsample_net_forward.1} parent=11 // pred_check
          %p341 = pneg %p69
        $region14: #{downsample_net_forward.1} parent=11 // pred_check_branch
          %343 = sbr.rel (%p341) target = $region16
        $region15: #{downsample_net_forward.1} parent=11 // pred_region
          _
        $region16: #{downsample_net_forward.1} parent=11 // pred_fallthru
          _
        // Predicated region
        $region17: #{downsample_net_forward.1} parent=11 // pred_check
          %p344 = pneg %p90
        $region18: #{downsample_net_forward.1} parent=11 // pred_check_branch
          %346 = sbr.rel (%p344) target = $region20
        $region19: #{downsample_net_forward.1} parent=11 // pred_region
          _
        $region20: #{downsample_net_forward.1} parent=11 // pred_fallthru
          _
        // Predicated region
        $region21: #{downsample_net_forward.1} parent=11 // pred_check
          %p347 = pneg %p111
        $region22: #{downsample_net_forward.1} parent=11 // pred_check_branch
          %349 = sbr.rel (%p347) target = $region24
        $region23: #{downsample_net_forward.1} parent=11 // pred_region
          _
        $region24: #{downsample_net_forward.1} parent=11 // pred_fallthru
          _
        // Predicated region
        $region25: #{downsample_net_forward.1} parent=11 // pred_check
          %p350 = pneg %p132
        $region26: #{downsample_net_forward.1} parent=11 // pred_check_branch
          %352 = sbr.rel (%p350) target = $region28
        $region27: #{downsample_net_forward.1} parent=11 // pred_region
          _
        $region28: #{downsample_net_forward.1} parent=11 // pred_fallthru
          _
        // Predicated region
        $region29: #{downsample_net_forward.1} parent=11 // pred_check
          %p353 = pneg %p153
        $region30: #{downsample_net_forward.1} parent=11 // pred_check_branch
          %355 = sbr.rel (%p353) target = $region32
        $region31: #{downsample_net_forward.1} parent=11 // pred_region
          _
        $region32: #{downsample_net_forward.1} parent=11 // pred_fallthru
          _
        // Predicated region
        $region33: #{downsample_net_forward.1} parent=11 // pred_check
          %p356 = pneg %p174
        $region34: #{downsample_net_forward.1} parent=11 // pred_check_branch
          %358 = sbr.rel (%p356) target = $region36
        $region35: #{downsample_net_forward.1} parent=11 // pred_region
          _
        $region36: #{downsample_net_forward.1} parent=11 // pred_fallthru
          _
        // Predicated region
        $region37: #{downsample_net_forward.1} parent=11 // pred_check
          %p359 = pneg %p195
        $region38: #{downsample_net_forward.1} parent=11 // pred_check_branch
          %361 = sbr.rel (%p359) target = $region40
        $region39: #{downsample_net_forward.1} parent=11 // pred_region
          _
        $region40: #{downsample_net_forward.1} parent=11 // pred_fallthru
          _
        // Predicated region
        $region41: #{downsample_net_forward.1} parent=11 // pred_check
          %p362 = pneg %p216
        $region42: #{downsample_net_forward.1} parent=11 // pred_check_branch
          %364 = sbr.rel (%p362) target = $region44
        $region43: #{downsample_net_forward.1} parent=11 // pred_region
          _
        $region44: #{downsample_net_forward.1} parent=11 // pred_fallthru
          _
        // Predicated region
        $region45: #{downsample_net_forward.1} parent=11 // pred_check
          %p365 = pneg %p237
        $region46: #{downsample_net_forward.1} parent=11 // pred_check_branch
          %367 = sbr.rel (%p365) target = $region48
        $region47: #{downsample_net_forward.1} parent=11 // pred_region
          _
        $region48: #{downsample_net_forward.1} parent=11 // pred_fallthru
          _
        // Predicated region
        $region49: #{downsample_net_forward.1} parent=11 // pred_check
          %p368 = pneg %p258
        $region50: #{downsample_net_forward.1} parent=11 // pred_check_branch
          %370 = sbr.rel (%p368) target = $region52
        $region51: #{downsample_net_forward.1} parent=11 // pred_region
          _
        $region52: #{downsample_net_forward.1} parent=11 // pred_fallthru
          _
        // Predicated region
        $region53: #{downsample_net_forward.1} parent=11 // pred_check
          %p371 = pneg %p279
        $region54: #{downsample_net_forward.1} parent=11 // pred_check_branch
          %373 = sbr.rel (%p371) target = $region56
        $region55: #{downsample_net_forward.1} parent=11 // pred_region
          _
        $region56: #{downsample_net_forward.1} parent=11 // pred_fallthru
          _
        // Predicated region
        $region57: #{downsample_net_forward.1} parent=11 // pred_check
          %p374 = pneg %p300
        $region58: #{downsample_net_forward.1} parent=11 // pred_check_branch
          %376 = sbr.rel (%p374) target = $region60
        $region59: #{downsample_net_forward.1} parent=11 // pred_region
          _
        $region60: #{downsample_net_forward.1} parent=11 // pred_fallthru
          _
      $region12: #{downsample_net_forward.1} parent=5 // pred_fallthru
        _
      %p377 = scmp.lt.s32.totalorder %s22, 2
      // Predicated region
      $region61: #{downsample_net_forward.1} parent=5 // pred_check
        %p378 = pneg %p377
      $region62: #{downsample_net_forward.1} parent=5 // pred_check_branch
        %380 = sbr.rel (%p378) target = $region64
      $region63: #{downsample_net_forward.1} parent=5 // pred_region
        // Predicated region
        $region65: #{downsample_net_forward.1} parent=63 // pred_check
          %p381 = pneg %p42
        $region66: #{downsample_net_forward.1} parent=63 // pred_check_branch
          %383 = sbr.rel (%p381) target = $region68
        $region67: #{downsample_net_forward.1} parent=63 // pred_region
          %p384 = scmp.lt.s32.totalorder %s22, 1
          %s385 = scalar_select %p384, %s22, 1
          %s386 = smul.addr %s385, 32
          %s387 = smul.addr %s386, 4
          %s388 = scalar_lea.vmem %s0, %s387
        $region68: #{downsample_net_forward.1} parent=63 // pred_fallthru
          _
      $region64: #{downsample_net_forward.1} parent=5 // pred_fallthru
        _
      %p389 = scmp.le.s32.totalorder 1, %s22
      %p390 = scmp.lt.s32.totalorder %s22, 3
      %p391 = pnand %p389, %p390
      %p392 = pneg %p391
      // Predicated region
      $region69: #{downsample_net_forward.1} parent=5 // pred_check
        _
      $region70: #{downsample_net_forward.1} parent=5 // pred_check_branch
        %394 = sbr.rel (%p391) target = $region72
      $region71: #{downsample_net_forward.1} parent=5 // pred_region
        %s395 = ssub.s32 %s22, 1
        %p396 = scmp.lt.s32.totalorder %s27, 1
        %s397 = scalar_select %p396, %s27, 1
        %s398 = smul.addr %s397, 32
        %s399 = smul.addr %s398, 4
        %s400 = scalar_lea.vmem %s0, %s399
        %p401 = pneg %p48
        %p402 = pneg %p45
        %p403 = pneg %p69
        %p404 = pneg %p66
        %p405 = pneg %p90
        %p406 = pneg %p87
        %p407 = pneg %p111
        %p408 = pneg %p108
        %p409 = pneg %p132
        %p410 = pneg %p129
        %p411 = pneg %p153
        %p412 = pneg %p150
        %p413 = pneg %p174
        %p414 = pneg %p171
        %p415 = pneg %p195
        %p416 = pneg %p192
        %p417 = pneg %p216
        %p418 = pneg %p213
        %p419 = pneg %p237
        %p420 = pneg %p234
        %p421 = pneg %p258
        %p422 = pneg %p255
        %p423 = pneg %p279
        %p424 = pneg %p276
        %p425 = pneg %p300
        %p426 = pneg %p297
        %p427 = pneg %p326
        %p428 = pneg %p323
        %s429 = sand.u32 %s313, 1
        %s430 = scalar_lea.sflag [#allocation3], %s429
        %s431 = sand.u32 %s313, 1
        %s432 = scalar_lea.vmem [#allocation2], %s431
        %p433 = scmp.lt.s32.totalorder %s27, 1
        %s434 = scalar_select %p433, %s27, 1
        %s435 = smul.addr %s434, 32
        %s436 = smul.addr %s435, 4
        %s437 = scalar_lea.vmem %s0, %s436
        %v439 = vld [vmem:[%s437] sm:$0xf]
        %v440 = vld [vmem:[%s437 + $0x4] sm:$0xf]
        %v441 = vld [vmem:[%s437 + $0x8] sm:$0xf]
        %v442 = vld [vmem:[%s437 + $0xc] sm:$0xf]
        %v443 = vld [vmem:[%s437 + $0x10] sm:$0xf]
        %v444 = vld [vmem:[%s437 + $0x14] sm:$0xf]
        %v445 = vld [vmem:[%s437 + $0x18] sm:$0xf]
        %v446 = vld [vmem:[%s437 + $0x1c] sm:$0xf]
        %v447 = vld [vmem:[%s437 + $0x20] sm:$0xf]
        %v448 = vld [vmem:[%s437 + $0x24] sm:$0xf]
        %v449 = vld [vmem:[%s437 + $0x28] sm:$0xf]
        %v450 = vld [vmem:[%s437 + $0x2c] sm:$0xf]
        %v451 = vld [vmem:[%s437 + $0x30] sm:$0xf]
        %v452 = vld [vmem:[%s437 + $0x34] sm:$0xf]
        %v453 = vld [vmem:[%s437 + $0x38] sm:$0xf]
        %v454 = vld [vmem:[%s437 + $0x3c] sm:$0xf]
        %v455 = vld [vmem:[%s437 + $0x40] sm:$0xf]
        %v456 = vld [vmem:[%s437 + $0x44] sm:$0xf]
        %v457 = vld [vmem:[%s437 + $0x48] sm:$0xf]
        %v458 = vld [vmem:[%s437 + $0x4c] sm:$0xf]
        %v459 = vld [vmem:[%s437 + $0x50] sm:$0xf]
        %v460 = vld [vmem:[%s437 + $0x54] sm:$0xf]
        %v461 = vld [vmem:[%s437 + $0x58] sm:$0xf]
        %v462 = vld [vmem:[%s437 + $0x5c] sm:$0xf]
        %v463 = vld [vmem:[%s437 + $0x60] sm:$0xf]
        %v464 = vld [vmem:[%s437 + $0x64] sm:$0xf]
        %v465 = vld [vmem:[%s437 + $0x68] sm:$0xf]
        %v466 = vld [vmem:[%s437 + $0x6c] sm:$0xf]
        %v467 = vld [vmem:[%s437 + $0x70] sm:$0xf]
        %v468 = vld [vmem:[%s437 + $0x74] sm:$0xf]
        %v469 = vld [vmem:[%s437 + $0x78] sm:$0xf]
        %v470 = vld [vmem:[%s437 + $0x7c] sm:$0xf]
        %v471 = vld [vmem:[%s1] sm:$0xff]
        %v472 = vld [vmem:[%s1 + $0x8] sm:$0xff]
        %v473 = vld [vmem:[%s1 + $0x10] sm:$0xff]
        %v474 = vld [vmem:[%s1 + $0x18] sm:$0xff]
        %v475 = vld [vmem:[%s1 + $0x20] sm:$0xff]
        %v476 = vld [vmem:[%s1 + $0x28] sm:$0xff]
        %v477 = vld [vmem:[%s1 + $0x30] sm:$0xff]
        %v478 = vld [vmem:[%s1 + $0x38] sm:$0xff]
        %v487 = vunpack.c.l.b16 %v471
        %v488 = vunpack.c.h.b16 %v471
        %v489 = vunpack.c.l.b16 %v472
        %v490 = vunpack.c.h.b16 %v472
        %v491 = vunpack.c.l.b16 %v473
        %v492 = vunpack.c.h.b16 %v473
        %v493 = vunpack.c.l.b16 %v474
        %v494 = vunpack.c.h.b16 %v474
        %v495 = vunpack.c.l.b16 %v475
        %v496 = vunpack.c.h.b16 %v475
        %v497 = vunpack.c.l.b16 %v476
        %v498 = vunpack.c.h.b16 %v476
        %v499 = vunpack.c.l.b16 %v477
        %v500 = vunpack.c.h.b16 %v477
        %v501 = vunpack.c.l.b16 %v478
        %v502 = vunpack.c.h.b16 %v478
        %v503 = vpack.c.b16 %v489, %v487
        %v504 = vpack.c.b16 %v490, %v488
        %v505 = vpack.c.b16 %v493, %v491
        %v506 = vpack.c.b16 %v494, %v492
        %v507 = vpack.c.b16 %v497, %v495
        %v508 = vpack.c.b16 %v498, %v496
        %v509 = vpack.c.b16 %v501, %v499
        %v510 = vpack.c.b16 %v502, %v500
        %v551 = vunpack.c.l.b16 %v439
        %v552 = vunpack.c.l.b16 %v440
        %v553 = vunpack.c.l.b16 %v441
        %v554 = vunpack.c.l.b16 %v442
        %v555 = vunpack.c.l.b16 %v443
        %v556 = vunpack.c.l.b16 %v444
        %v557 = vunpack.c.l.b16 %v445
        %v558 = vunpack.c.l.b16 %v446
        %v559 = vunpack.c.l.b16 %v447
        %v560 = vunpack.c.l.b16 %v448
        %v561 = vunpack.c.l.b16 %v449
        %v562 = vunpack.c.l.b16 %v450
        %v563 = vunpack.c.l.b16 %v451
        %v564 = vunpack.c.l.b16 %v452
        %v565 = vunpack.c.l.b16 %v453
        %v566 = vunpack.c.l.b16 %v454
        %v567 = vunpack.c.l.b16 %v455
        %v568 = vunpack.c.l.b16 %v456
        %v569 = vunpack.c.l.b16 %v457
        %v570 = vunpack.c.l.b16 %v458
        %v571 = vunpack.c.l.b16 %v459
        %v572 = vunpack.c.l.b16 %v460
        %v573 = vunpack.c.l.b16 %v461
        %v574 = vunpack.c.l.b16 %v462
        %v575 = vunpack.c.l.b16 %v463
        %v576 = vunpack.c.l.b16 %v464
        %v577 = vunpack.c.l.b16 %v465
        %v578 = vunpack.c.l.b16 %v466
        %v579 = vunpack.c.l.b16 %v467
        %v580 = vunpack.c.l.b16 %v468
        %v581 = vunpack.c.l.b16 %v469
        %v582 = vunpack.c.l.b16 %v470
        %v583 = vpack.c.b16 %v552, %v551
        %v584 = vpack.c.b16 %v554, %v553
        %v585 = vpack.c.b16 %v556, %v555
        %v586 = vpack.c.b16 %v558, %v557
        %v587 = vpack.c.b16 %v560, %v559
        %v588 = vpack.c.b16 %v562, %v561
        %v589 = vpack.c.b16 %v564, %v563
        %v590 = vpack.c.b16 %v566, %v565
        %v591 = vpack.c.b16 %v568, %v567
        %v592 = vpack.c.b16 %v570, %v569
        %v593 = vpack.c.b16 %v572, %v571
        %v594 = vpack.c.b16 %v574, %v573
        %v595 = vpack.c.b16 %v576, %v575
        %v596 = vpack.c.b16 %v578, %v577
        %v597 = vpack.c.b16 %v580, %v579
        %v598 = vpack.c.b16 %v582, %v581
        %615 = vmatprep.subr.bf16.mxu0 0
        %616 = vmatpush1.bf16.msra.mxu0 %v583
        %617 = vmatprep.subr.bf16.mxu0 0
        %618 = vmatpush1.bf16.msra.mxu0 %v584
        %619 = vmatprep.subr.bf16.mxu0 0
        %620 = vmatpush1.bf16.msra.mxu0 %v585
        %621 = vmatprep.subr.bf16.mxu0 0
        %622 = vmatpush1.bf16.msra.mxu0 %v586
        %623 = vmatprep.subr.bf16.mxu0 0
        %624 = vmatpush1.bf16.msra.mxu0 %v587
        %625 = vmatprep.subr.bf16.mxu0 0
        %626 = vmatpush1.bf16.msra.mxu0 %v588
        %627 = vmatprep.subr.bf16.mxu0 0
        %628 = vmatpush1.bf16.msra.mxu0 %v589
        %629 = vmatprep.subr.bf16.mxu0 0
        %630 = vmatpush1.bf16.msra.mxu0 %v590
        %631 = vmatprep.subr.bf16.mxu0 0
        %632 = vmatpush1.bf16.msra.mxu0 %v591
        %633 = vmatprep.subr.bf16.mxu0 0
        %634 = vmatpush1.bf16.msra.mxu0 %v592
        %635 = vmatprep.subr.bf16.mxu0 0
        %636 = vmatpush1.bf16.msra.mxu0 %v593
        %637 = vmatprep.subr.bf16.mxu0 0
        %638 = vmatpush1.bf16.msra.mxu0 %v594
        %639 = vmatprep.subr.bf16.mxu0 0
        %640 = vmatpush1.bf16.msra.mxu0 %v595
        %641 = vmatprep.subr.bf16.mxu0 0
        %642 = vmatpush1.bf16.msra.mxu0 %v596
        %643 = vmatprep.subr.bf16.mxu0 0
        %644 = vmatpush1.bf16.msra.mxu0 %v597
        %645 = vmatprep.subr.bf16.mxu0 0
        %646 = vmatpush1.bf16.msra.mxu0 %v598
        %647 = vmatprep.mubr.bf16.mxu0 %v504
        %648 = vmatmul.mubr.bf16.gmra.mrb[0].mxu0 %v503
        %v649 = vpop.f32.mrb[0].mxu0
        %v650 = vadd.f32 0.0, %v649
        %v651 = vpop.f32.mrb[0].mxu0
        %v652 = vpop.f32.mrb[0].mxu0
        %v653 = vadd.f32 0.0, %v652
        %v654 = vpop.f32.mrb[0].mxu0
        %655 = vmatprep.mubr.bf16.mxu0 %v506
        %656 = vmatmul.mubr.bf16.gmra.mrb[0].mxu0 %v505
        %v657 = vpop.f32.mrb[0].mxu0
        %v658 = vadd.f32 0.0, %v657
        %v659 = vpop.f32.mrb[0].mxu0
        %v660 = vpop.f32.mrb[0].mxu0
        %v661 = vadd.f32 0.0, %v660
        %v662 = vpop.f32.mrb[0].mxu0
        %663 = vmatprep.mubr.bf16.mxu0 %v508
        %664 = vmatmul.mubr.bf16.gmra.mrb[0].mxu0 %v507
        %v665 = vpop.f32.mrb[0].mxu0
        %v666 = vadd.f32 0.0, %v665
        %v667 = vpop.f32.mrb[0].mxu0
        %v668 = vpop.f32.mrb[0].mxu0
        %v669 = vadd.f32 0.0, %v668
        %v670 = vpop.f32.mrb[0].mxu0
        %671 = vmatprep.mubr.bf16.mxu0 %v510
        %672 = vmatmul.mubr.bf16.gmra.mrb[0].mxu0 %v509
        %v673 = vpop.f32.mrb[0].mxu0
        %v674 = vadd.f32 0.0, %v673
        %v675 = vpop.f32.mrb[0].mxu0
        %v676 = vpop.f32.mrb[0].mxu0
        %v677 = vadd.f32 0.0, %v676
        %v678 = vpop.f32.mrb[0].mxu0
        %679 = vdwg.mxu0
        %v680 = vpack.c.bf16 %v653, %v650
        %v681 = vpack.c.bf16 %v661, %v658
        %v682 = vpack.c.bf16 %v669, %v666
        %v683 = vpack.c.bf16 %v677, %v674
        %v684 = vld [vmem:[%s2] sm:$0x3]
        %s685 = scalar_lea.vmem %s1, 64
        %v686 = vld [vmem:[%s685] sm:$0xff]
        %v687 = vld [vmem:[%s685 + $0x8] sm:$0xff]
        %v688 = vld [vmem:[%s685 + $0x10] sm:$0xff]
        %v689 = vld [vmem:[%s685 + $0x18] sm:$0xff]
        %v690 = vld [vmem:[%s685 + $0x20] sm:$0xff]
        %v691 = vld [vmem:[%s685 + $0x28] sm:$0xff]
        %v692 = vld [vmem:[%s685 + $0x30] sm:$0xff]
        %v693 = vld [vmem:[%s685 + $0x38] sm:$0xff]
        %v702 = vunpack.c.l.b16 %v686
        %v703 = vunpack.c.h.b16 %v686
        %v704 = vunpack.c.l.b16 %v687
        %v705 = vunpack.c.h.b16 %v687
        %v706 = vunpack.c.l.b16 %v688
        %v707 = vunpack.c.h.b16 %v688
        %v708 = vunpack.c.l.b16 %v689
        %v709 = vunpack.c.h.b16 %v689
        %v710 = vunpack.c.l.b16 %v690
        %v711 = vunpack.c.h.b16 %v690
        %v712 = vunpack.c.l.b16 %v691
        %v713 = vunpack.c.h.b16 %v691
        %v714 = vunpack.c.l.b16 %v692
        %v715 = vunpack.c.h.b16 %v692
        %v716 = vunpack.c.l.b16 %v693
        %v717 = vunpack.c.h.b16 %v693
        %v718 = vpack.c.b16 %v704, %v702
        %v719 = vpack.c.b16 %v705, %v703
        %v720 = vpack.c.b16 %v708, %v706
        %v721 = vpack.c.b16 %v709, %v707
        %v722 = vpack.c.b16 %v712, %v710
        %v723 = vpack.c.b16 %v713, %v711
        %v724 = vpack.c.b16 %v716, %v714
        %v725 = vpack.c.b16 %v717, %v715
        %734 = vmatprep.subr.bf16.mxu0 0
        %735 = vmatpush1.bf16.msra.mxu0 %v583
        %736 = vmatprep.subr.bf16.mxu0 0
        %737 = vmatpush1.bf16.msra.mxu0 %v584
        %738 = vmatprep.subr.bf16.mxu0 0
        %739 = vmatpush1.bf16.msra.mxu0 %v585
        %740 = vmatprep.subr.bf16.mxu0 0
        %741 = vmatpush1.bf16.msra.mxu0 %v586
        %742 = vmatprep.subr.bf16.mxu0 0
        %743 = vmatpush1.bf16.msra.mxu0 %v587
        %744 = vmatprep.subr.bf16.mxu0 0
        %745 = vmatpush1.bf16.msra.mxu0 %v588
        %746 = vmatprep.subr.bf16.mxu0 0
        %747 = vmatpush1.bf16.msra.mxu0 %v589
        %748 = vmatprep.subr.bf16.mxu0 0
        %749 = vmatpush1.bf16.msra.mxu0 %v590
        %750 = vmatprep.subr.bf16.mxu0 0
        %751 = vmatpush1.bf16.msra.mxu0 %v591
        %752 = vmatprep.subr.bf16.mxu0 0
        %753 = vmatpush1.bf16.msra.mxu0 %v592
        %754 = vmatprep.subr.bf16.mxu0 0
        %755 = vmatpush1.bf16.msra.mxu0 %v593
        %756 = vmatprep.subr.bf16.mxu0 0
        %757 = vmatpush1.bf16.msra.mxu0 %v594
        %758 = vmatprep.subr.bf16.mxu0 0
        %759 = vmatpush1.bf16.msra.mxu0 %v595
        %760 = vmatprep.subr.bf16.mxu0 0
        %761 = vmatpush1.bf16.msra.mxu0 %v596
        %762 = vmatprep.subr.bf16.mxu0 0
        %763 = vmatpush1.bf16.msra.mxu0 %v597
        %764 = vmatprep.subr.bf16.mxu0 0
        %765 = vmatpush1.bf16.msra.mxu0 %v598
        %766 = vmatprep.mubr.bf16.mxu0 %v719
        %767 = vmatmul.mubr.bf16.gmra.mrb[0].mxu0 %v718
        %v768 = vpop.f32.mrb[0].mxu0
        %v769 = vadd.f32 0.0, %v768
        %v770 = vpop.f32.mrb[0].mxu0
        %v771 = vpop.f32.mrb[0].mxu0
        %v772 = vadd.f32 0.0, %v771
        %v773 = vpop.f32.mrb[0].mxu0
        %774 = vmatprep.mubr.bf16.mxu0 %v721
        %775 = vmatmul.mubr.bf16.gmra.mrb[0].mxu0 %v720
        %v776 = vpop.f32.mrb[0].mxu0
        %v777 = vadd.f32 0.0, %v776
        %v778 = vpop.f32.mrb[0].mxu0
        %v779 = vpop.f32.mrb[0].mxu0
        %v780 = vadd.f32 0.0, %v779
        %v781 = vpop.f32.mrb[0].mxu0
        %782 = vmatprep.mubr.bf16.mxu0 %v723
        %783 = vmatmul.mubr.bf16.gmra.mrb[0].mxu0 %v722
        %v784 = vpop.f32.mrb[0].mxu0
        %v785 = vadd.f32 0.0, %v784
        %v786 = vpop.f32.mrb[0].mxu0
        %v787 = vpop.f32.mrb[0].mxu0
        %v788 = vadd.f32 0.0, %v787
        %v789 = vpop.f32.mrb[0].mxu0
        %790 = vmatprep.mubr.bf16.mxu0 %v725
        %791 = vmatmul.mubr.bf16.gmra.mrb[0].mxu0 %v724
        %v792 = vpop.f32.mrb[0].mxu0
        %v793 = vadd.f32 0.0, %v792
        %v794 = vpop.f32.mrb[0].mxu0
        %v795 = vpop.f32.mrb[0].mxu0
        %v796 = vadd.f32 0.0, %v795
        %v797 = vpop.f32.mrb[0].mxu0
        %798 = vdwg.mxu0
        %v799 = vpack.c.bf16 %v772, %v769
        %v800 = vpack.c.bf16 %v780, %v777
        %v801 = vpack.c.bf16 %v788, %v785
        %v802 = vpack.c.bf16 %v796, %v793
        %s803 = scalar_lea.vmem %s2, 2
        %v804 = vld [vmem:[%s803] sm:$0x3]
        %vm805 = vcmask 23552
        %v807 = vsel %vm805, %v799, 0
        %v810 = vsel %vm805, %v800, 0
        %v813 = vsel %vm805, %v801, 0
        %v816 = vsel %vm805, %v802, 0
        %vm818 = vcmask 1040384
        %vm819 = vcmask 1041408
        %v820 = vsel %vm818, 4294967295, 65535
        %v821 = vsel %vm819, %v820, 0
        %v823 = vand.u32 %v804, %v821
        %825 = vmatprep.subr.bf16.mxu0 0
        %826 = vmatpush1.bf16.msra.mxu0 %v823
        %827 = vmatprep.subr.bf16.mxu0 0
        %828 = vmatpush1.bf16.msra.mxu0 0
        %829 = vmatprep.subr.bf16.mxu0 0
        %830 = vmatpush1.bf16.msra.mxu0 0
        %831 = vmatprep.subr.bf16.mxu0 0
        %832 = vmatpush1.bf16.msra.mxu0 0
        %833 = vmatprep.subr.bf16.mxu0 0
        %834 = vmatpush1.bf16.msra.mxu0 0
        %835 = vmatprep.subr.bf16.mxu0 0
        %836 = vmatpush1.bf16.msra.mxu0 0
        %837 = vmatprep.subr.bf16.mxu0 0
        %838 = vmatpush1.bf16.msra.mxu0 0
        %839 = vmatprep.subr.bf16.mxu0 0
        %840 = vmatpush1.bf16.msra.mxu0 0
        %841 = vmatprep.subr.bf16.mxu0 0
        %842 = vmatpush1.bf16.msra.mxu0 0
        %843 = vmatprep.subr.bf16.mxu0 0
        %844 = vmatpush1.bf16.msra.mxu0 0
        %845 = vmatprep.subr.bf16.mxu0 0
        %846 = vmatpush1.bf16.msra.mxu0 0
        %847 = vmatprep.subr.bf16.mxu0 0
        %848 = vmatpush1.bf16.msra.mxu0 0
        %849 = vmatprep.subr.bf16.mxu0 0
        %850 = vmatpush1.bf16.msra.mxu0 0
        %851 = vmatprep.subr.bf16.mxu0 0
        %852 = vmatpush1.bf16.msra.mxu0 0
        %853 = vmatprep.subr.bf16.mxu0 0
        %854 = vmatpush1.bf16.msra.mxu0 0
        %855 = vmatprep.subr.bf16.mxu0 0
        %856 = vmatpush1.bf16.msra.mxu0 0
        %857 = vmatprep.mubr.bf16.mxu0 0
        %858 = vmatmul.mubr.bf16.gmra.mrb[0].mxu0 %v807
        %v859 = vpop.f32.mrb[0].mxu0
        %v860 = vadd.f32 0.0, %v859
        %v861 = vpop.f32.mrb[0].mxu0
        %v862 = vpop.f32.mrb[0].mxu0
        %v863 = vadd.f32 0.0, %v862
        %v864 = vpop.f32.mrb[0].mxu0
        %865 = vmatprep.mubr.bf16.mxu0 0
        %866 = vmatmul.mubr.bf16.gmra.mrb[0].mxu0 %v810
        %v867 = vpop.f32.mrb[0].mxu0
        %v868 = vadd.f32 0.0, %v867
        %v869 = vpop.f32.mrb[0].mxu0
        %v870 = vpop.f32.mrb[0].mxu0
        %v871 = vadd.f32 0.0, %v870
        %v872 = vpop.f32.mrb[0].mxu0
        %873 = vmatprep.mubr.bf16.mxu0 0
        %874 = vmatmul.mubr.bf16.gmra.mrb[0].mxu0 %v813
        %v875 = vpop.f32.mrb[0].mxu0
        %v876 = vadd.f32 0.0, %v875
        %v877 = vpop.f32.mrb[0].mxu0
        %v878 = vpop.f32.mrb[0].mxu0
        %v879 = vadd.f32 0.0, %v878
        %v880 = vpop.f32.mrb[0].mxu0
        %881 = vmatprep.mubr.bf16.mxu0 0
        %882 = vmatmul.mubr.bf16.gmra.mrb[0].mxu0 %v816
        %v883 = vpop.f32.mrb[0].mxu0
        %v884 = vadd.f32 0.0, %v883
        %v885 = vpop.f32.mrb[0].mxu0
        %v886 = vpop.f32.mrb[0].mxu0
        %v887 = vadd.f32 0.0, %v886
        %v888 = vpop.f32.mrb[0].mxu0
        %889 = vdwg.mxu0
        %v891 = vsel %vm805, %v680, 0
        %v894 = vsel %vm805, %v681, 0
        %v897 = vsel %vm805, %v682, 0
        %v900 = vsel %vm805, %v683, 0
        %v903 = vand.u32 %v684, %v821
        %905 = vmatprep.subr.bf16.mxu0 0
        %906 = vmatpush1.bf16.msra.mxu0 %v903
        %907 = vmatprep.subr.bf16.mxu0 0
        %908 = vmatpush1.bf16.msra.mxu0 0
        %909 = vmatprep.subr.bf16.mxu0 0
        %910 = vmatpush1.bf16.msra.mxu0 0
        %911 = vmatprep.subr.bf16.mxu0 0
        %912 = vmatpush1.bf16.msra.mxu0 0
        %913 = vmatprep.subr.bf16.mxu0 0
        %914 = vmatpush1.bf16.msra.mxu0 0
        %915 = vmatprep.subr.bf16.mxu0 0
        %916 = vmatpush1.bf16.msra.mxu0 0
        %917 = vmatprep.subr.bf16.mxu0 0
        %918 = vmatpush1.bf16.msra.mxu0 0
        %919 = vmatprep.subr.bf16.mxu0 0
        %920 = vmatpush1.bf16.msra.mxu0 0
        %921 = vmatprep.subr.bf16.mxu0 0
        %922 = vmatpush1.bf16.msra.mxu0 0
        %923 = vmatprep.subr.bf16.mxu0 0
        %924 = vmatpush1.bf16.msra.mxu0 0
        %925 = vmatprep.subr.bf16.mxu0 0
        %926 = vmatpush1.bf16.msra.mxu0 0
        %927 = vmatprep.subr.bf16.mxu0 0
        %928 = vmatpush1.bf16.msra.mxu0 0
        %929 = vmatprep.subr.bf16.mxu0 0
        %930 = vmatpush1.bf16.msra.mxu0 0
        %931 = vmatprep.subr.bf16.mxu0 0
        %932 = vmatpush1.bf16.msra.mxu0 0
        %933 = vmatprep.subr.bf16.mxu0 0
        %934 = vmatpush1.bf16.msra.mxu0 0
        %935 = vmatprep.subr.bf16.mxu0 0
        %936 = vmatpush1.bf16.msra.mxu0 0
        %937 = vmatprep.mubr.bf16.mxu0 0
        %938 = vmatmul.mubr.bf16.gmra.mrb[0].mxu0 %v891
        %v939 = vpop.f32.mrb[0].mxu0
        %v940 = vadd.f32 %v860, %v939
        %v941 = vpop.f32.mrb[0].mxu0
        %v942 = vpop.f32.mrb[0].mxu0
        %v943 = vadd.f32 %v863, %v942
        %v944 = vpop.f32.mrb[0].mxu0
        %945 = vmatprep.mubr.bf16.mxu0 0
        %946 = vmatmul.mubr.bf16.gmra.mrb[0].mxu0 %v894
        %v947 = vpop.f32.mrb[0].mxu0
        %v948 = vadd.f32 %v868, %v947
        %v949 = vpop.f32.mrb[0].mxu0
        %v950 = vpop.f32.mrb[0].mxu0
        %v951 = vadd.f32 %v871, %v950
        %v952 = vpop.f32.mrb[0].mxu0
        %953 = vmatprep.mubr.bf16.mxu0 0
        %954 = vmatmul.mubr.bf16.gmra.mrb[0].mxu0 %v897
        %v955 = vpop.f32.mrb[0].mxu0
        %v956 = vadd.f32 %v876, %v955
        %v957 = vpop.f32.mrb[0].mxu0
        %v958 = vpop.f32.mrb[0].mxu0
        %v959 = vadd.f32 %v879, %v958
        %v960 = vpop.f32.mrb[0].mxu0
        %961 = vmatprep.mubr.bf16.mxu0 0
        %962 = vmatmul.mubr.bf16.gmra.mrb[0].mxu0 %v900
        %v963 = vpop.f32.mrb[0].mxu0
        %v964 = vadd.f32 %v884, %v963
        %v965 = vpop.f32.mrb[0].mxu0
        %v966 = vpop.f32.mrb[0].mxu0
        %v967 = vadd.f32 %v887, %v966
        %v968 = vpop.f32.mrb[0].mxu0
        %969 = vdwg.mxu0
        %s970 = scalar_lea.vmem %s1, 128
        %v971 = vld [vmem:[%s970] sm:$0xff]
        %v972 = vld [vmem:[%s970 + $0x8] sm:$0xff]
        %v973 = vld [vmem:[%s970 + $0x10] sm:$0xff]
        %v974 = vld [vmem:[%s970 + $0x18] sm:$0xff]
        %v975 = vld [vmem:[%s970 + $0x20] sm:$0xff]
        %v976 = vld [vmem:[%s970 + $0x28] sm:$0xff]
        %v977 = vld [vmem:[%s970 + $0x30] sm:$0xff]
        %v978 = vld [vmem:[%s970 + $0x38] sm:$0xff]
        %v987 = vunpack.c.l.b16 %v971
        %v988 = vunpack.c.h.b16 %v971
        %v989 = vunpack.c.l.b16 %v972
        %v990 = vunpack.c.h.b16 %v972
        %v991 = vunpack.c.l.b16 %v973
        %v992 = vunpack.c.h.b16 %v973
        %v993 = vunpack.c.l.b16 %v974
        %v994 = vunpack.c.h.b16 %v974
        %v995 = vunpack.c.l.b16 %v975
        %v996 = vunpack.c.h.b16 %v975
        %v997 = vunpack.c.l.b16 %v976
        %v998 = vunpack.c.h.b16 %v976
        %v999 = vunpack.c.l.b16 %v977
        %v1000 = vunpack.c.h.b16 %v977
        %v1001 = vunpack.c.l.b16 %v978
        %v1002 = vunpack.c.h.b16 %v978
        %v1003 = vpack.c.b16 %v989, %v987
        %v1004 = vpack.c.b16 %v990, %v988
        %v1005 = vpack.c.b16 %v993, %v991
        %v1006 = vpack.c.b16 %v994, %v992
        %v1007 = vpack.c.b16 %v997, %v995
        %v1008 = vpack.c.b16 %v998, %v996
        %v1009 = vpack.c.b16 %v1001, %v999
        %v1010 = vpack.c.b16 %v1002, %v1000
        %1019 = vmatprep.subr.bf16.mxu0 0
        %1020 = vmatpush1.bf16.msra.mxu0 %v583
        %1021 = vmatprep.subr.bf16.mxu0 0
        %1022 = vmatpush1.bf16.msra.mxu0 %v584
        %1023 = vmatprep.subr.bf16.mxu0 0
        %1024 = vmatpush1.bf16.msra.mxu0 %v585
        %1025 = vmatprep.subr.bf16.mxu0 0
        %1026 = vmatpush1.bf16.msra.mxu0 %v586
        %1027 = vmatprep.subr.bf16.mxu0 0
        %1028 = vmatpush1.bf16.msra.mxu0 %v587
        %1029 = vmatprep.subr.bf16.mxu0 0
        %1030 = vmatpush1.bf16.msra.mxu0 %v588
        %1031 = vmatprep.subr.bf16.mxu0 0
        %1032 = vmatpush1.bf16.msra.mxu0 %v589
        %1033 = vmatprep.subr.bf16.mxu0 0
        %1034 = vmatpush1.bf16.msra.mxu0 %v590
        %1035 = vmatprep.subr.bf16.mxu0 0
        %1036 = vmatpush1.bf16.msra.mxu0 %v591
        %1037 = vmatprep.subr.bf16.mxu0 0
        %1038 = vmatpush1.bf16.msra.mxu0 %v592
        %1039 = vmatprep.subr.bf16.mxu0 0
        %1040 = vmatpush1.bf16.msra.mxu0 %v593
        %1041 = vmatprep.subr.bf16.mxu0 0
        %1042 = vmatpush1.bf16.msra.mxu0 %v594
        %1043 = vmatprep.subr.bf16.mxu0 0
        %1044 = vmatpush1.bf16.msra.mxu0 %v595
        %1045 = vmatprep.subr.bf16.mxu0 0
        %1046 = vmatpush1.bf16.msra.mxu0 %v596
        %1047 = vmatprep.subr.bf16.mxu0 0
        %1048 = vmatpush1.bf16.msra.mxu0 %v597
        %1049 = vmatprep.subr.bf16.mxu0 0
        %1050 = vmatpush1.bf16.msra.mxu0 %v598
        %1051 = vmatprep.mubr.bf16.mxu0 %v1004
        %1052 = vmatmul.mubr.bf16.gmra.mrb[0].mxu0 %v1003
        %v1053 = vpop.f32.mrb[0].mxu0
        %v1054 = vadd.f32 0.0, %v1053
        %v1055 = vpop.f32.mrb[0].mxu0
        %v1056 = vpop.f32.mrb[0].mxu0
        %v1057 = vadd.f32 0.0, %v1056
        %v1058 = vpop.f32.mrb[0].mxu0
        %1059 = vmatprep.mubr.bf16.mxu0 %v1006
        %1060 = vmatmul.mubr.bf16.gmra.mrb[0].mxu0 %v1005
        %v1061 = vpop.f32.mrb[0].mxu0
        %v1062 = vadd.f32 0.0, %v1061
        %v1063 = vpop.f32.mrb[0].mxu0
        %v1064 = vpop.f32.mrb[0].mxu0
        %v1065 = vadd.f32 0.0, %v1064
        %v1066 = vpop.f32.mrb[0].mxu0
        %1067 = vmatprep.mubr.bf16.mxu0 %v1008
        %1068 = vmatmul.mubr.bf16.gmra.mrb[0].mxu0 %v1007
        %v1069 = vpop.f32.mrb[0].mxu0
        %v1070 = vadd.f32 0.0, %v1069
        %v1071 = vpop.f32.mrb[0].mxu0
        %v1072 = vpop.f32.mrb[0].mxu0
        %v1073 = vadd.f32 0.0, %v1072
        %v1074 = vpop.f32.mrb[0].mxu0
        %1075 = vmatprep.mubr.bf16.mxu0 %v1010
        %1076 = vmatmul.mubr.bf16.gmra.mrb[0].mxu0 %v1009
        %v1077 = vpop.f32.mrb[0].mxu0
        %v1078 = vadd.f32 0.0, %v1077
        %v1079 = vpop.f32.mrb[0].mxu0
        %v1080 = vpop.f32.mrb[0].mxu0
        %v1081 = vadd.f32 0.0, %v1080
        %v1082 = vpop.f32.mrb[0].mxu0
        %1083 = vdwg.mxu0
        %v1084 = vpack.c.bf16 %v1057, %v1054
        %v1085 = vpack.c.bf16 %v1065, %v1062
        %v1086 = vpack.c.bf16 %v1073, %v1070
        %v1087 = vpack.c.bf16 %v1081, %v1078
        %s1088 = scalar_lea.vmem %s2, 4
        %v1089 = vld [vmem:[%s1088] sm:$0x3]
        %v1091 = vsel %vm805, %v1084, 0
        %v1094 = vsel %vm805, %v1085, 0
        %v1097 = vsel %vm805, %v1086, 0
        %v1100 = vsel %vm805, %v1087, 0
        %v1103 = vand.u32 %v1089, %v821
        %1105 = vmatprep.subr.bf16.mxu0 0
        %1106 = vmatpush1.bf16.msra.mxu0 %v1103
        %1107 = vmatprep.subr.bf16.mxu0 0
        %1108 = vmatpush1.bf16.msra.mxu0 0
        %1109 = vmatprep.subr.bf16.mxu0 0
        %1110 = vmatpush1.bf16.msra.mxu0 0
        %1111 = vmatprep.subr.bf16.mxu0 0
        %1112 = vmatpush1.bf16.msra.mxu0 0
        %1113 = vmatprep.subr.bf16.mxu0 0
        %1114 = vmatpush1.bf16.msra.mxu0 0
        %1115 = vmatprep.subr.bf16.mxu0 0
        %1116 = vmatpush1.bf16.msra.mxu0 0
        %1117 = vmatprep.subr.bf16.mxu0 0
        %1118 = vmatpush1.bf16.msra.mxu0 0
        %1119 = vmatprep.subr.bf16.mxu0 0
        %1120 = vmatpush1.bf16.msra.mxu0 0
        %1121 = vmatprep.subr.bf16.mxu0 0
        %1122 = vmatpush1.bf16.msra.mxu0 0
        %1123 = vmatprep.subr.bf16.mxu0 0
        %1124 = vmatpush1.bf16.msra.mxu0 0
        %1125 = vmatprep.subr.bf16.mxu0 0
        %1126 = vmatpush1.bf16.msra.mxu0 0
        %1127 = vmatprep.subr.bf16.mxu0 0
        %1128 = vmatpush1.bf16.msra.mxu0 0
        %1129 = vmatprep.subr.bf16.mxu0 0
        %1130 = vmatpush1.bf16.msra.mxu0 0
        %1131 = vmatprep.subr.bf16.mxu0 0
        %1132 = vmatpush1.bf16.msra.mxu0 0
        %1133 = vmatprep.subr.bf16.mxu0 0
        %1134 = vmatpush1.bf16.msra.mxu0 0
        %1135 = vmatprep.subr.bf16.mxu0 0
        %1136 = vmatpush1.bf16.msra.mxu0 0
        %1137 = vmatprep.mubr.bf16.mxu0 0
        %1138 = vmatmul.mubr.bf16.gmra.mrb[0].mxu0 %v1091
        %v1139 = vpop.f32.mrb[0].mxu0
        %v1140 = vadd.f32 0.0, %v1139
        %v1141 = vpop.f32.mrb[0].mxu0
        %v1142 = vpop.f32.mrb[0].mxu0
        %v1143 = vadd.f32 0.0, %v1142
        %v1144 = vpop.f32.mrb[0].mxu0
        %1145 = vmatprep.mubr.bf16.mxu0 0
        %1146 = vmatmul.mubr.bf16.gmra.mrb[0].mxu0 %v1094
        %v1147 = vpop.f32.mrb[0].mxu0
        %v1148 = vadd.f32 0.0, %v1147
        %v1149 = vpop.f32.mrb[0].mxu0
        %v1150 = vpop.f32.mrb[0].mxu0
        %v1151 = vadd.f32 0.0, %v1150
        %v1152 = vpop.f32.mrb[0].mxu0
        %1153 = vmatprep.mubr.bf16.mxu0 0
        %1154 = vmatmul.mubr.bf16.gmra.mrb[0].mxu0 %v1097
        %v1155 = vpop.f32.mrb[0].mxu0
        %v1156 = vadd.f32 0.0, %v1155
        %v1157 = vpop.f32.mrb[0].mxu0
        %v1158 = vpop.f32.mrb[0].mxu0
        %v1159 = vadd.f32 0.0, %v1158
        %v1160 = vpop.f32.mrb[0].mxu0
        %1161 = vmatprep.mubr.bf16.mxu0 0
        %1162 = vmatmul.mubr.bf16.gmra.mrb[0].mxu0 %v1100
        %v1163 = vpop.f32.mrb[0].mxu0
        %v1164 = vadd.f32 0.0, %v1163
        %v1165 = vpop.f32.mrb[0].mxu0
        %v1166 = vpop.f32.mrb[0].mxu0
        %v1167 = vadd.f32 0.0, %v1166
        %v1168 = vpop.f32.mrb[0].mxu0
        %1169 = vdwg.mxu0
        %v1170 = vadd.f32 %v940, %v1140
        %v1171 = vadd.f32 %v943, %v1143
        %v1172 = vadd.f32 %v948, %v1148
        %v1173 = vadd.f32 %v951, %v1151
        %v1174 = vadd.f32 %v956, %v1156
        %v1175 = vadd.f32 %v959, %v1159
        %v1176 = vadd.f32 %v964, %v1164
        %v1177 = vadd.f32 %v967, %v1167
        %s1178 = scalar_lea.vmem %s1, 192
        %v1179 = vld [vmem:[%s1178] sm:$0xff]
        %v1180 = vld [vmem:[%s1178 + $0x8] sm:$0xff]
        %v1181 = vld [vmem:[%s1178 + $0x10] sm:$0xff]
        %v1182 = vld [vmem:[%s1178 + $0x18] sm:$0xff]
        %v1183 = vld [vmem:[%s1178 + $0x20] sm:$0xff]
        %v1184 = vld [vmem:[%s1178 + $0x28] sm:$0xff]
        %v1185 = vld [vmem:[%s1178 + $0x30] sm:$0xff]
        %v1186 = vld [vmem:[%s1178 + $0x38] sm:$0xff]
        %v1195 = vunpack.c.l.b16 %v1179
        %v1196 = vunpack.c.h.b16 %v1179
        %v1197 = vunpack.c.l.b16 %v1180
        %v1198 = vunpack.c.h.b16 %v1180
        %v1199 = vunpack.c.l.b16 %v1181
        %v1200 = vunpack.c.h.b16 %v1181
        %v1201 = vunpack.c.l.b16 %v1182
        %v1202 = vunpack.c.h.b16 %v1182
        %v1203 = vunpack.c.l.b16 %v1183
        %v1204 = vunpack.c.h.b16 %v1183
        %v1205 = vunpack.c.l.b16 %v1184
        %v1206 = vunpack.c.h.b16 %v1184
        %v1207 = vunpack.c.l.b16 %v1185
        %v1208 = vunpack.c.h.b16 %v1185
        %v1209 = vunpack.c.l.b16 %v1186
        %v1210 = vunpack.c.h.b16 %v1186
        %v1211 = vpack.c.b16 %v1197, %v1195
        %v1212 = vpack.c.b16 %v1198, %v1196
        %v1213 = vpack.c.b16 %v1201, %v1199
        %v1214 = vpack.c.b16 %v1202, %v1200
        %v1215 = vpack.c.b16 %v1205, %v1203
        %v1216 = vpack.c.b16 %v1206, %v1204
        %v1217 = vpack.c.b16 %v1209, %v1207
        %v1218 = vpack.c.b16 %v1210, %v1208
        %1227 = vmatprep.subr.bf16.mxu0 0
        %1228 = vmatpush1.bf16.msra.mxu0 %v583
        %1229 = vmatprep.subr.bf16.mxu0 0
        %1230 = vmatpush1.bf16.msra.mxu0 %v584
        %1231 = vmatprep.subr.bf16.mxu0 0
        %1232 = vmatpush1.bf16.msra.mxu0 %v585
        %1233 = vmatprep.subr.bf16.mxu0 0
        %1234 = vmatpush1.bf16.msra.mxu0 %v586
        %1235 = vmatprep.subr.bf16.mxu0 0
        %1236 = vmatpush1.bf16.msra.mxu0 %v587
        %1237 = vmatprep.subr.bf16.mxu0 0
        %1238 = vmatpush1.bf16.msra.mxu0 %v588
        %1239 = vmatprep.subr.bf16.mxu0 0
        %1240 = vmatpush1.bf16.msra.mxu0 %v589
        %1241 = vmatprep.subr.bf16.mxu0 0
        %1242 = vmatpush1.bf16.msra.mxu0 %v590
        %1243 = vmatprep.subr.bf16.mxu0 0
        %1244 = vmatpush1.bf16.msra.mxu0 %v591
        %1245 = vmatprep.subr.bf16.mxu0 0
        %1246 = vmatpush1.bf16.msra.mxu0 %v592
        %1247 = vmatprep.subr.bf16.mxu0 0
        %1248 = vmatpush1.bf16.msra.mxu0 %v593
        %1249 = vmatprep.subr.bf16.mxu0 0
        %1250 = vmatpush1.bf16.msra.mxu0 %v594
        %1251 = vmatprep.subr.bf16.mxu0 0
        %1252 = vmatpush1.bf16.msra.mxu0 %v595
        %1253 = vmatprep.subr.bf16.mxu0 0
        %1254 = vmatpush1.bf16.msra.mxu0 %v596
        %1255 = vmatprep.subr.bf16.mxu0 0
        %1256 = vmatpush1.bf16.msra.mxu0 %v597
        %1257 = vmatprep.subr.bf16.mxu0 0
        %1258 = vmatpush1.bf16.msra.mxu0 %v598
        %1259 = vmatprep.mubr.bf16.mxu0 %v1212
        %1260 = vmatmul.mubr.bf16.gmra.mrb[0].mxu0 %v1211
        %v1261 = vpop.f32.mrb[0].mxu0
        %v1262 = vadd.f32 0.0, %v1261
        %v1263 = vpop.f32.mrb[0].mxu0
        %v1264 = vpop.f32.mrb[0].mxu0
        %v1265 = vadd.f32 0.0, %v1264
        %v1266 = vpop.f32.mrb[0].mxu0
        %1267 = vmatprep.mubr.bf16.mxu0 %v1214
        %1268 = vmatmul.mubr.bf16.gmra.mrb[0].mxu0 %v1213
        %v1269 = vpop.f32.mrb[0].mxu0
        %v1270 = vadd.f32 0.0, %v1269
        %v1271 = vpop.f32.mrb[0].mxu0
        %v1272 = vpop.f32.mrb[0].mxu0
        %v1273 = vadd.f32 0.0, %v1272
        %v1274 = vpop.f32.mrb[0].mxu0
        %1275 = vmatprep.mubr.bf16.mxu0 %v1216
        %1276 = vmatmul.mubr.bf16.gmra.mrb[0].mxu0 %v1215
        %v1277 = vpop.f32.mrb[0].mxu0
        %v1278 = vadd.f32 0.0, %v1277
        %v1279 = vpop.f32.mrb[0].mxu0
        %v1280 = vpop.f32.mrb[0].mxu0
        %v1281 = vadd.f32 0.0, %v1280
        %v1282 = vpop.f32.mrb[0].mxu0
        %1283 = vmatprep.mubr.bf16.mxu0 %v1218
        %1284 = vmatmul.mubr.bf16.gmra.mrb[0].mxu0 %v1217
        %v1285 = vpop.f32.mrb[0].mxu0
        %v1286 = vadd.f32 0.0, %v1285
        %v1287 = vpop.f32.mrb[0].mxu0
        %v1288 = vpop.f32.mrb[0].mxu0
        %v1289 = vadd.f32 0.0, %v1288
        %v1290 = vpop.f32.mrb[0].mxu0
        %1291 = vdwg.mxu0
        %v1292 = vpack.c.bf16 %v1265, %v1262
        %v1293 = vpack.c.bf16 %v1273, %v1270
        %v1294 = vpack.c.bf16 %v1281, %v1278
        %v1295 = vpack.c.bf16 %v1289, %v1286
        %s1296 = scalar_lea.vmem %s2, 6
        %v1297 = vld [vmem:[%s1296] sm:$0x3]
        %v1299 = vsel %vm805, %v1292, 0
        %v1302 = vsel %vm805, %v1293, 0
        %v1305 = vsel %vm805, %v1294, 0
        %v1308 = vsel %vm805, %v1295, 0
        %v1311 = vand.u32 %v1297, %v821
        %1313 = vmatprep.subr.bf16.mxu0 0
        %1314 = vmatpush1.bf16.msra.mxu0 %v1311
        %1315 = vmatprep.subr.bf16.mxu0 0
        %1316 = vmatpush1.bf16.msra.mxu0 0
        %1317 = vmatprep.subr.bf16.mxu0 0
        %1318 = vmatpush1.bf16.msra.mxu0 0
        %1319 = vmatprep.subr.bf16.mxu0 0
        %1320 = vmatpush1.bf16.msra.mxu0 0
        %1321 = vmatprep.subr.bf16.mxu0 0
        %1322 = vmatpush1.bf16.msra.mxu0 0
        %1323 = vmatprep.subr.bf16.mxu0 0
        %1324 = vmatpush1.bf16.msra.mxu0 0
        %1325 = vmatprep.subr.bf16.mxu0 0
        %1326 = vmatpush1.bf16.msra.mxu0 0
        %1327 = vmatprep.subr.bf16.mxu0 0
        %1328 = vmatpush1.bf16.msra.mxu0 0
        %1329 = vmatprep.subr.bf16.mxu0 0
        %1330 = vmatpush1.bf16.msra.mxu0 0
        %1331 = vmatprep.subr.bf16.mxu0 0
        %1332 = vmatpush1.bf16.msra.mxu0 0
        %1333 = vmatprep.subr.bf16.mxu0 0
        %1334 = vmatpush1.bf16.msra.mxu0 0
        %1335 = vmatprep.subr.bf16.mxu0 0
        %1336 = vmatpush1.bf16.msra.mxu0 0
        %1337 = vmatprep.subr.bf16.mxu0 0
        %1338 = vmatpush1.bf16.msra.mxu0 0
        %1339 = vmatprep.subr.bf16.mxu0 0
        %1340 = vmatpush1.bf16.msra.mxu0 0
        %1341 = vmatprep.subr.bf16.mxu0 0
        %1342 = vmatpush1.bf16.msra.mxu0 0
        %1343 = vmatprep.subr.bf16.mxu0 0
        %1344 = vmatpush1.bf16.msra.mxu0 0
        %1345 = vmatprep.mubr.bf16.mxu0 0
        %1346 = vmatmul.mubr.bf16.gmra.mrb[0].mxu0 %v1299
        %v1347 = vpop.f32.mrb[0].mxu0
        %v1348 = vadd.f32 0.0, %v1347
        %v1349 = vpop.f32.mrb[0].mxu0
        %v1350 = vpop.f32.mrb[0].mxu0
        %v1351 = vadd.f32 0.0, %v1350
        %v1352 = vpop.f32.mrb[0].mxu0
        %1353 = vmatprep.mubr.bf16.mxu0 0
        %1354 = vmatmul.mubr.bf16.gmra.mrb[0].mxu0 %v1302
        %v1355 = vpop.f32.mrb[0].mxu0
        %v1356 = vadd.f32 0.0, %v1355
        %v1357 = vpop.f32.mrb[0].mxu0
        %v1358 = vpop.f32.mrb[0].mxu0
        %v1359 = vadd.f32 0.0, %v1358
        %v1360 = vpop.f32.mrb[0].mxu0
        %1361 = vmatprep.mubr.bf16.mxu0 0
        %1362 = vmatmul.mubr.bf16.gmra.mrb[0].mxu0 %v1305
        %v1363 = vpop.f32.mrb[0].mxu0
        %v1364 = vadd.f32 0.0, %v1363
        %v1365 = vpop.f32.mrb[0].mxu0
        %v1366 = vpop.f32.mrb[0].mxu0
        %v1367 = vadd.f32 0.0, %v1366
        %v1368 = vpop.f32.mrb[0].mxu0
        %1369 = vmatprep.mubr.bf16.mxu0 0
        %1370 = vmatmul.mubr.bf16.gmra.mrb[0].mxu0 %v1308
        %v1371 = vpop.f32.mrb[0].mxu0
        %v1372 = vadd.f32 0.0, %v1371
        %v1373 = vpop.f32.mrb[0].mxu0
        %v1374 = vpop.f32.mrb[0].mxu0
        %v1375 = vadd.f32 0.0, %v1374
        %v1376 = vpop.f32.mrb[0].mxu0
        %1377 = vdwg.mxu0
        %v1378 = vadd.f32 %v1170, %v1348
        %v1379 = vadd.f32 %v1171, %v1351
        %v1380 = vadd.f32 %v1172, %v1356
        %v1381 = vadd.f32 %v1173, %v1359
        %v1382 = vadd.f32 %v1174, %v1364
        %v1383 = vadd.f32 %v1175, %v1367
        %v1384 = vadd.f32 %v1176, %v1372
        %v1385 = vadd.f32 %v1177, %v1375
        %s1386 = scalar_lea.vmem %s1, 256
        %v1387 = vld [vmem:[%s1386] sm:$0xff]
        %v1388 = vld [vmem:[%s1386 + $0x8] sm:$0xff]
        %v1389 = vld [vmem:[%s1386 + $0x10] sm:$0xff]
        %v1390 = vld [vmem:[%s1386 + $0x18] sm:$0xff]
        %v1391 = vld [vmem:[%s1386 + $0x20] sm:$0xff]
        %v1392 = vld [vmem:[%s1386 + $0x28] sm:$0xff]
        %v1393 = vld [vmem:[%s1386 + $0x30] sm:$0xff]
        %v1394 = vld [vmem:[%s1386 + $0x38] sm:$0xff]
        %v1403 = vunpack.c.l.b16 %v1387
        %v1404 = vunpack.c.h.b16 %v1387
        %v1405 = vunpack.c.l.b16 %v1388
        %v1406 = vunpack.c.h.b16 %v1388
        %v1407 = vunpack.c.l.b16 %v1389
        %v1408 = vunpack.c.h.b16 %v1389
        %v1409 = vunpack.c.l.b16 %v1390
        %v1410 = vunpack.c.h.b16 %v1390
        %v1411 = vunpack.c.l.b16 %v1391
        %v1412 = vunpack.c.h.b16 %v1391
        %v1413 = vunpack.c.l.b16 %v1392
        %v1414 = vunpack.c.h.b16 %v1392
        %v1415 = vunpack.c.l.b16 %v1393
        %v1416 = vunpack.c.h.b16 %v1393
        %v1417 = vunpack.c.l.b16 %v1394
        %v1418 = vunpack.c.h.b16 %v1394
        %v1419 = vpack.c.b16 %v1405, %v1403
        %v1420 = vpack.c.b16 %v1406, %v1404
        %v1421 = vpack.c.b16 %v1409, %v1407
        %v1422 = vpack.c.b16 %v1410, %v1408
        %v1423 = vpack.c.b16 %v1413, %v1411
        %v1424 = vpack.c.b16 %v1414, %v1412
        %v1425 = vpack.c.b16 %v1417, %v1415
        %v1426 = vpack.c.b16 %v1418, %v1416
        %1435 = vmatprep.subr.bf16.mxu0 0
        %1436 = vmatpush1.bf16.msra.mxu0 %v583
        %1437 = vmatprep.subr.bf16.mxu0 0
        %1438 = vmatpush1.bf16.msra.mxu0 %v584
        %1439 = vmatprep.subr.bf16.mxu0 0
        %1440 = vmatpush1.bf16.msra.mxu0 %v585
        %1441 = vmatprep.subr.bf16.mxu0 0
        %1442 = vmatpush1.bf16.msra.mxu0 %v586
        %1443 = vmatprep.subr.bf16.mxu0 0
        %1444 = vmatpush1.bf16.msra.mxu0 %v587
        %1445 = vmatprep.subr.bf16.mxu0 0
        %1446 = vmatpush1.bf16.msra.mxu0 %v588
        %1447 = vmatprep.subr.bf16.mxu0 0
        %1448 = vmatpush1.bf16.msra.mxu0 %v589
        %1449 = vmatprep.subr.bf16.mxu0 0
        %1450 = vmatpush1.bf16.msra.mxu0 %v590
        %1451 = vmatprep.subr.bf16.mxu0 0
        %1452 = vmatpush1.bf16.msra.mxu0 %v591
        %1453 = vmatprep.subr.bf16.mxu0 0
        %1454 = vmatpush1.bf16.msra.mxu0 %v592
        %1455 = vmatprep.subr.bf16.mxu0 0
        %1456 = vmatpush1.bf16.msra.mxu0 %v593
        %1457 = vmatprep.subr.bf16.mxu0 0
        %1458 = vmatpush1.bf16.msra.mxu0 %v594
        %1459 = vmatprep.subr.bf16.mxu0 0
        %1460 = vmatpush1.bf16.msra.mxu0 %v595
        %1461 = vmatprep.subr.bf16.mxu0 0
        %1462 = vmatpush1.bf16.msra.mxu0 %v596
        %1463 = vmatprep.subr.bf16.mxu0 0
        %1464 = vmatpush1.bf16.msra.mxu0 %v597
        %1465 = vmatprep.subr.bf16.mxu0 0
        %1466 = vmatpush1.bf16.msra.mxu0 %v598
        %1467 = vmatprep.mubr.bf16.mxu0 %v1420
        %1468 = vmatmul.mubr.bf16.gmra.mrb[0].mxu0 %v1419
        %v1469 = vpop.f32.mrb[0].mxu0
        %v1470 = vadd.f32 0.0, %v1469
        %v1471 = vpop.f32.mrb[0].mxu0
        %v1472 = vpop.f32.mrb[0].mxu0
        %v1473 = vadd.f32 0.0, %v1472
        %v1474 = vpop.f32.mrb[0].mxu0
        %1475 = vmatprep.mubr.bf16.mxu0 %v1422
        %1476 = vmatmul.mubr.bf16.gmra.mrb[0].mxu0 %v1421
        %v1477 = vpop.f32.mrb[0].mxu0
        %v1478 = vadd.f32 0.0, %v1477
        %v1479 = vpop.f32.mrb[0].mxu0
        %v1480 = vpop.f32.mrb[0].mxu0
        %v1481 = vadd.f32 0.0, %v1480
        %v1482 = vpop.f32.mrb[0].mxu0
        %1483 = vmatprep.mubr.bf16.mxu0 %v1424
        %1484 = vmatmul.mubr.bf16.gmra.mrb[0].mxu0 %v1423
        %v1485 = vpop.f32.mrb[0].mxu0
        %v1486 = vadd.f32 0.0, %v1485
        %v1487 = vpop.f32.mrb[0].mxu0
        %v1488 = vpop.f32.mrb[0].mxu0
        %v1489 = vadd.f32 0.0, %v1488
        %v1490 = vpop.f32.mrb[0].mxu0
        %1491 = vmatprep.mubr.bf16.mxu0 %v1426
        %1492 = vmatmul.mubr.bf16.gmra.mrb[0].mxu0 %v1425
        %v1493 = vpop.f32.mrb[0].mxu0
        %v1494 = vadd.f32 0.0, %v1493
        %v1495 = vpop.f32.mrb[0].mxu0
        %v1496 = vpop.f32.mrb[0].mxu0
        %v1497 = vadd.f32 0.0, %v1496
        %v1498 = vpop.f32.mrb[0].mxu0
        %1499 = vdwg.mxu0
        %v1500 = vpack.c.bf16 %v1473, %v1470
        %v1501 = vpack.c.bf16 %v1481, %v1478
        %v1502 = vpack.c.bf16 %v1489, %v1486
        %v1503 = vpack.c.bf16 %v1497, %v1494
        %s1504 = scalar_lea.vmem %s2, 8
        %v1505 = vld [vmem:[%s1504] sm:$0x3]
        %v1507 = vsel %vm805, %v1500, 0
        %v1510 = vsel %vm805, %v1501, 0
        %v1513 = vsel %vm805, %v1502, 0
        %v1516 = vsel %vm805, %v1503, 0
        %v1519 = vand.u32 %v1505, %v821
        %1521 = vmatprep.subr.bf16.mxu0 0
        %1522 = vmatpush1.bf16.msra.mxu0 %v1519
        %1523 = vmatprep.subr.bf16.mxu0 0
        %1524 = vmatpush1.bf16.msra.mxu0 0
        %1525 = vmatprep.subr.bf16.mxu0 0
        %1526 = vmatpush1.bf16.msra.mxu0 0
        %1527 = vmatprep.subr.bf16.mxu0 0
        %1528 = vmatpush1.bf16.msra.mxu0 0
        %1529 = vmatprep.subr.bf16.mxu0 0
        %1530 = vmatpush1.bf16.msra.mxu0 0
        %1531 = vmatprep.subr.bf16.mxu0 0
        %1532 = vmatpush1.bf16.msra.mxu0 0
        %1533 = vmatprep.subr.bf16.mxu0 0
        %1534 = vmatpush1.bf16.msra.mxu0 0
        %1535 = vmatprep.subr.bf16.mxu0 0
        %1536 = vmatpush1.bf16.msra.mxu0 0
        %1537 = vmatprep.subr.bf16.mxu0 0
        %1538 = vmatpush1.bf16.msra.mxu0 0
        %1539 = vmatprep.subr.bf16.mxu0 0
        %1540 = vmatpush1.bf16.msra.mxu0 0
        %1541 = vmatprep.subr.bf16.mxu0 0
        %1542 = vmatpush1.bf16.msra.mxu0 0
        %1543 = vmatprep.subr.bf16.mxu0 0
        %1544 = vmatpush1.bf16.msra.mxu0 0
        %1545 = vmatprep.subr.bf16.mxu0 0
        %1546 = vmatpush1.bf16.msra.mxu0 0
        %1547 = vmatprep.subr.bf16.mxu0 0
        %1548 = vmatpush1.bf16.msra.mxu0 0
        %1549 = vmatprep.subr.bf16.mxu0 0
        %1550 = vmatpush1.bf16.msra.mxu0 0
        %1551 = vmatprep.subr.bf16.mxu0 0
        %1552 = vmatpush1.bf16.msra.mxu0 0
        %1553 = vmatprep.mubr.bf16.mxu0 0
        %1554 = vmatmul.mubr.bf16.gmra.mrb[0].mxu0 %v1507
        %v1555 = vpop.f32.mrb[0].mxu0
        %v1556 = vadd.f32 0.0, %v1555
        %v1557 = vpop.f32.mrb[0].mxu0
        %v1558 = vpop.f32.mrb[0].mxu0
        %v1559 = vadd.f32 0.0, %v1558
        %v1560 = vpop.f32.mrb[0].mxu0
        %1561 = vmatprep.mubr.bf16.mxu0 0
        %1562 = vmatmul.mubr.bf16.gmra.mrb[0].mxu0 %v1510
        %v1563 = vpop.f32.mrb[0].mxu0
        %v1564 = vadd.f32 0.0, %v1563
        %v1565 = vpop.f32.mrb[0].mxu0
        %v1566 = vpop.f32.mrb[0].mxu0
        %v1567 = vadd.f32 0.0, %v1566
        %v1568 = vpop.f32.mrb[0].mxu0
        %1569 = vmatprep.mubr.bf16.mxu0 0
        %1570 = vmatmul.mubr.bf16.gmra.mrb[0].mxu0 %v1513
        %v1571 = vpop.f32.mrb[0].mxu0
        %v1572 = vadd.f32 0.0, %v1571
        %v1573 = vpop.f32.mrb[0].mxu0
        %v1574 = vpop.f32.mrb[0].mxu0
        %v1575 = vadd.f32 0.0, %v1574
        %v1576 = vpop.f32.mrb[0].mxu0
        %1577 = vmatprep.mubr.bf16.mxu0 0
        %1578 = vmatmul.mubr.bf16.gmra.mrb[0].mxu0 %v1516
        %v1579 = vpop.f32.mrb[0].mxu0
        %v1580 = vadd.f32 0.0, %v1579
        %v1581 = vpop.f32.mrb[0].mxu0
        %v1582 = vpop.f32.mrb[0].mxu0
        %v1583 = vadd.f32 0.0, %v1582
        %v1584 = vpop.f32.mrb[0].mxu0
        %1585 = vdwg.mxu0
        %v1586 = vadd.f32 %v1378, %v1556
        %v1587 = vadd.f32 %v1379, %v1559
        %v1588 = vadd.f32 %v1380, %v1564
        %v1589 = vadd.f32 %v1381, %v1567
        %v1590 = vadd.f32 %v1382, %v1572
        %v1591 = vadd.f32 %v1383, %v1575
        %v1592 = vadd.f32 %v1384, %v1580
        %v1593 = vadd.f32 %v1385, %v1583
        %s1594 = scalar_lea.vmem %s1, 320
        %v1595 = vld [vmem:[%s1594] sm:$0xff]
        %v1596 = vld [vmem:[%s1594 + $0x8] sm:$0xff]
        %v1597 = vld [vmem:[%s1594 + $0x10] sm:$0xff]
        %v1598 = vld [vmem:[%s1594 + $0x18] sm:$0xff]
        %v1599 = vld [vmem:[%s1594 + $0x20] sm:$0xff]
        %v1600 = vld [vmem:[%s1594 + $0x28] sm:$0xff]
        %v1601 = vld [vmem:[%s1594 + $0x30] sm:$0xff]
        %v1602 = vld [vmem:[%s1594 + $0x38] sm:$0xff]
        %v1611 = vunpack.c.l.b16 %v1595
        %v1612 = vunpack.c.h.b16 %v1595
        %v1613 = vunpack.c.l.b16 %v1596
        %v1614 = vunpack.c.h.b16 %v1596
        %v1615 = vunpack.c.l.b16 %v1597
        %v1616 = vunpack.c.h.b16 %v1597
        %v1617 = vunpack.c.l.b16 %v1598
        %v1618 = vunpack.c.h.b16 %v1598
        %v1619 = vunpack.c.l.b16 %v1599
        %v1620 = vunpack.c.h.b16 %v1599
        %v1621 = vunpack.c.l.b16 %v1600
        %v1622 = vunpack.c.h.b16 %v1600
        %v1623 = vunpack.c.l.b16 %v1601
        %v1624 = vunpack.c.h.b16 %v1601
        %v1625 = vunpack.c.l.b16 %v1602
        %v1626 = vunpack.c.h.b16 %v1602
        %v1627 = vpack.c.b16 %v1613, %v1611
        %v1628 = vpack.c.b16 %v1614, %v1612
        %v1629 = vpack.c.b16 %v1617, %v1615
        %v1630 = vpack.c.b16 %v1618, %v1616
        %v1631 = vpack.c.b16 %v1621, %v1619
        %v1632 = vpack.c.b16 %v1622, %v1620
        %v1633 = vpack.c.b16 %v1625, %v1623
        %v1634 = vpack.c.b16 %v1626, %v1624
        %1643 = vmatprep.subr.bf16.mxu0 0
        %1644 = vmatpush1.bf16.msra.mxu0 %v583
        %1645 = vmatprep.subr.bf16.mxu0 0
        %1646 = vmatpush1.bf16.msra.mxu0 %v584
        %1647 = vmatprep.subr.bf16.mxu0 0
        %1648 = vmatpush1.bf16.msra.mxu0 %v585
        %1649 = vmatprep.subr.bf16.mxu0 0
        %1650 = vmatpush1.bf16.msra.mxu0 %v586
        %1651 = vmatprep.subr.bf16.mxu0 0
        %1652 = vmatpush1.bf16.msra.mxu0 %v587
        %1653 = vmatprep.subr.bf16.mxu0 0
        %1654 = vmatpush1.bf16.msra.mxu0 %v588
        %1655 = vmatprep.subr.bf16.mxu0 0
        %1656 = vmatpush1.bf16.msra.mxu0 %v589
        %1657 = vmatprep.subr.bf16.mxu0 0
        %1658 = vmatpush1.bf16.msra.mxu0 %v590
        %1659 = vmatprep.subr.bf16.mxu0 0
        %1660 = vmatpush1.bf16.msra.mxu0 %v591
        %1661 = vmatprep.subr.bf16.mxu0 0
        %1662 = vmatpush1.bf16.msra.mxu0 %v592
        %1663 = vmatprep.subr.bf16.mxu0 0
        %1664 = vmatpush1.bf16.msra.mxu0 %v593
        %1665 = vmatprep.subr.bf16.mxu0 0
        %1666 = vmatpush1.bf16.msra.mxu0 %v594
        %1667 = vmatprep.subr.bf16.mxu0 0
        %1668 = vmatpush1.bf16.msra.mxu0 %v595
        %1669 = vmatprep.subr.bf16.mxu0 0
        %1670 = vmatpush1.bf16.msra.mxu0 %v596
        %1671 = vmatprep.subr.bf16.mxu0 0
        %1672 = vmatpush1.bf16.msra.mxu0 %v597
        %1673 = vmatprep.subr.bf16.mxu0 0
        %1674 = vmatpush1.bf16.msra.mxu0 %v598
        %1675 = vmatprep.mubr.bf16.mxu0 %v1628
        %1676 = vmatmul.mubr.bf16.gmra.mrb[0].mxu0 %v1627
        %v1677 = vpop.f32.mrb[0].mxu0
        %v1678 = vadd.f32 0.0, %v1677
        %v1679 = vpop.f32.mrb[0].mxu0
        %v1680 = vpop.f32.mrb[0].mxu0
        %v1681 = vadd.f32 0.0, %v1680
        %v1682 = vpop.f32.mrb[0].mxu0
        %1683 = vmatprep.mubr.bf16.mxu0 %v1630
        %1684 = vmatmul.mubr.bf16.gmra.mrb[0].mxu0 %v1629
        %v1685 = vpop.f32.mrb[0].mxu0
        %v1686 = vadd.f32 0.0, %v1685
        %v1687 = vpop.f32.mrb[0].mxu0
        %v1688 = vpop.f32.mrb[0].mxu0
        %v1689 = vadd.f32 0.0, %v1688
        %v1690 = vpop.f32.mrb[0].mxu0
        %1691 = vmatprep.mubr.bf16.mxu0 %v1632
        %1692 = vmatmul.mubr.bf16.gmra.mrb[0].mxu0 %v1631
        %v1693 = vpop.f32.mrb[0].mxu0
        %v1694 = vadd.f32 0.0, %v1693
        %v1695 = vpop.f32.mrb[0].mxu0
        %v1696 = vpop.f32.mrb[0].mxu0
        %v1697 = vadd.f32 0.0, %v1696
        %v1698 = vpop.f32.mrb[0].mxu0
        %1699 = vmatprep.mubr.bf16.mxu0 %v1634
        %1700 = vmatmul.mubr.bf16.gmra.mrb[0].mxu0 %v1633
        %v1701 = vpop.f32.mrb[0].mxu0
        %v1702 = vadd.f32 0.0, %v1701
        %v1703 = vpop.f32.mrb[0].mxu0
        %v1704 = vpop.f32.mrb[0].mxu0
        %v1705 = vadd.f32 0.0, %v1704
        %v1706 = vpop.f32.mrb[0].mxu0
        %1707 = vdwg.mxu0
        %v1708 = vpack.c.bf16 %v1681, %v1678
        %v1709 = vpack.c.bf16 %v1689, %v1686
        %v1710 = vpack.c.bf16 %v1697, %v1694
        %v1711 = vpack.c.bf16 %v1705, %v1702
        %s1712 = scalar_lea.vmem %s2, 10
        %v1713 = vld [vmem:[%s1712] sm:$0x3]
        %v1715 = vsel %vm805, %v1708, 0
        %v1718 = vsel %vm805, %v1709, 0
        %v1721 = vsel %vm805, %v1710, 0
        %v1724 = vsel %vm805, %v1711, 0
        %v1727 = vand.u32 %v1713, %v821
        %1729 = vmatprep.subr.bf16.mxu0 0
        %1730 = vmatpush1.bf16.msra.mxu0 %v1727
        %1731 = vmatprep.subr.bf16.mxu0 0
        %1732 = vmatpush1.bf16.msra.mxu0 0
        %1733 = vmatprep.subr.bf16.mxu0 0
        %1734 = vmatpush1.bf16.msra.mxu0 0
        %1735 = vmatprep.subr.bf16.mxu0 0
        %1736 = vmatpush1.bf16.msra.mxu0 0
        %1737 = vmatprep.subr.bf16.mxu0 0
        %1738 = vmatpush1.bf16.msra.mxu0 0
        %1739 = vmatprep.subr.bf16.mxu0 0
        %1740 = vmatpush1.bf16.msra.mxu0 0
        %1741 = vmatprep.subr.bf16.mxu0 0
        %1742 = vmatpush1.bf16.msra.mxu0 0
        %1743 = vmatprep.subr.bf16.mxu0 0
        %1744 = vmatpush1.bf16.msra.mxu0 0
        %1745 = vmatprep.subr.bf16.mxu0 0
        %1746 = vmatpush1.bf16.msra.mxu0 0
        %1747 = vmatprep.subr.bf16.mxu0 0
        %1748 = vmatpush1.bf16.msra.mxu0 0
        %1749 = vmatprep.subr.bf16.mxu0 0
        %1750 = vmatpush1.bf16.msra.mxu0 0
        %1751 = vmatprep.subr.bf16.mxu0 0
        %1752 = vmatpush1.bf16.msra.mxu0 0
        %1753 = vmatprep.subr.bf16.mxu0 0
        %1754 = vmatpush1.bf16.msra.mxu0 0
        %1755 = vmatprep.subr.bf16.mxu0 0
        %1756 = vmatpush1.bf16.msra.mxu0 0
        %1757 = vmatprep.subr.bf16.mxu0 0
        %1758 = vmatpush1.bf16.msra.mxu0 0
        %1759 = vmatprep.subr.bf16.mxu0 0
        %1760 = vmatpush1.bf16.msra.mxu0 0
        %1761 = vmatprep.mubr.bf16.mxu0 0
        %1762 = vmatmul.mubr.bf16.gmra.mrb[0].mxu0 %v1715
        %v1763 = vpop.f32.mrb[0].mxu0
        %v1764 = vadd.f32 0.0, %v1763
        %v1765 = vpop.f32.mrb[0].mxu0
        %v1766 = vpop.f32.mrb[0].mxu0
        %v1767 = vadd.f32 0.0, %v1766
        %v1768 = vpop.f32.mrb[0].mxu0
        %1769 = vmatprep.mubr.bf16.mxu0 0
        %1770 = vmatmul.mubr.bf16.gmra.mrb[0].mxu0 %v1718
        %v1771 = vpop.f32.mrb[0].mxu0
        %v1772 = vadd.f32 0.0, %v1771
        %v1773 = vpop.f32.mrb[0].mxu0
        %v1774 = vpop.f32.mrb[0].mxu0
        %v1775 = vadd.f32 0.0, %v1774
        %v1776 = vpop.f32.mrb[0].mxu0
        %1777 = vmatprep.mubr.bf16.mxu0 0
        %1778 = vmatmul.mubr.bf16.gmra.mrb[0].mxu0 %v1721
        %v1779 = vpop.f32.mrb[0].mxu0
        %v1780 = vadd.f32 0.0, %v1779
        %v1781 = vpop.f32.mrb[0].mxu0
        %v1782 = vpop.f32.mrb[0].mxu0
        %v1783 = vadd.f32 0.0, %v1782
        %v1784 = vpop.f32.mrb[0].mxu0
        %1785 = vmatprep.mubr.bf16.mxu0 0
        %1786 = vmatmul.mubr.bf16.gmra.mrb[0].mxu0 %v1724
        %v1787 = vpop.f32.mrb[0].mxu0
        %v1788 = vadd.f32 0.0, %v1787
        %v1789 = vpop.f32.mrb[0].mxu0
        %v1790 = vpop.f32.mrb[0].mxu0
        %v1791 = vadd.f32 0.0, %v1790
        %v1792 = vpop.f32.mrb[0].mxu0
        %1793 = vdwg.mxu0
        %v1794 = vadd.f32 %v1586, %v1764
        %v1795 = vadd.f32 %v1587, %v1767
        %v1796 = vadd.f32 %v1588, %v1772
        %v1797 = vadd.f32 %v1589, %v1775
        %v1798 = vadd.f32 %v1590, %v1780
        %v1799 = vadd.f32 %v1591, %v1783
        %v1800 = vadd.f32 %v1592, %v1788
        %v1801 = vadd.f32 %v1593, %v1791
        %s1802 = scalar_lea.vmem %s1, 384
        %v1803 = vld [vmem:[%s1802] sm:$0xff]
        %v1804 = vld [vmem:[%s1802 + $0x8] sm:$0xff]
        %v1805 = vld [vmem:[%s1802 + $0x10] sm:$0xff]
        %v1806 = vld [vmem:[%s1802 + $0x18] sm:$0xff]
        %v1807 = vld [vmem:[%s1802 + $0x20] sm:$0xff]
        %v1808 = vld [vmem:[%s1802 + $0x28] sm:$0xff]
        %v1809 = vld [vmem:[%s1802 + $0x30] sm:$0xff]
        %v1810 = vld [vmem:[%s1802 + $0x38] sm:$0xff]
        %v1819 = vunpack.c.l.b16 %v1803
        %v1820 = vunpack.c.h.b16 %v1803
        %v1821 = vunpack.c.l.b16 %v1804
        %v1822 = vunpack.c.h.b16 %v1804
        %v1823 = vunpack.c.l.b16 %v1805
        %v1824 = vunpack.c.h.b16 %v1805
        %v1825 = vunpack.c.l.b16 %v1806
        %v1826 = vunpack.c.h.b16 %v1806
        %v1827 = vunpack.c.l.b16 %v1807
        %v1828 = vunpack.c.h.b16 %v1807
        %v1829 = vunpack.c.l.b16 %v1808
        %v1830 = vunpack.c.h.b16 %v1808
        %v1831 = vunpack.c.l.b16 %v1809
        %v1832 = vunpack.c.h.b16 %v1809
        %v1833 = vunpack.c.l.b16 %v1810
        %v1834 = vunpack.c.h.b16 %v1810
        %v1835 = vpack.c.b16 %v1821, %v1819
        %v1836 = vpack.c.b16 %v1822, %v1820
        %v1837 = vpack.c.b16 %v1825, %v1823
        %v1838 = vpack.c.b16 %v1826, %v1824
        %v1839 = vpack.c.b16 %v1829, %v1827
        %v1840 = vpack.c.b16 %v1830, %v1828
        %v1841 = vpack.c.b16 %v1833, %v1831
        %v1842 = vpack.c.b16 %v1834, %v1832
        %1851 = vmatprep.subr.bf16.mxu0 0
        %1852 = vmatpush1.bf16.msra.mxu0 %v583
        %1853 = vmatprep.subr.bf16.mxu0 0
        %1854 = vmatpush1.bf16.msra.mxu0 %v584
        %1855 = vmatprep.subr.bf16.mxu0 0
        %1856 = vmatpush1.bf16.msra.mxu0 %v585
        %1857 = vmatprep.subr.bf16.mxu0 0
        %1858 = vmatpush1.bf16.msra.mxu0 %v586
        %1859 = vmatprep.subr.bf16.mxu0 0
        %1860 = vmatpush1.bf16.msra.mxu0 %v587
        %1861 = vmatprep.subr.bf16.mxu0 0
        %1862 = vmatpush1.bf16.msra.mxu0 %v588
        %1863 = vmatprep.subr.bf16.mxu0 0
        %1864 = vmatpush1.bf16.msra.mxu0 %v589
        %1865 = vmatprep.subr.bf16.mxu0 0
        %1866 = vmatpush1.bf16.msra.mxu0 %v590
        %1867 = vmatprep.subr.bf16.mxu0 0
        %1868 = vmatpush1.bf16.msra.mxu0 %v591
        %1869 = vmatprep.subr.bf16.mxu0 0
        %1870 = vmatpush1.bf16.msra.mxu0 %v592
        %1871 = vmatprep.subr.bf16.mxu0 0
        %1872 = vmatpush1.bf16.msra.mxu0 %v593
        %1873 = vmatprep.subr.bf16.mxu0 0
        %1874 = vmatpush1.bf16.msra.mxu0 %v594
        %1875 = vmatprep.subr.bf16.mxu0 0
        %1876 = vmatpush1.bf16.msra.mxu0 %v595
        %1877 = vmatprep.subr.bf16.mxu0 0
        %1878 = vmatpush1.bf16.msra.mxu0 %v596
        %1879 = vmatprep.subr.bf16.mxu0 0
        %1880 = vmatpush1.bf16.msra.mxu0 %v597
        %1881 = vmatprep.subr.bf16.mxu0 0
        %1882 = vmatpush1.bf16.msra.mxu0 %v598
        %1883 = vmatprep.mubr.bf16.mxu0 %v1836
        %1884 = vmatmul.mubr.bf16.gmra.mrb[0].mxu0 %v1835
        %v1885 = vpop.f32.mrb[0].mxu0
        %v1886 = vadd.f32 0.0, %v1885
        %v1887 = vpop.f32.mrb[0].mxu0
        %v1888 = vpop.f32.mrb[0].mxu0
        %v1889 = vadd.f32 0.0, %v1888
        %v1890 = vpop.f32.mrb[0].mxu0
        %1891 = vmatprep.mubr.bf16.mxu0 %v1838
        %1892 = vmatmul.mubr.bf16.gmra.mrb[0].mxu0 %v1837
        %v1893 = vpop.f32.mrb[0].mxu0
        %v1894 = vadd.f32 0.0, %v1893
        %v1895 = vpop.f32.mrb[0].mxu0
        %v1896 = vpop.f32.mrb[0].mxu0
        %v1897 = vadd.f32 0.0, %v1896
        %v1898 = vpop.f32.mrb[0].mxu0
        %1899 = vmatprep.mubr.bf16.mxu0 %v1840
        %1900 = vmatmul.mubr.bf16.gmra.mrb[0].mxu0 %v1839
        %v1901 = vpop.f32.mrb[0].mxu0
        %v1902 = vadd.f32 0.0, %v1901
        %v1903 = vpop.f32.mrb[0].mxu0
        %v1904 = vpop.f32.mrb[0].mxu0
        %v1905 = vadd.f32 0.0, %v1904
        %v1906 = vpop.f32.mrb[0].mxu0
        %1907 = vmatprep.mubr.bf16.mxu0 %v1842
        %1908 = vmatmul.mubr.bf16.gmra.mrb[0].mxu0 %v1841
        %v1909 = vpop.f32.mrb[0].mxu0
        %v1910 = vadd.f32 0.0, %v1909
        %v1911 = vpop.f32.mrb[0].mxu0
        %v1912 = vpop.f32.mrb[0].mxu0
        %v1913 = vadd.f32 0.0, %v1912
        %v1914 = vpop.f32.mrb[0].mxu0
        %1915 = vdwg.mxu0
        %v1916 = vpack.c.bf16 %v1889, %v1886
        %v1917 = vpack.c.bf16 %v1897, %v1894
        %v1918 = vpack.c.bf16 %v1905, %v1902
        %v1919 = vpack.c.bf16 %v1913, %v1910
        %s1920 = scalar_lea.vmem %s2, 12
        %v1921 = vld [vmem:[%s1920] sm:$0x3]
        %v1923 = vsel %vm805, %v1916, 0
        %v1926 = vsel %vm805, %v1917, 0
        %v1929 = vsel %vm805, %v1918, 0
        %v1932 = vsel %vm805, %v1919, 0
        %v1935 = vand.u32 %v1921, %v821
        %1937 = vmatprep.subr.bf16.mxu0 0
        %1938 = vmatpush1.bf16.msra.mxu0 %v1935
        %1939 = vmatprep.subr.bf16.mxu0 0
        %1940 = vmatpush1.bf16.msra.mxu0 0
        %1941 = vmatprep.subr.bf16.mxu0 0
        %1942 = vmatpush1.bf16.msra.mxu0 0
        %1943 = vmatprep.subr.bf16.mxu0 0
        %1944 = vmatpush1.bf16.msra.mxu0 0
        %1945 = vmatprep.subr.bf16.mxu0 0
        %1946 = vmatpush1.bf16.msra.mxu0 0
        %1947 = vmatprep.subr.bf16.mxu0 0
        %1948 = vmatpush1.bf16.msra.mxu0 0
        %1949 = vmatprep.subr.bf16.mxu0 0
        %1950 = vmatpush1.bf16.msra.mxu0 0
        %1951 = vmatprep.subr.bf16.mxu0 0
        %1952 = vmatpush1.bf16.msra.mxu0 0
        %1953 = vmatprep.subr.bf16.mxu0 0
        %1954 = vmatpush1.bf16.msra.mxu0 0
        %1955 = vmatprep.subr.bf16.mxu0 0
        %1956 = vmatpush1.bf16.msra.mxu0 0
        %1957 = vmatprep.subr.bf16.mxu0 0
        %1958 = vmatpush1.bf16.msra.mxu0 0
        %1959 = vmatprep.subr.bf16.mxu0 0
        %1960 = vmatpush1.bf16.msra.mxu0 0
        %1961 = vmatprep.subr.bf16.mxu0 0
        %1962 = vmatpush1.bf16.msra.mxu0 0
        %1963 = vmatprep.subr.bf16.mxu0 0
        %1964 = vmatpush1.bf16.msra.mxu0 0
        %1965 = vmatprep.subr.bf16.mxu0 0
        %1966 = vmatpush1.bf16.msra.mxu0 0
        %1967 = vmatprep.subr.bf16.mxu0 0
        %1968 = vmatpush1.bf16.msra.mxu0 0
        %1969 = vmatprep.mubr.bf16.mxu0 0
        %1970 = vmatmul.mubr.bf16.gmra.mrb[0].mxu0 %v1923
        %v1971 = vpop.f32.mrb[0].mxu0
        %v1972 = vadd.f32 0.0, %v1971
        %v1973 = vpop.f32.mrb[0].mxu0
        %v1974 = vpop.f32.mrb[0].mxu0
        %v1975 = vadd.f32 0.0, %v1974
        %v1976 = vpop.f32.mrb[0].mxu0
        %1977 = vmatprep.mubr.bf16.mxu0 0
        %1978 = vmatmul.mubr.bf16.gmra.mrb[0].mxu0 %v1926
        %v1979 = vpop.f32.mrb[0].mxu0
        %v1980 = vadd.f32 0.0, %v1979
        %v1981 = vpop.f32.mrb[0].mxu0
        %v1982 = vpop.f32.mrb[0].mxu0
        %v1983 = vadd.f32 0.0, %v1982
        %v1984 = vpop.f32.mrb[0].mxu0
        %1985 = vmatprep.mubr.bf16.mxu0 0
        %1986 = vmatmul.mubr.bf16.gmra.mrb[0].mxu0 %v1929
        %v1987 = vpop.f32.mrb[0].mxu0
        %v1988 = vadd.f32 0.0, %v1987
        %v1989 = vpop.f32.mrb[0].mxu0
        %v1990 = vpop.f32.mrb[0].mxu0
        %v1991 = vadd.f32 0.0, %v1990
        %v1992 = vpop.f32.mrb[0].mxu0
        %1993 = vmatprep.mubr.bf16.mxu0 0
        %1994 = vmatmul.mubr.bf16.gmra.mrb[0].mxu0 %v1932
        %v1995 = vpop.f32.mrb[0].mxu0
        %v1996 = vadd.f32 0.0, %v1995
        %v1997 = vpop.f32.mrb[0].mxu0
        %v1998 = vpop.f32.mrb[0].mxu0
        %v1999 = vadd.f32 0.0, %v1998
        %v2000 = vpop.f32.mrb[0].mxu0
        %2001 = vdwg.mxu0
        %v2002 = vadd.f32 %v1794, %v1972
        %v2003 = vadd.f32 %v1795, %v1975
        %v2004 = vadd.f32 %v1796, %v1980
        %v2005 = vadd.f32 %v1797, %v1983
        %v2006 = vadd.f32 %v1798, %v1988
        %v2007 = vadd.f32 %v1799, %v1991
        %v2008 = vadd.f32 %v1800, %v1996
        %v2009 = vadd.f32 %v1801, %v1999
        %s2010 = scalar_lea.vmem %s1, 448
        %v2011 = vld [vmem:[%s2010] sm:$0xff]
        %v2012 = vld [vmem:[%s2010 + $0x8] sm:$0xff]
        %v2013 = vld [vmem:[%s2010 + $0x10] sm:$0xff]
        %v2014 = vld [vmem:[%s2010 + $0x18] sm:$0xff]
        %v2015 = vld [vmem:[%s2010 + $0x20] sm:$0xff]
        %v2016 = vld [vmem:[%s2010 + $0x28] sm:$0xff]
        %v2017 = vld [vmem:[%s2010 + $0x30] sm:$0xff]
        %v2018 = vld [vmem:[%s2010 + $0x38] sm:$0xff]
        %v2027 = vunpack.c.l.b16 %v2011
        %v2028 = vunpack.c.h.b16 %v2011
        %v2029 = vunpack.c.l.b16 %v2012
        %v2030 = vunpack.c.h.b16 %v2012
        %v2031 = vunpack.c.l.b16 %v2013
        %v2032 = vunpack.c.h.b16 %v2013
        %v2033 = vunpack.c.l.b16 %v2014
        %v2034 = vunpack.c.h.b16 %v2014
        %v2035 = vunpack.c.l.b16 %v2015
        %v2036 = vunpack.c.h.b16 %v2015
        %v2037 = vunpack.c.l.b16 %v2016
        %v2038 = vunpack.c.h.b16 %v2016
        %v2039 = vunpack.c.l.b16 %v2017
        %v2040 = vunpack.c.h.b16 %v2017
        %v2041 = vunpack.c.l.b16 %v2018
        %v2042 = vunpack.c.h.b16 %v2018
        %v2043 = vpack.c.b16 %v2029, %v2027
        %v2044 = vpack.c.b16 %v2030, %v2028
        %v2045 = vpack.c.b16 %v2033, %v2031
        %v2046 = vpack.c.b16 %v2034, %v2032
        %v2047 = vpack.c.b16 %v2037, %v2035
        %v2048 = vpack.c.b16 %v2038, %v2036
        %v2049 = vpack.c.b16 %v2041, %v2039
        %v2050 = vpack.c.b16 %v2042, %v2040
        %2059 = vmatprep.subr.bf16.mxu0 0
        %2060 = vmatpush1.bf16.msra.mxu0 %v583
        %2061 = vmatprep.subr.bf16.mxu0 0
        %2062 = vmatpush1.bf16.msra.mxu0 %v584
        %2063 = vmatprep.subr.bf16.mxu0 0
        %2064 = vmatpush1.bf16.msra.mxu0 %v585
        %2065 = vmatprep.subr.bf16.mxu0 0
        %2066 = vmatpush1.bf16.msra.mxu0 %v586
        %2067 = vmatprep.subr.bf16.mxu0 0
        %2068 = vmatpush1.bf16.msra.mxu0 %v587
        %2069 = vmatprep.subr.bf16.mxu0 0
        %2070 = vmatpush1.bf16.msra.mxu0 %v588
        %2071 = vmatprep.subr.bf16.mxu0 0
        %2072 = vmatpush1.bf16.msra.mxu0 %v589
        %2073 = vmatprep.subr.bf16.mxu0 0
        %2074 = vmatpush1.bf16.msra.mxu0 %v590
        %2075 = vmatprep.subr.bf16.mxu0 0
        %2076 = vmatpush1.bf16.msra.mxu0 %v591
        %2077 = vmatprep.subr.bf16.mxu0 0
        %2078 = vmatpush1.bf16.msra.mxu0 %v592
        %2079 = vmatprep.subr.bf16.mxu0 0
        %2080 = vmatpush1.bf16.msra.mxu0 %v593
        %2081 = vmatprep.subr.bf16.mxu0 0
        %2082 = vmatpush1.bf16.msra.mxu0 %v594
        %2083 = vmatprep.subr.bf16.mxu0 0
        %2084 = vmatpush1.bf16.msra.mxu0 %v595
        %2085 = vmatprep.subr.bf16.mxu0 0
        %2086 = vmatpush1.bf16.msra.mxu0 %v596
        %2087 = vmatprep.subr.bf16.mxu0 0
        %2088 = vmatpush1.bf16.msra.mxu0 %v597
        %2089 = vmatprep.subr.bf16.mxu0 0
        %2090 = vmatpush1.bf16.msra.mxu0 %v598
        %2091 = vmatprep.mubr.bf16.mxu0 %v2044
        %2092 = vmatmul.mubr.bf16.gmra.mrb[0].mxu0 %v2043
        %v2093 = vpop.f32.mrb[0].mxu0
        %v2094 = vadd.f32 0.0, %v2093
        %v2095 = vpop.f32.mrb[0].mxu0
        %v2096 = vpop.f32.mrb[0].mxu0
        %v2097 = vadd.f32 0.0, %v2096
        %v2098 = vpop.f32.mrb[0].mxu0
        %2099 = vmatprep.mubr.bf16.mxu0 %v2046
        %2100 = vmatmul.mubr.bf16.gmra.mrb[0].mxu0 %v2045
        %v2101 = vpop.f32.mrb[0].mxu0
        %v2102 = vadd.f32 0.0, %v2101
        %v2103 = vpop.f32.mrb[0].mxu0
        %v2104 = vpop.f32.mrb[0].mxu0
        %v2105 = vadd.f32 0.0, %v2104
        %v2106 = vpop.f32.mrb[0].mxu0
        %2107 = vmatprep.mubr.bf16.mxu0 %v2048
        %2108 = vmatmul.mubr.bf16.gmra.mrb[0].mxu0 %v2047
        %v2109 = vpop.f32.mrb[0].mxu0
        %v2110 = vadd.f32 0.0, %v2109
        %v2111 = vpop.f32.mrb[0].mxu0
        %v2112 = vpop.f32.mrb[0].mxu0
        %v2113 = vadd.f32 0.0, %v2112
        %v2114 = vpop.f32.mrb[0].mxu0
        %2115 = vmatprep.mubr.bf16.mxu0 %v2050
        %2116 = vmatmul.mubr.bf16.gmra.mrb[0].mxu0 %v2049
        %v2117 = vpop.f32.mrb[0].mxu0
        %v2118 = vadd.f32 0.0, %v2117
        %v2119 = vpop.f32.mrb[0].mxu0
        %v2120 = vpop.f32.mrb[0].mxu0
        %v2121 = vadd.f32 0.0, %v2120
        %v2122 = vpop.f32.mrb[0].mxu0
        %2123 = vdwg.mxu0
        %v2124 = vpack.c.bf16 %v2097, %v2094
        %v2125 = vpack.c.bf16 %v2105, %v2102
        %v2126 = vpack.c.bf16 %v2113, %v2110
        %v2127 = vpack.c.bf16 %v2121, %v2118
        %s2128 = scalar_lea.vmem %s2, 14
        %v2129 = vld [vmem:[%s2128] sm:$0x3]
        %v2131 = vsel %vm805, %v2124, 0
        %v2134 = vsel %vm805, %v2125, 0
        %v2137 = vsel %vm805, %v2126, 0
        %v2140 = vsel %vm805, %v2127, 0
        %v2143 = vand.u32 %v2129, %v821
        %2145 = vmatprep.subr.bf16.mxu0 0
        %2146 = vmatpush1.bf16.msra.mxu0 %v2143
        %2147 = vmatprep.subr.bf16.mxu0 0
        %2148 = vmatpush1.bf16.msra.mxu0 0
        %2149 = vmatprep.subr.bf16.mxu0 0
        %2150 = vmatpush1.bf16.msra.mxu0 0
        %2151 = vmatprep.subr.bf16.mxu0 0
        %2152 = vmatpush1.bf16.msra.mxu0 0
        %2153 = vmatprep.subr.bf16.mxu0 0
        %2154 = vmatpush1.bf16.msra.mxu0 0
        %2155 = vmatprep.subr.bf16.mxu0 0
        %2156 = vmatpush1.bf16.msra.mxu0 0
        %2157 = vmatprep.subr.bf16.mxu0 0
        %2158 = vmatpush1.bf16.msra.mxu0 0
        %2159 = vmatprep.subr.bf16.mxu0 0
        %2160 = vmatpush1.bf16.msra.mxu0 0
        %2161 = vmatprep.subr.bf16.mxu0 0
        %2162 = vmatpush1.bf16.msra.mxu0 0
        %2163 = vmatprep.subr.bf16.mxu0 0
        %2164 = vmatpush1.bf16.msra.mxu0 0
        %2165 = vmatprep.subr.bf16.mxu0 0
        %2166 = vmatpush1.bf16.msra.mxu0 0
        %2167 = vmatprep.subr.bf16.mxu0 0
        %2168 = vmatpush1.bf16.msra.mxu0 0
        %2169 = vmatprep.subr.bf16.mxu0 0
        %2170 = vmatpush1.bf16.msra.mxu0 0
        %2171 = vmatprep.subr.bf16.mxu0 0
        %2172 = vmatpush1.bf16.msra.mxu0 0
        %2173 = vmatprep.subr.bf16.mxu0 0
        %2174 = vmatpush1.bf16.msra.mxu0 0
        %2175 = vmatprep.subr.bf16.mxu0 0
        %2176 = vmatpush1.bf16.msra.mxu0 0
        %2177 = vmatprep.mubr.bf16.mxu0 0
        %2178 = vmatmul.mubr.bf16.gmra.mrb[0].mxu0 %v2131
        %v2179 = vpop.f32.mrb[0].mxu0
        %v2180 = vadd.f32 0.0, %v2179
        %v2181 = vpop.f32.mrb[0].mxu0
        %v2182 = vpop.f32.mrb[0].mxu0
        %v2183 = vadd.f32 0.0, %v2182
        %v2184 = vpop.f32.mrb[0].mxu0
        %2185 = vmatprep.mubr.bf16.mxu0 0
        %2186 = vmatmul.mubr.bf16.gmra.mrb[0].mxu0 %v2134
        %v2187 = vpop.f32.mrb[0].mxu0
        %v2188 = vadd.f32 0.0, %v2187
        %v2189 = vpop.f32.mrb[0].mxu0
        %v2190 = vpop.f32.mrb[0].mxu0
        %v2191 = vadd.f32 0.0, %v2190
        %v2192 = vpop.f32.mrb[0].mxu0
        %2193 = vmatprep.mubr.bf16.mxu0 0
        %2194 = vmatmul.mubr.bf16.gmra.mrb[0].mxu0 %v2137
        %v2195 = vpop.f32.mrb[0].mxu0
        %v2196 = vadd.f32 0.0, %v2195
        %v2197 = vpop.f32.mrb[0].mxu0
        %v2198 = vpop.f32.mrb[0].mxu0
        %v2199 = vadd.f32 0.0, %v2198
        %v2200 = vpop.f32.mrb[0].mxu0
        %2201 = vmatprep.mubr.bf16.mxu0 0
        %2202 = vmatmul.mubr.bf16.gmra.mrb[0].mxu0 %v2140
        %v2203 = vpop.f32.mrb[0].mxu0
        %v2204 = vadd.f32 0.0, %v2203
        %v2205 = vpop.f32.mrb[0].mxu0
        %v2206 = vpop.f32.mrb[0].mxu0
        %v2207 = vadd.f32 0.0, %v2206
        %v2208 = vpop.f32.mrb[0].mxu0
        %2209 = vdwg.mxu0
        %v2210 = vadd.f32 %v2002, %v2180
        %v2211 = vadd.f32 %v2003, %v2183
        %v2212 = vadd.f32 %v2004, %v2188
        %v2213 = vadd.f32 %v2005, %v2191
        %v2214 = vadd.f32 %v2006, %v2196
        %v2215 = vadd.f32 %v2007, %v2199
        %v2216 = vadd.f32 %v2008, %v2204
        %v2217 = vadd.f32 %v2009, %v2207
        %s2218 = scalar_lea.vmem %s1, 512
        %v2219 = vld [vmem:[%s2218] sm:$0xff]
        %v2220 = vld [vmem:[%s2218 + $0x8] sm:$0xff]
        %v2221 = vld [vmem:[%s2218 + $0x10] sm:$0xff]
        %v2222 = vld [vmem:[%s2218 + $0x18] sm:$0xff]
        %v2223 = vld [vmem:[%s2218 + $0x20] sm:$0xff]
        %v2224 = vld [vmem:[%s2218 + $0x28] sm:$0xff]
        %v2225 = vld [vmem:[%s2218 + $0x30] sm:$0xff]
        %v2226 = vld [vmem:[%s2218 + $0x38] sm:$0xff]
        %v2235 = vunpack.c.l.b16 %v2219
        %v2236 = vunpack.c.h.b16 %v2219
        %v2237 = vunpack.c.l.b16 %v2220
        %v2238 = vunpack.c.h.b16 %v2220
        %v2239 = vunpack.c.l.b16 %v2221
        %v2240 = vunpack.c.h.b16 %v2221
        %v2241 = vunpack.c.l.b16 %v2222
        %v2242 = vunpack.c.h.b16 %v2222
        %v2243 = vunpack.c.l.b16 %v2223
        %v2244 = vunpack.c.h.b16 %v2223
        %v2245 = vunpack.c.l.b16 %v2224
        %v2246 = vunpack.c.h.b16 %v2224
        %v2247 = vunpack.c.l.b16 %v2225
        %v2248 = vunpack.c.h.b16 %v2225
        %v2249 = vunpack.c.l.b16 %v2226
        %v2250 = vunpack.c.h.b16 %v2226
        %v2251 = vpack.c.b16 %v2237, %v2235
        %v2252 = vpack.c.b16 %v2238, %v2236
        %v2253 = vpack.c.b16 %v2241, %v2239
        %v2254 = vpack.c.b16 %v2242, %v2240
        %v2255 = vpack.c.b16 %v2245, %v2243
        %v2256 = vpack.c.b16 %v2246, %v2244
        %v2257 = vpack.c.b16 %v2249, %v2247
        %v2258 = vpack.c.b16 %v2250, %v2248
        %2267 = vmatprep.subr.bf16.mxu0 0
        %2268 = vmatpush1.bf16.msra.mxu0 %v583
        %2269 = vmatprep.subr.bf16.mxu0 0
        %2270 = vmatpush1.bf16.msra.mxu0 %v584
        %2271 = vmatprep.subr.bf16.mxu0 0
        %2272 = vmatpush1.bf16.msra.mxu0 %v585
        %2273 = vmatprep.subr.bf16.mxu0 0
        %2274 = vmatpush1.bf16.msra.mxu0 %v586
        %2275 = vmatprep.subr.bf16.mxu0 0
        %2276 = vmatpush1.bf16.msra.mxu0 %v587
        %2277 = vmatprep.subr.bf16.mxu0 0
        %2278 = vmatpush1.bf16.msra.mxu0 %v588
        %2279 = vmatprep.subr.bf16.mxu0 0
        %2280 = vmatpush1.bf16.msra.mxu0 %v589
        %2281 = vmatprep.subr.bf16.mxu0 0
        %2282 = vmatpush1.bf16.msra.mxu0 %v590
        %2283 = vmatprep.subr.bf16.mxu0 0
        %2284 = vmatpush1.bf16.msra.mxu0 %v591
        %2285 = vmatprep.subr.bf16.mxu0 0
        %2286 = vmatpush1.bf16.msra.mxu0 %v592
        %2287 = vmatprep.subr.bf16.mxu0 0
        %2288 = vmatpush1.bf16.msra.mxu0 %v593
        %2289 = vmatprep.subr.bf16.mxu0 0
        %2290 = vmatpush1.bf16.msra.mxu0 %v594
        %2291 = vmatprep.subr.bf16.mxu0 0
        %2292 = vmatpush1.bf16.msra.mxu0 %v595
        %2293 = vmatprep.subr.bf16.mxu0 0
        %2294 = vmatpush1.bf16.msra.mxu0 %v596
        %2295 = vmatprep.subr.bf16.mxu0 0
        %2296 = vmatpush1.bf16.msra.mxu0 %v597
        %2297 = vmatprep.subr.bf16.mxu0 0
        %2298 = vmatpush1.bf16.msra.mxu0 %v598
        %2299 = vmatprep.mubr.bf16.mxu0 %v2252
        %2300 = vmatmul.mubr.bf16.gmra.mrb[0].mxu0 %v2251
        %v2301 = vpop.f32.mrb[0].mxu0
        %v2302 = vadd.f32 0.0, %v2301
        %v2303 = vpop.f32.mrb[0].mxu0
        %v2304 = vpop.f32.mrb[0].mxu0
        %v2305 = vadd.f32 0.0, %v2304
        %v2306 = vpop.f32.mrb[0].mxu0
        %2307 = vmatprep.mubr.bf16.mxu0 %v2254
        %2308 = vmatmul.mubr.bf16.gmra.mrb[0].mxu0 %v2253
        %v2309 = vpop.f32.mrb[0].mxu0
        %v2310 = vadd.f32 0.0, %v2309
        %v2311 = vpop.f32.mrb[0].mxu0
        %v2312 = vpop.f32.mrb[0].mxu0
        %v2313 = vadd.f32 0.0, %v2312
        %v2314 = vpop.f32.mrb[0].mxu0
        %2315 = vmatprep.mubr.bf16.mxu0 %v2256
        %2316 = vmatmul.mubr.bf16.gmra.mrb[0].mxu0 %v2255
        %v2317 = vpop.f32.mrb[0].mxu0
        %v2318 = vadd.f32 0.0, %v2317
        %v2319 = vpop.f32.mrb[0].mxu0
        %v2320 = vpop.f32.mrb[0].mxu0
        %v2321 = vadd.f32 0.0, %v2320
        %v2322 = vpop.f32.mrb[0].mxu0
        %2323 = vmatprep.mubr.bf16.mxu0 %v2258
        %2324 = vmatmul.mubr.bf16.gmra.mrb[0].mxu0 %v2257
        %v2325 = vpop.f32.mrb[0].mxu0
        %v2326 = vadd.f32 0.0, %v2325
        %v2327 = vpop.f32.mrb[0].mxu0
        %v2328 = vpop.f32.mrb[0].mxu0
        %v2329 = vadd.f32 0.0, %v2328
        %v2330 = vpop.f32.mrb[0].mxu0
        %2331 = vdwg.mxu0
        %v2332 = vpack.c.bf16 %v2305, %v2302
        %v2333 = vpack.c.bf16 %v2313, %v2310
        %v2334 = vpack.c.bf16 %v2321, %v2318
        %v2335 = vpack.c.bf16 %v2329, %v2326
        %s2336 = scalar_lea.vmem %s2, 16
        %v2337 = vld [vmem:[%s2336] sm:$0x3]
        %v2339 = vsel %vm805, %v2332, 0
        %v2342 = vsel %vm805, %v2333, 0
        %v2345 = vsel %vm805, %v2334, 0
        %v2348 = vsel %vm805, %v2335, 0
        %v2351 = vand.u32 %v2337, %v821
        %2353 = vmatprep.subr.bf16.mxu0 0
        %2354 = vmatpush1.bf16.msra.mxu0 %v2351
        %2355 = vmatprep.subr.bf16.mxu0 0
        %2356 = vmatpush1.bf16.msra.mxu0 0
        %2357 = vmatprep.subr.bf16.mxu0 0
        %2358 = vmatpush1.bf16.msra.mxu0 0
        %2359 = vmatprep.subr.bf16.mxu0 0
        %2360 = vmatpush1.bf16.msra.mxu0 0
        %2361 = vmatprep.subr.bf16.mxu0 0
        %2362 = vmatpush1.bf16.msra.mxu0 0
        %2363 = vmatprep.subr.bf16.mxu0 0
        %2364 = vmatpush1.bf16.msra.mxu0 0
        %2365 = vmatprep.subr.bf16.mxu0 0
        %2366 = vmatpush1.bf16.msra.mxu0 0
        %2367 = vmatprep.subr.bf16.mxu0 0
        %2368 = vmatpush1.bf16.msra.mxu0 0
        %2369 = vmatprep.subr.bf16.mxu0 0
        %2370 = vmatpush1.bf16.msra.mxu0 0
        %2371 = vmatprep.subr.bf16.mxu0 0
        %2372 = vmatpush1.bf16.msra.mxu0 0
        %2373 = vmatprep.subr.bf16.mxu0 0
        %2374 = vmatpush1.bf16.msra.mxu0 0
        %2375 = vmatprep.subr.bf16.mxu0 0
        %2376 = vmatpush1.bf16.msra.mxu0 0
        %2377 = vmatprep.subr.bf16.mxu0 0
        %2378 = vmatpush1.bf16.msra.mxu0 0
        %2379 = vmatprep.subr.bf16.mxu0 0
        %2380 = vmatpush1.bf16.msra.mxu0 0
        %2381 = vmatprep.subr.bf16.mxu0 0
        %2382 = vmatpush1.bf16.msra.mxu0 0
        %2383 = vmatprep.subr.bf16.mxu0 0
        %2384 = vmatpush1.bf16.msra.mxu0 0
        %2385 = vmatprep.mubr.bf16.mxu0 0
        %2386 = vmatmul.mubr.bf16.gmra.mrb[0].mxu0 %v2339
        %v2387 = vpop.f32.mrb[0].mxu0
        %v2388 = vadd.f32 0.0, %v2387
        %v2389 = vpop.f32.mrb[0].mxu0
        %v2390 = vpop.f32.mrb[0].mxu0
        %v2391 = vadd.f32 0.0, %v2390
        %v2392 = vpop.f32.mrb[0].mxu0
        %2393 = vmatprep.mubr.bf16.mxu0 0
        %2394 = vmatmul.mubr.bf16.gmra.mrb[0].mxu0 %v2342
        %v2395 = vpop.f32.mrb[0].mxu0
        %v2396 = vadd.f32 0.0, %v2395
        %v2397 = vpop.f32.mrb[0].mxu0
        %v2398 = vpop.f32.mrb[0].mxu0
        %v2399 = vadd.f32 0.0, %v2398
        %v2400 = vpop.f32.mrb[0].mxu0
        %2401 = vmatprep.mubr.bf16.mxu0 0
        %2402 = vmatmul.mubr.bf16.gmra.mrb[0].mxu0 %v2345
        %v2403 = vpop.f32.mrb[0].mxu0
        %v2404 = vadd.f32 0.0, %v2403
        %v2405 = vpop.f32.mrb[0].mxu0
        %v2406 = vpop.f32.mrb[0].mxu0
        %v2407 = vadd.f32 0.0, %v2406
        %v2408 = vpop.f32.mrb[0].mxu0
        %2409 = vmatprep.mubr.bf16.mxu0 0
        %2410 = vmatmul.mubr.bf16.gmra.mrb[0].mxu0 %v2348
        %v2411 = vpop.f32.mrb[0].mxu0
        %v2412 = vadd.f32 0.0, %v2411
        %v2413 = vpop.f32.mrb[0].mxu0
        %v2414 = vpop.f32.mrb[0].mxu0
        %v2415 = vadd.f32 0.0, %v2414
        %v2416 = vpop.f32.mrb[0].mxu0
        %2417 = vdwg.mxu0
        %v2418 = vadd.f32 %v2210, %v2388
        %v2419 = vadd.f32 %v2211, %v2391
        %v2420 = vadd.f32 %v2212, %v2396
        %v2421 = vadd.f32 %v2213, %v2399
        %v2422 = vadd.f32 %v2214, %v2404
        %v2423 = vadd.f32 %v2215, %v2407
        %v2424 = vadd.f32 %v2216, %v2412
        %v2425 = vadd.f32 %v2217, %v2415
        %v2426 = vld [vmem:[%s3] sm:$0x1]
        %v2428 = vlaneseq
        %v2429 = vshrl.u32 %v2428, 7
        %v2430 = vsub.s32 0, %v2429
        %v2431 = vrot.slane %v2426, %v2430
        %v2433 = vadd.f32 %v2418, %v2431
        %v2434 = vadd.f32 %v2419, %v2431
        %v2435 = vadd.f32 %v2420, %v2431
        %v2436 = vadd.f32 %v2421, %v2431
        %v2437 = vadd.f32 %v2422, %v2431
        %v2438 = vadd.f32 %v2423, %v2431
        %v2439 = vadd.f32 %v2424, %v2431
        %v2440 = vadd.f32 %v2425, %v2431
        %v2441 = vmax.f32 %v2433, 0.0
        %v2442 = vmax.f32 %v2434, 0.0
        %v2443 = vmax.f32 %v2435, 0.0
        %v2444 = vmax.f32 %v2436, 0.0
        %v2445 = vmax.f32 %v2437, 0.0
        %v2446 = vmax.f32 %v2438, 0.0
        %v2447 = vmax.f32 %v2439, 0.0
        %v2448 = vmax.f32 %v2440, 0.0
        %v2449 = vpack.c.bf16 %v2442, %v2441
        %v2450 = vpack.c.bf16 %v2444, %v2443
        %v2451 = vpack.c.bf16 %v2446, %v2445
        %v2452 = vpack.c.bf16 %v2448, %v2447
        %v2453 = vld [vmem:[%s4] sm:$0xf]
        %v2454 = vld [vmem:[%s4 + $0x4] sm:$0xf]
        %v2457 = vunpack.c.l.b16 %v2453
        %v2458 = vunpack.c.l.b16 %v2454
        %v2459 = vpack.c.b16 %v2458, %v2457
        %vm2460 = vcmask 523264
        %v2462 = vsel %vm2460, %v2459, 0
        %2464 = vmatprep.subr.bf16.mxu0 0
        %2465 = vmatpush1.bf16.msra.mxu0 %v2449
        %2466 = vmatprep.subr.bf16.mxu0 0
        %2467 = vmatpush1.bf16.msra.mxu0 %v2450
        %2468 = vmatprep.subr.bf16.mxu0 0
        %2469 = vmatpush1.bf16.msra.mxu0 %v2451
        %2470 = vmatprep.subr.bf16.mxu0 0
        %2471 = vmatpush1.bf16.msra.mxu0 %v2452
        %2472 = vmatprep.subr.bf16.mxu0 0
        %2473 = vmatpush1.bf16.msra.mxu0 0
        %2474 = vmatprep.subr.bf16.mxu0 0
        %2475 = vmatpush1.bf16.msra.mxu0 0
        %2476 = vmatprep.subr.bf16.mxu0 0
        %2477 = vmatpush1.bf16.msra.mxu0 0
        %2478 = vmatprep.subr.bf16.mxu0 0
        %2479 = vmatpush1.bf16.msra.mxu0 0
        %2480 = vmatprep.subr.bf16.mxu0 0
        %2481 = vmatpush1.bf16.msra.mxu0 0
        %2482 = vmatprep.subr.bf16.mxu0 0
        %2483 = vmatpush1.bf16.msra.mxu0 0
        %2484 = vmatprep.subr.bf16.mxu0 0
        %2485 = vmatpush1.bf16.msra.mxu0 0
        %2486 = vmatprep.subr.bf16.mxu0 0
        %2487 = vmatpush1.bf16.msra.mxu0 0
        %2488 = vmatprep.subr.bf16.mxu0 0
        %2489 = vmatpush1.bf16.msra.mxu0 0
        %2490 = vmatprep.subr.bf16.mxu0 0
        %2491 = vmatpush1.bf16.msra.mxu0 0
        %2492 = vmatprep.subr.bf16.mxu0 0
        %2493 = vmatpush1.bf16.msra.mxu0 0
        %2494 = vmatprep.subr.bf16.mxu0 0
        %2495 = vmatpush1.bf16.msra.mxu0 0
        %2496 = vmatprep.mubr.bf16.mxu0 0
        %2497 = vmatmul.mubr.bf16.gmra.mrb[0].mxu0 %v2462
        %v2498 = vpop.f32.mrb[0].mxu0
        %v2499 = vadd.f32 0.0, %v2498
        %v2500 = vpop.f32.mrb[0].mxu0
        %v2501 = vpop.f32.mrb[0].mxu0
        %v2502 = vadd.f32 0.0, %v2501
        %v2503 = vpop.f32.mrb[0].mxu0
        %2504 = vdwg.mxu0
        %v2505 = vpack.c.bf16 %v2502, %v2499
        %v2506 = vld [vmem:[%s5] sm:$0xf]
        %v2507 = vld [vmem:[%s5 + $0x4] sm:$0xf]
        %s2508 = scalar_lea.vmem %s4, 8
        %v2509 = vld [vmem:[%s2508] sm:$0xf]
        %v2510 = vld [vmem:[%s2508 + $0x4] sm:$0xf]
        %v2513 = vunpack.c.l.b16 %v2509
        %v2514 = vunpack.c.l.b16 %v2510
        %v2515 = vpack.c.b16 %v2514, %v2513
        %v2517 = vsel %vm2460, %v2515, 0
        %2519 = vmatprep.subr.bf16.mxu0 0
        %2520 = vmatpush1.bf16.msra.mxu0 %v2449
        %2521 = vmatprep.subr.bf16.mxu0 0
        %2522 = vmatpush1.bf16.msra.mxu0 %v2450
        %2523 = vmatprep.subr.bf16.mxu0 0
        %2524 = vmatpush1.bf16.msra.mxu0 %v2451
        %2525 = vmatprep.subr.bf16.mxu0 0
        %2526 = vmatpush1.bf16.msra.mxu0 %v2452
        %2527 = vmatprep.subr.bf16.mxu0 0
        %2528 = vmatpush1.bf16.msra.mxu0 0
        %2529 = vmatprep.subr.bf16.mxu0 0
        %2530 = vmatpush1.bf16.msra.mxu0 0
        %2531 = vmatprep.subr.bf16.mxu0 0
        %2532 = vmatpush1.bf16.msra.mxu0 0
        %2533 = vmatprep.subr.bf16.mxu0 0
        %2534 = vmatpush1.bf16.msra.mxu0 0
        %2535 = vmatprep.subr.bf16.mxu0 0
        %2536 = vmatpush1.bf16.msra.mxu0 0
        %2537 = vmatprep.subr.bf16.mxu0 0
        %2538 = vmatpush1.bf16.msra.mxu0 0
        %2539 = vmatprep.subr.bf16.mxu0 0
        %2540 = vmatpush1.bf16.msra.mxu0 0
        %2541 = vmatprep.subr.bf16.mxu0 0
        %2542 = vmatpush1.bf16.msra.mxu0 0
        %2543 = vmatprep.subr.bf16.mxu0 0
        %2544 = vmatpush1.bf16.msra.mxu0 0
        %2545 = vmatprep.subr.bf16.mxu0 0
        %2546 = vmatpush1.bf16.msra.mxu0 0
        %2547 = vmatprep.subr.bf16.mxu0 0
        %2548 = vmatpush1.bf16.msra.mxu0 0
        %2549 = vmatprep.subr.bf16.mxu0 0
        %2550 = vmatpush1.bf16.msra.mxu0 0
        %2551 = vmatprep.mubr.bf16.mxu0 0
        %2552 = vmatmul.mubr.bf16.gmra.mrb[0].mxu0 %v2517
        %v2553 = vpop.f32.mrb[0].mxu0
        %v2554 = vadd.f32 0.0, %v2553
        %v2555 = vpop.f32.mrb[0].mxu0
        %v2556 = vpop.f32.mrb[0].mxu0
        %v2557 = vadd.f32 0.0, %v2556
        %v2558 = vpop.f32.mrb[0].mxu0
        %2559 = vdwg.mxu0
        %v2560 = vpack.c.bf16 %v2557, %v2554
        %s2561 = scalar_lea.vmem %s5, 8
        %v2562 = vld [vmem:[%s2561] sm:$0xf]
        %v2563 = vld [vmem:[%s2561 + $0x4] sm:$0xf]
        %v2566 = vunpack.c.l.b16 %v2562
        %v2567 = vunpack.c.l.b16 %v2563
        %v2568 = vpack.c.b16 %v2567, %v2566
        %vm2570 = vcmask 130048
        %v2572 = vsel %vm2570, %v2560, 0
        %2574 = vmatprep.subr.bf16.mxu0 0
        %2575 = vmatpush1.bf16.msra.mxu0 %v2568
        %2576 = vmatprep.subr.bf16.mxu0 0
        %2577 = vmatpush1.bf16.msra.mxu0 0
        %2578 = vmatprep.subr.bf16.mxu0 0
        %2579 = vmatpush1.bf16.msra.mxu0 0
        %2580 = vmatprep.subr.bf16.mxu0 0
        %2581 = vmatpush1.bf16.msra.mxu0 0
        %2582 = vmatprep.subr.bf16.mxu0 0
        %2583 = vmatpush1.bf16.msra.mxu0 0
        %2584 = vmatprep.subr.bf16.mxu0 0
        %2585 = vmatpush1.bf16.msra.mxu0 0
        %2586 = vmatprep.subr.bf16.mxu0 0
        %2587 = vmatpush1.bf16.msra.mxu0 0
        %2588 = vmatprep.subr.bf16.mxu0 0
        %2589 = vmatpush1.bf16.msra.mxu0 0
        %2590 = vmatprep.subr.bf16.mxu0 0
        %2591 = vmatpush1.bf16.msra.mxu0 0
        %2592 = vmatprep.subr.bf16.mxu0 0
        %2593 = vmatpush1.bf16.msra.mxu0 0
        %2594 = vmatprep.subr.bf16.mxu0 0
        %2595 = vmatpush1.bf16.msra.mxu0 0
        %2596 = vmatprep.subr.bf16.mxu0 0
        %2597 = vmatpush1.bf16.msra.mxu0 0
        %2598 = vmatprep.subr.bf16.mxu0 0
        %2599 = vmatpush1.bf16.msra.mxu0 0
        %2600 = vmatprep.subr.bf16.mxu0 0
        %2601 = vmatpush1.bf16.msra.mxu0 0
        %2602 = vmatprep.subr.bf16.mxu0 0
        %2603 = vmatpush1.bf16.msra.mxu0 0
        %2604 = vmatprep.subr.bf16.mxu0 0
        %2605 = vmatpush1.bf16.msra.mxu0 0
        %2606 = vmatprep.mubr.bf16.mxu0 0
        %2607 = vmatmul.mubr.bf16.gmra.mrb[0].mxu0 %v2572
        %v2608 = vpop.f32.mrb[0].mxu0
        %v2609 = vadd.f32 0.0, %v2608
        %v2610 = vpop.f32.mrb[0].mxu0
        %v2611 = vpop.f32.mrb[0].mxu0
        %v2612 = vadd.f32 0.0, %v2611
        %v2613 = vpop.f32.mrb[0].mxu0
        %2614 = vdwg.mxu0
        %v2617 = vunpack.c.l.b16 %v2506
        %v2618 = vunpack.c.l.b16 %v2507
        %v2619 = vpack.c.b16 %v2618, %v2617
        %v2622 = vsel %vm2570, %v2505, 0
        %2624 = vmatprep.subr.bf16.mxu0 0
        %2625 = vmatpush1.bf16.msra.mxu0 %v2619
        %2626 = vmatprep.subr.bf16.mxu0 0
        %2627 = vmatpush1.bf16.msra.mxu0 0
        %2628 = vmatprep.subr.bf16.mxu0 0
        %2629 = vmatpush1.bf16.msra.mxu0 0
        %2630 = vmatprep.subr.bf16.mxu0 0
        %2631 = vmatpush1.bf16.msra.mxu0 0
        %2632 = vmatprep.subr.bf16.mxu0 0
        %2633 = vmatpush1.bf16.msra.mxu0 0
        %2634 = vmatprep.subr.bf16.mxu0 0
        %2635 = vmatpush1.bf16.msra.mxu0 0
        %2636 = vmatprep.subr.bf16.mxu0 0
        %2637 = vmatpush1.bf16.msra.mxu0 0
        %2638 = vmatprep.subr.bf16.mxu0 0
        %2639 = vmatpush1.bf16.msra.mxu0 0
        %2640 = vmatprep.subr.bf16.mxu0 0
        %2641 = vmatpush1.bf16.msra.mxu0 0
        %2642 = vmatprep.subr.bf16.mxu0 0
        %2643 = vmatpush1.bf16.msra.mxu0 0
        %2644 = vmatprep.subr.bf16.mxu0 0
        %2645 = vmatpush1.bf16.msra.mxu0 0
        %2646 = vmatprep.subr.bf16.mxu0 0
        %2647 = vmatpush1.bf16.msra.mxu0 0
        %2648 = vmatprep.subr.bf16.mxu0 0
        %2649 = vmatpush1.bf16.msra.mxu0 0
        %2650 = vmatprep.subr.bf16.mxu0 0
        %2651 = vmatpush1.bf16.msra.mxu0 0
        %2652 = vmatprep.subr.bf16.mxu0 0
        %2653 = vmatpush1.bf16.msra.mxu0 0
        %2654 = vmatprep.subr.bf16.mxu0 0
        %2655 = vmatpush1.bf16.msra.mxu0 0
        %2656 = vmatprep.mubr.bf16.mxu0 0
        %2657 = vmatmul.mubr.bf16.gmra.mrb[0].mxu0 %v2622
        %v2658 = vpop.f32.mrb[0].mxu0
        %v2659 = vadd.f32 %v2609, %v2658
        %v2660 = vpop.f32.mrb[0].mxu0
        %v2661 = vpop.f32.mrb[0].mxu0
        %v2662 = vadd.f32 %v2612, %v2661
        %v2663 = vpop.f32.mrb[0].mxu0
        %2664 = vdwg.mxu0
        %s2665 = scalar_lea.vmem %s4, 16
        %v2666 = vld [vmem:[%s2665] sm:$0xf]
        %v2667 = vld [vmem:[%s2665 + $0x4] sm:$0xf]
        %v2670 = vunpack.c.l.b16 %v2666
        %v2671 = vunpack.c.l.b16 %v2667
        %v2672 = vpack.c.b16 %v2671, %v2670
        %v2674 = vsel %vm2460, %v2672, 0
        %2676 = vmatprep.subr.bf16.mxu0 0
        %2677 = vmatpush1.bf16.msra.mxu0 %v2449
        %2678 = vmatprep.subr.bf16.mxu0 0
        %2679 = vmatpush1.bf16.msra.mxu0 %v2450
        %2680 = vmatprep.subr.bf16.mxu0 0
        %2681 = vmatpush1.bf16.msra.mxu0 %v2451
        %2682 = vmatprep.subr.bf16.mxu0 0
        %2683 = vmatpush1.bf16.msra.mxu0 %v2452
        %2684 = vmatprep.subr.bf16.mxu0 0
        %2685 = vmatpush1.bf16.msra.mxu0 0
        %2686 = vmatprep.subr.bf16.mxu0 0
        %2687 = vmatpush1.bf16.msra.mxu0 0
        %2688 = vmatprep.subr.bf16.mxu0 0
        %2689 = vmatpush1.bf16.msra.mxu0 0
        %2690 = vmatprep.subr.bf16.mxu0 0
        %2691 = vmatpush1.bf16.msra.mxu0 0
        %2692 = vmatprep.subr.bf16.mxu0 0
        %2693 = vmatpush1.bf16.msra.mxu0 0
        %2694 = vmatprep.subr.bf16.mxu0 0
        %2695 = vmatpush1.bf16.msra.mxu0 0
        %2696 = vmatprep.subr.bf16.mxu0 0
        %2697 = vmatpush1.bf16.msra.mxu0 0
        %2698 = vmatprep.subr.bf16.mxu0 0
        %2699 = vmatpush1.bf16.msra.mxu0 0
        %2700 = vmatprep.subr.bf16.mxu0 0
        %2701 = vmatpush1.bf16.msra.mxu0 0
        %2702 = vmatprep.subr.bf16.mxu0 0
        %2703 = vmatpush1.bf16.msra.mxu0 0
        %2704 = vmatprep.subr.bf16.mxu0 0
        %2705 = vmatpush1.bf16.msra.mxu0 0
        %2706 = vmatprep.subr.bf16.mxu0 0
        %2707 = vmatpush1.bf16.msra.mxu0 0
        %2708 = vmatprep.mubr.bf16.mxu0 0
        %2709 = vmatmul.mubr.bf16.gmra.mrb[0].mxu0 %v2674
        %v2710 = vpop.f32.mrb[0].mxu0
        %v2711 = vadd.f32 0.0, %v2710
        %v2712 = vpop.f32.mrb[0].mxu0
        %v2713 = vpop.f32.mrb[0].mxu0
        %v2714 = vadd.f32 0.0, %v2713
        %v2715 = vpop.f32.mrb[0].mxu0
        %2716 = vdwg.mxu0
        %v2717 = vpack.c.bf16 %v2714, %v2711
        %s2718 = scalar_lea.vmem %s5, 16
        %v2719 = vld [vmem:[%s2718] sm:$0xf]
        %v2720 = vld [vmem:[%s2718 + $0x4] sm:$0xf]
        %v2723 = vunpack.c.l.b16 %v2719
        %v2724 = vunpack.c.l.b16 %v2720
        %v2725 = vpack.c.b16 %v2724, %v2723
        %v2728 = vsel %vm2570, %v2717, 0
        %2730 = vmatprep.subr.bf16.mxu0 0
        %2731 = vmatpush1.bf16.msra.mxu0 %v2725
        %2732 = vmatprep.subr.bf16.mxu0 0
        %2733 = vmatpush1.bf16.msra.mxu0 0
        %2734 = vmatprep.subr.bf16.mxu0 0
        %2735 = vmatpush1.bf16.msra.mxu0 0
        %2736 = vmatprep.subr.bf16.mxu0 0
        %2737 = vmatpush1.bf16.msra.mxu0 0
        %2738 = vmatprep.subr.bf16.mxu0 0
        %2739 = vmatpush1.bf16.msra.mxu0 0
        %2740 = vmatprep.subr.bf16.mxu0 0
        %2741 = vmatpush1.bf16.msra.mxu0 0
        %2742 = vmatprep.subr.bf16.mxu0 0
        %2743 = vmatpush1.bf16.msra.mxu0 0
        %2744 = vmatprep.subr.bf16.mxu0 0
        %2745 = vmatpush1.bf16.msra.mxu0 0
        %2746 = vmatprep.subr.bf16.mxu0 0
        %2747 = vmatpush1.bf16.msra.mxu0 0
        %2748 = vmatprep.subr.bf16.mxu0 0
        %2749 = vmatpush1.bf16.msra.mxu0 0
        %2750 = vmatprep.subr.bf16.mxu0 0
        %2751 = vmatpush1.bf16.msra.mxu0 0
        %2752 = vmatprep.subr.bf16.mxu0 0
        %2753 = vmatpush1.bf16.msra.mxu0 0
        %2754 = vmatprep.subr.bf16.mxu0 0
        %2755 = vmatpush1.bf16.msra.mxu0 0
        %2756 = vmatprep.subr.bf16.mxu0 0
        %2757 = vmatpush1.bf16.msra.mxu0 0
        %2758 = vmatprep.subr.bf16.mxu0 0
        %2759 = vmatpush1.bf16.msra.mxu0 0
        %2760 = vmatprep.subr.bf16.mxu0 0
        %2761 = vmatpush1.bf16.msra.mxu0 0
        %2762 = vmatprep.mubr.bf16.mxu0 0
        %2763 = vmatmul.mubr.bf16.gmra.mrb[0].mxu0 %v2728
        %v2764 = vpop.f32.mrb[0].mxu0
        %v2765 = vadd.f32 0.0, %v2764
        %v2766 = vpop.f32.mrb[0].mxu0
        %v2767 = vpop.f32.mrb[0].mxu0
        %v2768 = vadd.f32 0.0, %v2767
        %v2769 = vpop.f32.mrb[0].mxu0
        %2770 = vdwg.mxu0
        %v2771 = vadd.f32 %v2659, %v2765
        %v2772 = vadd.f32 %v2662, %v2768
        %s2773 = scalar_lea.vmem %s4, 24
        %v2774 = vld [vmem:[%s2773] sm:$0xf]
        %v2775 = vld [vmem:[%s2773 + $0x4] sm:$0xf]
        %v2778 = vunpack.c.l.b16 %v2774
        %v2779 = vunpack.c.l.b16 %v2775
        %v2780 = vpack.c.b16 %v2779, %v2778
        %v2782 = vsel %vm2460, %v2780, 0
        %2784 = vmatprep.subr.bf16.mxu0 0
        %2785 = vmatpush1.bf16.msra.mxu0 %v2449
        %2786 = vmatprep.subr.bf16.mxu0 0
        %2787 = vmatpush1.bf16.msra.mxu0 %v2450
        %2788 = vmatprep.subr.bf16.mxu0 0
        %2789 = vmatpush1.bf16.msra.mxu0 %v2451
        %2790 = vmatprep.subr.bf16.mxu0 0
        %2791 = vmatpush1.bf16.msra.mxu0 %v2452
        %2792 = vmatprep.subr.bf16.mxu0 0
        %2793 = vmatpush1.bf16.msra.mxu0 0
        %2794 = vmatprep.subr.bf16.mxu0 0
        %2795 = vmatpush1.bf16.msra.mxu0 0
        %2796 = vmatprep.subr.bf16.mxu0 0
        %2797 = vmatpush1.bf16.msra.mxu0 0
        %2798 = vmatprep.subr.bf16.mxu0 0
        %2799 = vmatpush1.bf16.msra.mxu0 0
        %2800 = vmatprep.subr.bf16.mxu0 0
        %2801 = vmatpush1.bf16.msra.mxu0 0
        %2802 = vmatprep.subr.bf16.mxu0 0
        %2803 = vmatpush1.bf16.msra.mxu0 0
        %2804 = vmatprep.subr.bf16.mxu0 0
        %2805 = vmatpush1.bf16.msra.mxu0 0
        %2806 = vmatprep.subr.bf16.mxu0 0
        %2807 = vmatpush1.bf16.msra.mxu0 0
        %2808 = vmatprep.subr.bf16.mxu0 0
        %2809 = vmatpush1.bf16.msra.mxu0 0
        %2810 = vmatprep.subr.bf16.mxu0 0
        %2811 = vmatpush1.bf16.msra.mxu0 0
        %2812 = vmatprep.subr.bf16.mxu0 0
        %2813 = vmatpush1.bf16.msra.mxu0 0
        %2814 = vmatprep.subr.bf16.mxu0 0
        %2815 = vmatpush1.bf16.msra.mxu0 0
        %2816 = vmatprep.mubr.bf16.mxu0 0
        %2817 = vmatmul.mubr.bf16.gmra.mrb[0].mxu0 %v2782
        %v2818 = vpop.f32.mrb[0].mxu0
        %v2819 = vadd.f32 0.0, %v2818
        %v2820 = vpop.f32.mrb[0].mxu0
        %v2821 = vpop.f32.mrb[0].mxu0
        %v2822 = vadd.f32 0.0, %v2821
        %v2823 = vpop.f32.mrb[0].mxu0
        %2824 = vdwg.mxu0
        %v2825 = vpack.c.bf16 %v2822, %v2819
        %s2826 = scalar_lea.vmem %s5, 24
        %v2827 = vld [vmem:[%s2826] sm:$0xf]
        %v2828 = vld [vmem:[%s2826 + $0x4] sm:$0xf]
        %v2831 = vunpack.c.l.b16 %v2827
        %v2832 = vunpack.c.l.b16 %v2828
        %v2833 = vpack.c.b16 %v2832, %v2831
        %v2836 = vsel %vm2570, %v2825, 0
        %2838 = vmatprep.subr.bf16.mxu0 0
        %2839 = vmatpush1.bf16.msra.mxu0 %v2833
        %2840 = vmatprep.subr.bf16.mxu0 0
        %2841 = vmatpush1.bf16.msra.mxu0 0
        %2842 = vmatprep.subr.bf16.mxu0 0
        %2843 = vmatpush1.bf16.msra.mxu0 0
        %2844 = vmatprep.subr.bf16.mxu0 0
        %2845 = vmatpush1.bf16.msra.mxu0 0
        %2846 = vmatprep.subr.bf16.mxu0 0
        %2847 = vmatpush1.bf16.msra.mxu0 0
        %2848 = vmatprep.subr.bf16.mxu0 0
        %2849 = vmatpush1.bf16.msra.mxu0 0
        %2850 = vmatprep.subr.bf16.mxu0 0
        %2851 = vmatpush1.bf16.msra.mxu0 0
        %2852 = vmatprep.subr.bf16.mxu0 0
        %2853 = vmatpush1.bf16.msra.mxu0 0
        %2854 = vmatprep.subr.bf16.mxu0 0
        %2855 = vmatpush1.bf16.msra.mxu0 0
        %2856 = vmatprep.subr.bf16.mxu0 0
        %2857 = vmatpush1.bf16.msra.mxu0 0
        %2858 = vmatprep.subr.bf16.mxu0 0
        %2859 = vmatpush1.bf16.msra.mxu0 0
        %2860 = vmatprep.subr.bf16.mxu0 0
        %2861 = vmatpush1.bf16.msra.mxu0 0
        %2862 = vmatprep.subr.bf16.mxu0 0
        %2863 = vmatpush1.bf16.msra.mxu0 0
        %2864 = vmatprep.subr.bf16.mxu0 0
        %2865 = vmatpush1.bf16.msra.mxu0 0
        %2866 = vmatprep.subr.bf16.mxu0 0
        %2867 = vmatpush1.bf16.msra.mxu0 0
        %2868 = vmatprep.subr.bf16.mxu0 0
        %2869 = vmatpush1.bf16.msra.mxu0 0
        %2870 = vmatprep.mubr.bf16.mxu0 0
        %2871 = vmatmul.mubr.bf16.gmra.mrb[0].mxu0 %v2836
        %v2872 = vpop.f32.mrb[0].mxu0
        %v2873 = vadd.f32 0.0, %v2872
        %v2874 = vpop.f32.mrb[0].mxu0
        %v2875 = vpop.f32.mrb[0].mxu0
        %v2876 = vadd.f32 0.0, %v2875
        %v2877 = vpop.f32.mrb[0].mxu0
        %2878 = vdwg.mxu0
        %v2879 = vadd.f32 %v2771, %v2873
        %v2880 = vadd.f32 %v2772, %v2876
        %s2881 = scalar_lea.vmem %s4, 32
        %v2882 = vld [vmem:[%s2881] sm:$0xf]
        %v2883 = vld [vmem:[%s2881 + $0x4] sm:$0xf]
        %v2886 = vunpack.c.l.b16 %v2882
        %v2887 = vunpack.c.l.b16 %v2883
        %v2888 = vpack.c.b16 %v2887, %v2886
        %v2890 = vsel %vm2460, %v2888, 0
        %2892 = vmatprep.subr.bf16.mxu0 0
        %2893 = vmatpush1.bf16.msra.mxu0 %v2449
        %2894 = vmatprep.subr.bf16.mxu0 0
        %2895 = vmatpush1.bf16.msra.mxu0 %v2450
        %2896 = vmatprep.subr.bf16.mxu0 0
        %2897 = vmatpush1.bf16.msra.mxu0 %v2451
        %2898 = vmatprep.subr.bf16.mxu0 0
        %2899 = vmatpush1.bf16.msra.mxu0 %v2452
        %2900 = vmatprep.subr.bf16.mxu0 0
        %2901 = vmatpush1.bf16.msra.mxu0 0
        %2902 = vmatprep.subr.bf16.mxu0 0
        %2903 = vmatpush1.bf16.msra.mxu0 0
        %2904 = vmatprep.subr.bf16.mxu0 0
        %2905 = vmatpush1.bf16.msra.mxu0 0
        %2906 = vmatprep.subr.bf16.mxu0 0
        %2907 = vmatpush1.bf16.msra.mxu0 0
        %2908 = vmatprep.subr.bf16.mxu0 0
        %2909 = vmatpush1.bf16.msra.mxu0 0
        %2910 = vmatprep.subr.bf16.mxu0 0
        %2911 = vmatpush1.bf16.msra.mxu0 0
        %2912 = vmatprep.subr.bf16.mxu0 0
        %2913 = vmatpush1.bf16.msra.mxu0 0
        %2914 = vmatprep.subr.bf16.mxu0 0
        %2915 = vmatpush1.bf16.msra.mxu0 0
        %2916 = vmatprep.subr.bf16.mxu0 0
        %2917 = vmatpush1.bf16.msra.mxu0 0
        %2918 = vmatprep.subr.bf16.mxu0 0
        %2919 = vmatpush1.bf16.msra.mxu0 0
        %2920 = vmatprep.subr.bf16.mxu0 0
        %2921 = vmatpush1.bf16.msra.mxu0 0
        %2922 = vmatprep.subr.bf16.mxu0 0
        %2923 = vmatpush1.bf16.msra.mxu0 0
        %2924 = vmatprep.mubr.bf16.mxu0 0
        %2925 = vmatmul.mubr.bf16.gmra.mrb[0].mxu0 %v2890
        %v2926 = vpop.f32.mrb[0].mxu0
        %v2927 = vadd.f32 0.0, %v2926
        %v2928 = vpop.f32.mrb[0].mxu0
        %v2929 = vpop.f32.mrb[0].mxu0
        %v2930 = vadd.f32 0.0, %v2929
        %v2931 = vpop.f32.mrb[0].mxu0
        %2932 = vdwg.mxu0
        %v2933 = vpack.c.bf16 %v2930, %v2927
        %s2934 = scalar_lea.vmem %s5, 32
        %v2935 = vld [vmem:[%s2934] sm:$0xf]
        %v2936 = vld [vmem:[%s2934 + $0x4] sm:$0xf]
        %v2939 = vunpack.c.l.b16 %v2935
        %v2940 = vunpack.c.l.b16 %v2936
        %v2941 = vpack.c.b16 %v2940, %v2939
        %v2944 = vsel %vm2570, %v2933, 0
        %2946 = vmatprep.subr.bf16.mxu0 0
        %2947 = vmatpush1.bf16.msra.mxu0 %v2941
        %2948 = vmatprep.subr.bf16.mxu0 0
        %2949 = vmatpush1.bf16.msra.mxu0 0
        %2950 = vmatprep.subr.bf16.mxu0 0
        %2951 = vmatpush1.bf16.msra.mxu0 0
        %2952 = vmatprep.subr.bf16.mxu0 0
        %2953 = vmatpush1.bf16.msra.mxu0 0
        %2954 = vmatprep.subr.bf16.mxu0 0
        %2955 = vmatpush1.bf16.msra.mxu0 0
        %2956 = vmatprep.subr.bf16.mxu0 0
        %2957 = vmatpush1.bf16.msra.mxu0 0
        %2958 = vmatprep.subr.bf16.mxu0 0
        %2959 = vmatpush1.bf16.msra.mxu0 0
        %2960 = vmatprep.subr.bf16.mxu0 0
        %2961 = vmatpush1.bf16.msra.mxu0 0
        %2962 = vmatprep.subr.bf16.mxu0 0
        %2963 = vmatpush1.bf16.msra.mxu0 0
        %2964 = vmatprep.subr.bf16.mxu0 0
        %2965 = vmatpush1.bf16.msra.mxu0 0
        %2966 = vmatprep.subr.bf16.mxu0 0
        %2967 = vmatpush1.bf16.msra.mxu0 0
        %2968 = vmatprep.subr.bf16.mxu0 0
        %2969 = vmatpush1.bf16.msra.mxu0 0
        %2970 = vmatprep.subr.bf16.mxu0 0
        %2971 = vmatpush1.bf16.msra.mxu0 0
        %2972 = vmatprep.subr.bf16.mxu0 0
        %2973 = vmatpush1.bf16.msra.mxu0 0
        %2974 = vmatprep.subr.bf16.mxu0 0
        %2975 = vmatpush1.bf16.msra.mxu0 0
        %2976 = vmatprep.subr.bf16.mxu0 0
        %2977 = vmatpush1.bf16.msra.mxu0 0
        %2978 = vmatprep.mubr.bf16.mxu0 0
        %2979 = vmatmul.mubr.bf16.gmra.mrb[0].mxu0 %v2944
        %v2980 = vpop.f32.mrb[0].mxu0
        %v2981 = vadd.f32 0.0, %v2980
        %v2982 = vpop.f32.mrb[0].mxu0
        %v2983 = vpop.f32.mrb[0].mxu0
        %v2984 = vadd.f32 0.0, %v2983
        %v2985 = vpop.f32.mrb[0].mxu0
        %2986 = vdwg.mxu0
        %v2987 = vadd.f32 %v2879, %v2981
        %v2988 = vadd.f32 %v2880, %v2984
        %s2989 = scalar_lea.vmem %s4, 40
        %v2990 = vld [vmem:[%s2989] sm:$0xf]
        %v2991 = vld [vmem:[%s2989 + $0x4] sm:$0xf]
        %v2994 = vunpack.c.l.b16 %v2990
        %v2995 = vunpack.c.l.b16 %v2991
        %v2996 = vpack.c.b16 %v2995, %v2994
        %v2998 = vsel %vm2460, %v2996, 0
        %3000 = vmatprep.subr.bf16.mxu0 0
        %3001 = vmatpush1.bf16.msra.mxu0 %v2449
        %3002 = vmatprep.subr.bf16.mxu0 0
        %3003 = vmatpush1.bf16.msra.mxu0 %v2450
        %3004 = vmatprep.subr.bf16.mxu0 0
        %3005 = vmatpush1.bf16.msra.mxu0 %v2451
        %3006 = vmatprep.subr.bf16.mxu0 0
        %3007 = vmatpush1.bf16.msra.mxu0 %v2452
        %3008 = vmatprep.subr.bf16.mxu0 0
        %3009 = vmatpush1.bf16.msra.mxu0 0
        %3010 = vmatprep.subr.bf16.mxu0 0
        %3011 = vmatpush1.bf16.msra.mxu0 0
        %3012 = vmatprep.subr.bf16.mxu0 0
        %3013 = vmatpush1.bf16.msra.mxu0 0
        %3014 = vmatprep.subr.bf16.mxu0 0
        %3015 = vmatpush1.bf16.msra.mxu0 0
        %3016 = vmatprep.subr.bf16.mxu0 0
        %3017 = vmatpush1.bf16.msra.mxu0 0
        %3018 = vmatprep.subr.bf16.mxu0 0
        %3019 = vmatpush1.bf16.msra.mxu0 0
        %3020 = vmatprep.subr.bf16.mxu0 0
        %3021 = vmatpush1.bf16.msra.mxu0 0
        %3022 = vmatprep.subr.bf16.mxu0 0
        %3023 = vmatpush1.bf16.msra.mxu0 0
        %3024 = vmatprep.subr.bf16.mxu0 0
        %3025 = vmatpush1.bf16.msra.mxu0 0
        %3026 = vmatprep.subr.bf16.mxu0 0
        %3027 = vmatpush1.bf16.msra.mxu0 0
        %3028 = vmatprep.subr.bf16.mxu0 0
        %3029 = vmatpush1.bf16.msra.mxu0 0
        %3030 = vmatprep.subr.bf16.mxu0 0
        %3031 = vmatpush1.bf16.msra.mxu0 0
        %3032 = vmatprep.mubr.bf16.mxu0 0
        %3033 = vmatmul.mubr.bf16.gmra.mrb[0].mxu0 %v2998
        %v3034 = vpop.f32.mrb[0].mxu0
        %v3035 = vadd.f32 0.0, %v3034
        %v3036 = vpop.f32.mrb[0].mxu0
        %v3037 = vpop.f32.mrb[0].mxu0
        %v3038 = vadd.f32 0.0, %v3037
        %v3039 = vpop.f32.mrb[0].mxu0
        %3040 = vdwg.mxu0
        %v3041 = vpack.c.bf16 %v3038, %v3035
        %s3042 = scalar_lea.vmem %s5, 40
        %v3043 = vld [vmem:[%s3042] sm:$0xf]
        %v3044 = vld [vmem:[%s3042 + $0x4] sm:$0xf]
        %v3047 = vunpack.c.l.b16 %v3043
        %v3048 = vunpack.c.l.b16 %v3044
        %v3049 = vpack.c.b16 %v3048, %v3047
        %v3052 = vsel %vm2570, %v3041, 0
        %3054 = vmatprep.subr.bf16.mxu0 0
        %3055 = vmatpush1.bf16.msra.mxu0 %v3049
        %3056 = vmatprep.subr.bf16.mxu0 0
        %3057 = vmatpush1.bf16.msra.mxu0 0
        %3058 = vmatprep.subr.bf16.mxu0 0
        %3059 = vmatpush1.bf16.msra.mxu0 0
        %3060 = vmatprep.subr.bf16.mxu0 0
        %3061 = vmatpush1.bf16.msra.mxu0 0
        %3062 = vmatprep.subr.bf16.mxu0 0
        %3063 = vmatpush1.bf16.msra.mxu0 0
        %3064 = vmatprep.subr.bf16.mxu0 0
        %3065 = vmatpush1.bf16.msra.mxu0 0
        %3066 = vmatprep.subr.bf16.mxu0 0
        %3067 = vmatpush1.bf16.msra.mxu0 0
        %3068 = vmatprep.subr.bf16.mxu0 0
        %3069 = vmatpush1.bf16.msra.mxu0 0
        %3070 = vmatprep.subr.bf16.mxu0 0
        %3071 = vmatpush1.bf16.msra.mxu0 0
        %3072 = vmatprep.subr.bf16.mxu0 0
        %3073 = vmatpush1.bf16.msra.mxu0 0
        %3074 = vmatprep.subr.bf16.mxu0 0
        %3075 = vmatpush1.bf16.msra.mxu0 0
        %3076 = vmatprep.subr.bf16.mxu0 0
        %3077 = vmatpush1.bf16.msra.mxu0 0
        %3078 = vmatprep.subr.bf16.mxu0 0
        %3079 = vmatpush1.bf16.msra.mxu0 0
        %3080 = vmatprep.subr.bf16.mxu0 0
        %3081 = vmatpush1.bf16.msra.mxu0 0
        %3082 = vmatprep.subr.bf16.mxu0 0
        %3083 = vmatpush1.bf16.msra.mxu0 0
        %3084 = vmatprep.subr.bf16.mxu0 0
        %3085 = vmatpush1.bf16.msra.mxu0 0
        %3086 = vmatprep.mubr.bf16.mxu0 0
        %3087 = vmatmul.mubr.bf16.gmra.mrb[0].mxu0 %v3052
        %v3088 = vpop.f32.mrb[0].mxu0
        %v3089 = vadd.f32 0.0, %v3088
        %v3090 = vpop.f32.mrb[0].mxu0
        %v3091 = vpop.f32.mrb[0].mxu0
        %v3092 = vadd.f32 0.0, %v3091
        %v3093 = vpop.f32.mrb[0].mxu0
        %3094 = vdwg.mxu0
        %v3095 = vadd.f32 %v2987, %v3089
        %v3096 = vadd.f32 %v2988, %v3092
        %s3097 = scalar_lea.vmem %s4, 48
        %v3098 = vld [vmem:[%s3097] sm:$0xf]
        %v3099 = vld [vmem:[%s3097 + $0x4] sm:$0xf]
        %v3102 = vunpack.c.l.b16 %v3098
        %v3103 = vunpack.c.l.b16 %v3099
        %v3104 = vpack.c.b16 %v3103, %v3102
        %v3106 = vsel %vm2460, %v3104, 0
        %3108 = vmatprep.subr.bf16.mxu0 0
        %3109 = vmatpush1.bf16.msra.mxu0 %v2449
        %3110 = vmatprep.subr.bf16.mxu0 0
        %3111 = vmatpush1.bf16.msra.mxu0 %v2450
        %3112 = vmatprep.subr.bf16.mxu0 0
        %3113 = vmatpush1.bf16.msra.mxu0 %v2451
        %3114 = vmatprep.subr.bf16.mxu0 0
        %3115 = vmatpush1.bf16.msra.mxu0 %v2452
        %3116 = vmatprep.subr.bf16.mxu0 0
        %3117 = vmatpush1.bf16.msra.mxu0 0
        %3118 = vmatprep.subr.bf16.mxu0 0
        %3119 = vmatpush1.bf16.msra.mxu0 0
        %3120 = vmatprep.subr.bf16.mxu0 0
        %3121 = vmatpush1.bf16.msra.mxu0 0
        %3122 = vmatprep.subr.bf16.mxu0 0
        %3123 = vmatpush1.bf16.msra.mxu0 0
        %3124 = vmatprep.subr.bf16.mxu0 0
        %3125 = vmatpush1.bf16.msra.mxu0 0
        %3126 = vmatprep.subr.bf16.mxu0 0
        %3127 = vmatpush1.bf16.msra.mxu0 0
        %3128 = vmatprep.subr.bf16.mxu0 0
        %3129 = vmatpush1.bf16.msra.mxu0 0
        %3130 = vmatprep.subr.bf16.mxu0 0
        %3131 = vmatpush1.bf16.msra.mxu0 0
        %3132 = vmatprep.subr.bf16.mxu0 0
        %3133 = vmatpush1.bf16.msra.mxu0 0
        %3134 = vmatprep.subr.bf16.mxu0 0
        %3135 = vmatpush1.bf16.msra.mxu0 0
        %3136 = vmatprep.subr.bf16.mxu0 0
        %3137 = vmatpush1.bf16.msra.mxu0 0
        %3138 = vmatprep.subr.bf16.mxu0 0
        %3139 = vmatpush1.bf16.msra.mxu0 0
        %3140 = vmatprep.mubr.bf16.mxu0 0
        %3141 = vmatmul.mubr.bf16.gmra.mrb[0].mxu0 %v3106
        %v3142 = vpop.f32.mrb[0].mxu0
        %v3143 = vadd.f32 0.0, %v3142
        %v3144 = vpop.f32.mrb[0].mxu0
        %v3145 = vpop.f32.mrb[0].mxu0
        %v3146 = vadd.f32 0.0, %v3145
        %v3147 = vpop.f32.mrb[0].mxu0
        %3148 = vdwg.mxu0
        %v3149 = vpack.c.bf16 %v3146, %v3143
        %s3150 = scalar_lea.vmem %s5, 48
        %v3151 = vld [vmem:[%s3150] sm:$0xf]
        %v3152 = vld [vmem:[%s3150 + $0x4] sm:$0xf]
        %v3155 = vunpack.c.l.b16 %v3151
        %v3156 = vunpack.c.l.b16 %v3152
        %v3157 = vpack.c.b16 %v3156, %v3155
        %v3160 = vsel %vm2570, %v3149, 0
        %3162 = vmatprep.subr.bf16.mxu0 0
        %3163 = vmatpush1.bf16.msra.mxu0 %v3157
        %3164 = vmatprep.subr.bf16.mxu0 0
        %3165 = vmatpush1.bf16.msra.mxu0 0
        %3166 = vmatprep.subr.bf16.mxu0 0
        %3167 = vmatpush1.bf16.msra.mxu0 0
        %3168 = vmatprep.subr.bf16.mxu0 0
        %3169 = vmatpush1.bf16.msra.mxu0 0
        %3170 = vmatprep.subr.bf16.mxu0 0
        %3171 = vmatpush1.bf16.msra.mxu0 0
        %3172 = vmatprep.subr.bf16.mxu0 0
        %3173 = vmatpush1.bf16.msra.mxu0 0
        %3174 = vmatprep.subr.bf16.mxu0 0
        %3175 = vmatpush1.bf16.msra.mxu0 0
        %3176 = vmatprep.subr.bf16.mxu0 0
        %3177 = vmatpush1.bf16.msra.mxu0 0
        %3178 = vmatprep.subr.bf16.mxu0 0
        %3179 = vmatpush1.bf16.msra.mxu0 0
        %3180 = vmatprep.subr.bf16.mxu0 0
        %3181 = vmatpush1.bf16.msra.mxu0 0
        %3182 = vmatprep.subr.bf16.mxu0 0
        %3183 = vmatpush1.bf16.msra.mxu0 0
        %3184 = vmatprep.subr.bf16.mxu0 0
        %3185 = vmatpush1.bf16.msra.mxu0 0
        %3186 = vmatprep.subr.bf16.mxu0 0
        %3187 = vmatpush1.bf16.msra.mxu0 0
        %3188 = vmatprep.subr.bf16.mxu0 0
        %3189 = vmatpush1.bf16.msra.mxu0 0
        %3190 = vmatprep.subr.bf16.mxu0 0
        %3191 = vmatpush1.bf16.msra.mxu0 0
        %3192 = vmatprep.subr.bf16.mxu0 0
        %3193 = vmatpush1.bf16.msra.mxu0 0
        %3194 = vmatprep.mubr.bf16.mxu0 0
        %3195 = vmatmul.mubr.bf16.gmra.mrb[0].mxu0 %v3160
        %v3196 = vpop.f32.mrb[0].mxu0
        %v3197 = vadd.f32 0.0, %v3196
        %v3198 = vpop.f32.mrb[0].mxu0
        %v3199 = vpop.f32.mrb[0].mxu0
        %v3200 = vadd.f32 0.0, %v3199
        %v3201 = vpop.f32.mrb[0].mxu0
        %3202 = vdwg.mxu0
        %v3203 = vadd.f32 %v3095, %v3197
        %v3204 = vadd.f32 %v3096, %v3200
        %s3205 = scalar_lea.vmem %s4, 56
        %v3206 = vld [vmem:[%s3205] sm:$0xf]
        %v3207 = vld [vmem:[%s3205 + $0x4] sm:$0xf]
        %v3210 = vunpack.c.l.b16 %v3206
        %v3211 = vunpack.c.l.b16 %v3207
        %v3212 = vpack.c.b16 %v3211, %v3210
        %v3214 = vsel %vm2460, %v3212, 0
        %3216 = vmatprep.subr.bf16.mxu0 0
        %3217 = vmatpush1.bf16.msra.mxu0 %v2449
        %3218 = vmatprep.subr.bf16.mxu0 0
        %3219 = vmatpush1.bf16.msra.mxu0 %v2450
        %3220 = vmatprep.subr.bf16.mxu0 0
        %3221 = vmatpush1.bf16.msra.mxu0 %v2451
        %3222 = vmatprep.subr.bf16.mxu0 0
        %3223 = vmatpush1.bf16.msra.mxu0 %v2452
        %3224 = vmatprep.subr.bf16.mxu0 0
        %3225 = vmatpush1.bf16.msra.mxu0 0
        %3226 = vmatprep.subr.bf16.mxu0 0
        %3227 = vmatpush1.bf16.msra.mxu0 0
        %3228 = vmatprep.subr.bf16.mxu0 0
        %3229 = vmatpush1.bf16.msra.mxu0 0
        %3230 = vmatprep.subr.bf16.mxu0 0
        %3231 = vmatpush1.bf16.msra.mxu0 0
        %3232 = vmatprep.subr.bf16.mxu0 0
        %3233 = vmatpush1.bf16.msra.mxu0 0
        %3234 = vmatprep.subr.bf16.mxu0 0
        %3235 = vmatpush1.bf16.msra.mxu0 0
        %3236 = vmatprep.subr.bf16.mxu0 0
        %3237 = vmatpush1.bf16.msra.mxu0 0
        %3238 = vmatprep.subr.bf16.mxu0 0
        %3239 = vmatpush1.bf16.msra.mxu0 0
        %3240 = vmatprep.subr.bf16.mxu0 0
        %3241 = vmatpush1.bf16.msra.mxu0 0
        %3242 = vmatprep.subr.bf16.mxu0 0
        %3243 = vmatpush1.bf16.msra.mxu0 0
        %3244 = vmatprep.subr.bf16.mxu0 0
        %3245 = vmatpush1.bf16.msra.mxu0 0
        %3246 = vmatprep.subr.bf16.mxu0 0
        %3247 = vmatpush1.bf16.msra.mxu0 0
        %3248 = vmatprep.mubr.bf16.mxu0 0
        %3249 = vmatmul.mubr.bf16.gmra.mrb[0].mxu0 %v3214
        %v3250 = vpop.f32.mrb[0].mxu0
        %v3251 = vadd.f32 0.0, %v3250
        %v3252 = vpop.f32.mrb[0].mxu0
        %v3253 = vpop.f32.mrb[0].mxu0
        %v3254 = vadd.f32 0.0, %v3253
        %v3255 = vpop.f32.mrb[0].mxu0
        %3256 = vdwg.mxu0
        %v3257 = vpack.c.bf16 %v3254, %v3251
        %s3258 = scalar_lea.vmem %s5, 56
        %v3259 = vld [vmem:[%s3258] sm:$0xf]
        %v3260 = vld [vmem:[%s3258 + $0x4] sm:$0xf]
        %v3263 = vunpack.c.l.b16 %v3259
        %v3264 = vunpack.c.l.b16 %v3260
        %v3265 = vpack.c.b16 %v3264, %v3263
        %v3268 = vsel %vm2570, %v3257, 0
        %3270 = vmatprep.subr.bf16.mxu0 0
        %3271 = vmatpush1.bf16.msra.mxu0 %v3265
        %3272 = vmatprep.subr.bf16.mxu0 0
        %3273 = vmatpush1.bf16.msra.mxu0 0
        %3274 = vmatprep.subr.bf16.mxu0 0
        %3275 = vmatpush1.bf16.msra.mxu0 0
        %3276 = vmatprep.subr.bf16.mxu0 0
        %3277 = vmatpush1.bf16.msra.mxu0 0
        %3278 = vmatprep.subr.bf16.mxu0 0
        %3279 = vmatpush1.bf16.msra.mxu0 0
        %3280 = vmatprep.subr.bf16.mxu0 0
        %3281 = vmatpush1.bf16.msra.mxu0 0
        %3282 = vmatprep.subr.bf16.mxu0 0
        %3283 = vmatpush1.bf16.msra.mxu0 0
        %3284 = vmatprep.subr.bf16.mxu0 0
        %3285 = vmatpush1.bf16.msra.mxu0 0
        %3286 = vmatprep.subr.bf16.mxu0 0
        %3287 = vmatpush1.bf16.msra.mxu0 0
        %3288 = vmatprep.subr.bf16.mxu0 0
        %3289 = vmatpush1.bf16.msra.mxu0 0
        %3290 = vmatprep.subr.bf16.mxu0 0
        %3291 = vmatpush1.bf16.msra.mxu0 0
        %3292 = vmatprep.subr.bf16.mxu0 0
        %3293 = vmatpush1.bf16.msra.mxu0 0
        %3294 = vmatprep.subr.bf16.mxu0 0
        %3295 = vmatpush1.bf16.msra.mxu0 0
        %3296 = vmatprep.subr.bf16.mxu0 0
        %3297 = vmatpush1.bf16.msra.mxu0 0
        %3298 = vmatprep.subr.bf16.mxu0 0
        %3299 = vmatpush1.bf16.msra.mxu0 0
        %3300 = vmatprep.subr.bf16.mxu0 0
        %3301 = vmatpush1.bf16.msra.mxu0 0
        %3302 = vmatprep.mubr.bf16.mxu0 0
        %3303 = vmatmul.mubr.bf16.gmra.mrb[0].mxu0 %v3268
        %v3304 = vpop.f32.mrb[0].mxu0
        %v3305 = vadd.f32 0.0, %v3304
        %v3306 = vpop.f32.mrb[0].mxu0
        %v3307 = vpop.f32.mrb[0].mxu0
        %v3308 = vadd.f32 0.0, %v3307
        %v3309 = vpop.f32.mrb[0].mxu0
        %3310 = vdwg.mxu0
        %v3311 = vadd.f32 %v3203, %v3305
        %v3312 = vadd.f32 %v3204, %v3308
        %s3313 = scalar_lea.vmem %s4, 64
        %v3314 = vld [vmem:[%s3313] sm:$0xf]
        %v3315 = vld [vmem:[%s3313 + $0x4] sm:$0xf]
        %v3318 = vunpack.c.l.b16 %v3314
        %v3319 = vunpack.c.l.b16 %v3315
        %v3320 = vpack.c.b16 %v3319, %v3318
        %v3322 = vsel %vm2460, %v3320, 0
        %3324 = vmatprep.subr.bf16.mxu0 0
        %3325 = vmatpush1.bf16.msra.mxu0 %v2449
        %3326 = vmatprep.subr.bf16.mxu0 0
        %3327 = vmatpush1.bf16.msra.mxu0 %v2450
        %3328 = vmatprep.subr.bf16.mxu0 0
        %3329 = vmatpush1.bf16.msra.mxu0 %v2451
        %3330 = vmatprep.subr.bf16.mxu0 0
        %3331 = vmatpush1.bf16.msra.mxu0 %v2452
        %3332 = vmatprep.subr.bf16.mxu0 0
        %3333 = vmatpush1.bf16.msra.mxu0 0
        %3334 = vmatprep.subr.bf16.mxu0 0
        %3335 = vmatpush1.bf16.msra.mxu0 0
        %3336 = vmatprep.subr.bf16.mxu0 0
        %3337 = vmatpush1.bf16.msra.mxu0 0
        %3338 = vmatprep.subr.bf16.mxu0 0
        %3339 = vmatpush1.bf16.msra.mxu0 0
        %3340 = vmatprep.subr.bf16.mxu0 0
        %3341 = vmatpush1.bf16.msra.mxu0 0
        %3342 = vmatprep.subr.bf16.mxu0 0
        %3343 = vmatpush1.bf16.msra.mxu0 0
        %3344 = vmatprep.subr.bf16.mxu0 0
        %3345 = vmatpush1.bf16.msra.mxu0 0
        %3346 = vmatprep.subr.bf16.mxu0 0
        %3347 = vmatpush1.bf16.msra.mxu0 0
        %3348 = vmatprep.subr.bf16.mxu0 0
        %3349 = vmatpush1.bf16.msra.mxu0 0
        %3350 = vmatprep.subr.bf16.mxu0 0
        %3351 = vmatpush1.bf16.msra.mxu0 0
        %3352 = vmatprep.subr.bf16.mxu0 0
        %3353 = vmatpush1.bf16.msra.mxu0 0
        %3354 = vmatprep.subr.bf16.mxu0 0
        %3355 = vmatpush1.bf16.msra.mxu0 0
        %3356 = vmatprep.mubr.bf16.mxu0 0
        %3357 = vmatmul.mubr.bf16.gmra.mrb[0].mxu0 %v3322
        %v3358 = vpop.f32.mrb[0].mxu0
        %v3359 = vadd.f32 0.0, %v3358
        %v3360 = vpop.f32.mrb[0].mxu0
        %v3361 = vpop.f32.mrb[0].mxu0
        %v3362 = vadd.f32 0.0, %v3361
        %v3363 = vpop.f32.mrb[0].mxu0
        %3364 = vdwg.mxu0
        %v3365 = vpack.c.bf16 %v3362, %v3359
        %s3366 = scalar_lea.vmem %s5, 64
        %v3367 = vld [vmem:[%s3366] sm:$0xf]
        %v3368 = vld [vmem:[%s3366 + $0x4] sm:$0xf]
        %v3371 = vunpack.c.l.b16 %v3367
        %v3372 = vunpack.c.l.b16 %v3368
        %v3373 = vpack.c.b16 %v3372, %v3371
        %v3376 = vsel %vm2570, %v3365, 0
        %3378 = vmatprep.subr.bf16.mxu0 0
        %3379 = vmatpush1.bf16.msra.mxu0 %v3373
        %3380 = vmatprep.subr.bf16.mxu0 0
        %3381 = vmatpush1.bf16.msra.mxu0 0
        %3382 = vmatprep.subr.bf16.mxu0 0
        %3383 = vmatpush1.bf16.msra.mxu0 0
        %3384 = vmatprep.subr.bf16.mxu0 0
        %3385 = vmatpush1.bf16.msra.mxu0 0
        %3386 = vmatprep.subr.bf16.mxu0 0
        %3387 = vmatpush1.bf16.msra.mxu0 0
        %3388 = vmatprep.subr.bf16.mxu0 0
        %3389 = vmatpush1.bf16.msra.mxu0 0
        %3390 = vmatprep.subr.bf16.mxu0 0
        %3391 = vmatpush1.bf16.msra.mxu0 0
        %3392 = vmatprep.subr.bf16.mxu0 0
        %3393 = vmatpush1.bf16.msra.mxu0 0
        %3394 = vmatprep.subr.bf16.mxu0 0
        %3395 = vmatpush1.bf16.msra.mxu0 0
        %3396 = vmatprep.subr.bf16.mxu0 0
        %3397 = vmatpush1.bf16.msra.mxu0 0
        %3398 = vmatprep.subr.bf16.mxu0 0
        %3399 = vmatpush1.bf16.msra.mxu0 0
        %3400 = vmatprep.subr.bf16.mxu0 0
        %3401 = vmatpush1.bf16.msra.mxu0 0
        %3402 = vmatprep.subr.bf16.mxu0 0
        %3403 = vmatpush1.bf16.msra.mxu0 0
        %3404 = vmatprep.subr.bf16.mxu0 0
        %3405 = vmatpush1.bf16.msra.mxu0 0
        %3406 = vmatprep.subr.bf16.mxu0 0
        %3407 = vmatpush1.bf16.msra.mxu0 0
        %3408 = vmatprep.subr.bf16.mxu0 0
        %3409 = vmatpush1.bf16.msra.mxu0 0
        %3410 = vmatprep.mubr.bf16.mxu0 0
        %3411 = vmatmul.mubr.bf16.gmra.mrb[0].mxu0 %v3376
        %v3412 = vpop.f32.mrb[0].mxu0
        %v3413 = vadd.f32 0.0, %v3412
        %v3414 = vpop.f32.mrb[0].mxu0
        %v3415 = vpop.f32.mrb[0].mxu0
        %v3416 = vadd.f32 0.0, %v3415
        %v3417 = vpop.f32.mrb[0].mxu0
        %3418 = vdwg.mxu0
        %v3419 = vadd.f32 %v3311, %v3413
        %v3420 = vadd.f32 %v3312, %v3416
        %v3421 = vld [vmem:[%s6] sm:$0x1]
        %v3423 = vlaneseq
        %v3424 = vshrl.u32 %v3423, 7
        %v3425 = vsub.s32 0, %v3424
        %v3426 = vrot.slane %v3421, %v3425
        %v3428 = vadd.f32 %v3419, %v3426
        %v3429 = vadd.f32 %v3420, %v3426
        %v3430 = vmax.f32 %v3428, 0.0
        %v3431 = vmax.f32 %v3429, 0.0
        %v3432 = vpack.c.bf16 %v3431, %v3430
        %v3433 = vld [vmem:[%s7] sm:$0x3]
        %v3435 = vsel %vm2570, %v3433, 0
        %3437 = vmatprep.subr.bf16.mxu0 0
        %3438 = vmatpush1.bf16.msra.mxu0 %v3432
        %3439 = vmatprep.subr.bf16.mxu0 0
        %3440 = vmatpush1.bf16.msra.mxu0 0
        %3441 = vmatprep.subr.bf16.mxu0 0
        %3442 = vmatpush1.bf16.msra.mxu0 0
        %3443 = vmatprep.subr.bf16.mxu0 0
        %3444 = vmatpush1.bf16.msra.mxu0 0
        %3445 = vmatprep.subr.bf16.mxu0 0
        %3446 = vmatpush1.bf16.msra.mxu0 0
        %3447 = vmatprep.subr.bf16.mxu0 0
        %3448 = vmatpush1.bf16.msra.mxu0 0
        %3449 = vmatprep.subr.bf16.mxu0 0
        %3450 = vmatpush1.bf16.msra.mxu0 0
        %3451 = vmatprep.subr.bf16.mxu0 0
        %3452 = vmatpush1.bf16.msra.mxu0 0
        %3453 = vmatprep.subr.bf16.mxu0 0
        %3454 = vmatpush1.bf16.msra.mxu0 0
        %3455 = vmatprep.subr.bf16.mxu0 0
        %3456 = vmatpush1.bf16.msra.mxu0 0
        %3457 = vmatprep.subr.bf16.mxu0 0
        %3458 = vmatpush1.bf16.msra.mxu0 0
        %3459 = vmatprep.subr.bf16.mxu0 0
        %3460 = vmatpush1.bf16.msra.mxu0 0
        %3461 = vmatprep.subr.bf16.mxu0 0
        %3462 = vmatpush1.bf16.msra.mxu0 0
        %3463 = vmatprep.subr.bf16.mxu0 0
        %3464 = vmatpush1.bf16.msra.mxu0 0
        %3465 = vmatprep.subr.bf16.mxu0 0
        %3466 = vmatpush1.bf16.msra.mxu0 0
        %3467 = vmatprep.subr.bf16.mxu0 0
        %3468 = vmatpush1.bf16.msra.mxu0 0
        %3469 = vmatprep.mubr.bf16.mxu0 0
        %3470 = vmatmul.mubr.bf16.gmra.mrb[0].mxu0 %v3435
        %v3471 = vpop.f32.mrb[0].mxu0
        %v3472 = vadd.f32 0.0, %v3471
        %v3473 = vpop.f32.mrb[0].mxu0
        %v3474 = vpop.f32.mrb[0].mxu0
        %v3475 = vpop.f32.mrb[0].mxu0
        %3476 = vdwg.mxu0
        %v3477 = vpack.c.bf16 %v3472, %v3472
        %v3478 = vld [vmem:[%s8] sm:$0xf]
        %v3479 = vld [vmem:[%s8 + $0x4] sm:$0xf]
        %v3480 = vld [vmem:[%s8 + $0x8] sm:$0xf]
        %v3481 = vld [vmem:[%s8 + $0xc] sm:$0xf]
        %s3482 = scalar_lea.vmem %s7, 2
        %v3483 = vld [vmem:[%s3482] sm:$0x3]
        %v3485 = vsel %vm2570, %v3483, 0
        %3487 = vmatprep.subr.bf16.mxu0 0
        %3488 = vmatpush1.bf16.msra.mxu0 %v3432
        %3489 = vmatprep.subr.bf16.mxu0 0
        %3490 = vmatpush1.bf16.msra.mxu0 0
        %3491 = vmatprep.subr.bf16.mxu0 0
        %3492 = vmatpush1.bf16.msra.mxu0 0
        %3493 = vmatprep.subr.bf16.mxu0 0
        %3494 = vmatpush1.bf16.msra.mxu0 0
        %3495 = vmatprep.subr.bf16.mxu0 0
        %3496 = vmatpush1.bf16.msra.mxu0 0
        %3497 = vmatprep.subr.bf16.mxu0 0
        %3498 = vmatpush1.bf16.msra.mxu0 0
        %3499 = vmatprep.subr.bf16.mxu0 0
        %3500 = vmatpush1.bf16.msra.mxu0 0
        %3501 = vmatprep.subr.bf16.mxu0 0
        %3502 = vmatpush1.bf16.msra.mxu0 0
        %3503 = vmatprep.subr.bf16.mxu0 0
        %3504 = vmatpush1.bf16.msra.mxu0 0
        %3505 = vmatprep.subr.bf16.mxu0 0
        %3506 = vmatpush1.bf16.msra.mxu0 0
        %3507 = vmatprep.subr.bf16.mxu0 0
        %3508 = vmatpush1.bf16.msra.mxu0 0
        %3509 = vmatprep.subr.bf16.mxu0 0
        %3510 = vmatpush1.bf16.msra.mxu0 0
        %3511 = vmatprep.subr.bf16.mxu0 0
        %3512 = vmatpush1.bf16.msra.mxu0 0
        %3513 = vmatprep.subr.bf16.mxu0 0
        %3514 = vmatpush1.bf16.msra.mxu0 0
        %3515 = vmatprep.subr.bf16.mxu0 0
        %3516 = vmatpush1.bf16.msra.mxu0 0
        %3517 = vmatprep.subr.bf16.mxu0 0
        %3518 = vmatpush1.bf16.msra.mxu0 0
        %3519 = vmatprep.mubr.bf16.mxu0 0
        %3520 = vmatmul.mubr.bf16.gmra.mrb[0].mxu0 %v3485
        %v3521 = vpop.f32.mrb[0].mxu0
        %v3522 = vadd.f32 0.0, %v3521
        %v3523 = vpop.f32.mrb[0].mxu0
        %v3524 = vpop.f32.mrb[0].mxu0
        %v3525 = vpop.f32.mrb[0].mxu0
        %3526 = vdwg.mxu0
        %v3527 = vpack.c.bf16 %v3522, %v3522
        %s3528 = scalar_lea.vmem %s8, 16
        %v3529 = vld [vmem:[%s3528] sm:$0xf]
        %v3530 = vld [vmem:[%s3528 + $0x4] sm:$0xf]
        %v3531 = vld [vmem:[%s3528 + $0x8] sm:$0xf]
        %v3532 = vld [vmem:[%s3528 + $0xc] sm:$0xf]
        %v3537 = vunpack.c.l.b16 %v3529
        %v3538 = vunpack.c.l.b16 %v3530
        %v3539 = vunpack.c.l.b16 %v3531
        %v3540 = vunpack.c.l.b16 %v3532
        %v3541 = vpack.c.b16 %v3538, %v3537
        %v3542 = vpack.c.b16 %v3540, %v3539
        %vm3545 = vcmask 261120
        %v3547 = vsel %vm3545, %v3527, 0
        %3549 = vmatprep.subr.bf16.mxu0 0
        %3550 = vmatpush1.bf16.msra.mxu0 %v3541
        %3551 = vmatprep.subr.bf16.mxu0 0
        %3552 = vmatpush1.bf16.msra.mxu0 %v3542
        %3553 = vmatprep.subr.bf16.mxu0 0
        %3554 = vmatpush1.bf16.msra.mxu0 0
        %3555 = vmatprep.subr.bf16.mxu0 0
        %3556 = vmatpush1.bf16.msra.mxu0 0
        %3557 = vmatprep.subr.bf16.mxu0 0
        %3558 = vmatpush1.bf16.msra.mxu0 0
        %3559 = vmatprep.subr.bf16.mxu0 0
        %3560 = vmatpush1.bf16.msra.mxu0 0
        %3561 = vmatprep.subr.bf16.mxu0 0
        %3562 = vmatpush1.bf16.msra.mxu0 0
        %3563 = vmatprep.subr.bf16.mxu0 0
        %3564 = vmatpush1.bf16.msra.mxu0 0
        %3565 = vmatprep.subr.bf16.mxu0 0
        %3566 = vmatpush1.bf16.msra.mxu0 0
        %3567 = vmatprep.subr.bf16.mxu0 0
        %3568 = vmatpush1.bf16.msra.mxu0 0
        %3569 = vmatprep.subr.bf16.mxu0 0
        %3570 = vmatpush1.bf16.msra.mxu0 0
        %3571 = vmatprep.subr.bf16.mxu0 0
        %3572 = vmatpush1.bf16.msra.mxu0 0
        %3573 = vmatprep.subr.bf16.mxu0 0
        %3574 = vmatpush1.bf16.msra.mxu0 0
        %3575 = vmatprep.subr.bf16.mxu0 0
        %3576 = vmatpush1.bf16.msra.mxu0 0
        %3577 = vmatprep.subr.bf16.mxu0 0
        %3578 = vmatpush1.bf16.msra.mxu0 0
        %3579 = vmatprep.subr.bf16.mxu0 0
        %3580 = vmatpush1.bf16.msra.mxu0 0
        %3581 = vmatprep.mubr.bf16.mxu0 0
        %3582 = vmatmul.mubr.bf16.gmra.mrb[0].mxu0 %v3547
        %v3583 = vpop.f32.mrb[0].mxu0
        %v3584 = vadd.f32 0.0, %v3583
        %v3585 = vpop.f32.mrb[0].mxu0
        %v3586 = vpop.f32.mrb[0].mxu0
        %v3587 = vpop.f32.mrb[0].mxu0
        %3588 = vdwg.mxu0
        %v3593 = vunpack.c.l.b16 %v3478
        %v3594 = vunpack.c.l.b16 %v3479
        %v3595 = vunpack.c.l.b16 %v3480
        %v3596 = vunpack.c.l.b16 %v3481
        %v3597 = vpack.c.b16 %v3594, %v3593
        %v3598 = vpack.c.b16 %v3596, %v3595
        %v3602 = vsel %vm3545, %v3477, 0
        %3604 = vmatprep.subr.bf16.mxu0 0
        %3605 = vmatpush1.bf16.msra.mxu0 %v3597
        %3606 = vmatprep.subr.bf16.mxu0 0
        %3607 = vmatpush1.bf16.msra.mxu0 %v3598
        %3608 = vmatprep.subr.bf16.mxu0 0
        %3609 = vmatpush1.bf16.msra.mxu0 0
        %3610 = vmatprep.subr.bf16.mxu0 0
        %3611 = vmatpush1.bf16.msra.mxu0 0
        %3612 = vmatprep.subr.bf16.mxu0 0
        %3613 = vmatpush1.bf16.msra.mxu0 0
        %3614 = vmatprep.subr.bf16.mxu0 0
        %3615 = vmatpush1.bf16.msra.mxu0 0
        %3616 = vmatprep.subr.bf16.mxu0 0
        %3617 = vmatpush1.bf16.msra.mxu0 0
        %3618 = vmatprep.subr.bf16.mxu0 0
        %3619 = vmatpush1.bf16.msra.mxu0 0
        %3620 = vmatprep.subr.bf16.mxu0 0
        %3621 = vmatpush1.bf16.msra.mxu0 0
        %3622 = vmatprep.subr.bf16.mxu0 0
        %3623 = vmatpush1.bf16.msra.mxu0 0
        %3624 = vmatprep.subr.bf16.mxu0 0
        %3625 = vmatpush1.bf16.msra.mxu0 0
        %3626 = vmatprep.subr.bf16.mxu0 0
        %3627 = vmatpush1.bf16.msra.mxu0 0
        %3628 = vmatprep.subr.bf16.mxu0 0
        %3629 = vmatpush1.bf16.msra.mxu0 0
        %3630 = vmatprep.subr.bf16.mxu0 0
        %3631 = vmatpush1.bf16.msra.mxu0 0
        %3632 = vmatprep.subr.bf16.mxu0 0
        %3633 = vmatpush1.bf16.msra.mxu0 0
        %3634 = vmatprep.subr.bf16.mxu0 0
        %3635 = vmatpush1.bf16.msra.mxu0 0
        %3636 = vmatprep.mubr.bf16.mxu0 0
        %3637 = vmatmul.mubr.bf16.gmra.mrb[0].mxu0 %v3602
        %v3638 = vpop.f32.mrb[0].mxu0
        %v3639 = vadd.f32 %v3584, %v3638
        %v3640 = vpop.f32.mrb[0].mxu0
        %v3641 = vpop.f32.mrb[0].mxu0
        %v3642 = vpop.f32.mrb[0].mxu0
        %3643 = vdwg.mxu0
        %s3644 = scalar_lea.vmem %s7, 4
        %v3645 = vld [vmem:[%s3644] sm:$0x3]
        %v3647 = vsel %vm2570, %v3645, 0
        %3649 = vmatprep.subr.bf16.mxu0 0
        %3650 = vmatpush1.bf16.msra.mxu0 %v3432
        %3651 = vmatprep.subr.bf16.mxu0 0
        %3652 = vmatpush1.bf16.msra.mxu0 0
        %3653 = vmatprep.subr.bf16.mxu0 0
        %3654 = vmatpush1.bf16.msra.mxu0 0
        %3655 = vmatprep.subr.bf16.mxu0 0
        %3656 = vmatpush1.bf16.msra.mxu0 0
        %3657 = vmatprep.subr.bf16.mxu0 0
        %3658 = vmatpush1.bf16.msra.mxu0 0
        %3659 = vmatprep.subr.bf16.mxu0 0
        %3660 = vmatpush1.bf16.msra.mxu0 0
        %3661 = vmatprep.subr.bf16.mxu0 0
        %3662 = vmatpush1.bf16.msra.mxu0 0
        %3663 = vmatprep.subr.bf16.mxu0 0
        %3664 = vmatpush1.bf16.msra.mxu0 0
        %3665 = vmatprep.subr.bf16.mxu0 0
        %3666 = vmatpush1.bf16.msra.mxu0 0
        %3667 = vmatprep.subr.bf16.mxu0 0
        %3668 = vmatpush1.bf16.msra.mxu0 0
        %3669 = vmatprep.subr.bf16.mxu0 0
        %3670 = vmatpush1.bf16.msra.mxu0 0
        %3671 = vmatprep.subr.bf16.mxu0 0
        %3672 = vmatpush1.bf16.msra.mxu0 0
        %3673 = vmatprep.subr.bf16.mxu0 0
        %3674 = vmatpush1.bf16.msra.mxu0 0
        %3675 = vmatprep.subr.bf16.mxu0 0
        %3676 = vmatpush1.bf16.msra.mxu0 0
        %3677 = vmatprep.subr.bf16.mxu0 0
        %3678 = vmatpush1.bf16.msra.mxu0 0
        %3679 = vmatprep.subr.bf16.mxu0 0
        %3680 = vmatpush1.bf16.msra.mxu0 0
        %3681 = vmatprep.mubr.bf16.mxu0 0
        %3682 = vmatmul.mubr.bf16.gmra.mrb[0].mxu0 %v3647
        %v3683 = vpop.f32.mrb[0].mxu0
        %v3684 = vadd.f32 0.0, %v3683
        %v3685 = vpop.f32.mrb[0].mxu0
        %v3686 = vpop.f32.mrb[0].mxu0
        %v3687 = vpop.f32.mrb[0].mxu0
        %3688 = vdwg.mxu0
        %v3689 = vpack.c.bf16 %v3684, %v3684
        %s3690 = scalar_lea.vmem %s8, 32
        %v3691 = vld [vmem:[%s3690] sm:$0xf]
        %v3692 = vld [vmem:[%s3690 + $0x4] sm:$0xf]
        %v3693 = vld [vmem:[%s3690 + $0x8] sm:$0xf]
        %v3694 = vld [vmem:[%s3690 + $0xc] sm:$0xf]
        %v3699 = vunpack.c.l.b16 %v3691
        %v3700 = vunpack.c.l.b16 %v3692
        %v3701 = vunpack.c.l.b16 %v3693
        %v3702 = vunpack.c.l.b16 %v3694
        %v3703 = vpack.c.b16 %v3700, %v3699
        %v3704 = vpack.c.b16 %v3702, %v3701
        %v3708 = vsel %vm3545, %v3689, 0
        %3710 = vmatprep.subr.bf16.mxu0 0
        %3711 = vmatpush1.bf16.msra.mxu0 %v3703
        %3712 = vmatprep.subr.bf16.mxu0 0
        %3713 = vmatpush1.bf16.msra.mxu0 %v3704
        %3714 = vmatprep.subr.bf16.mxu0 0
        %3715 = vmatpush1.bf16.msra.mxu0 0
        %3716 = vmatprep.subr.bf16.mxu0 0
        %3717 = vmatpush1.bf16.msra.mxu0 0
        %3718 = vmatprep.subr.bf16.mxu0 0
        %3719 = vmatpush1.bf16.msra.mxu0 0
        %3720 = vmatprep.subr.bf16.mxu0 0
        %3721 = vmatpush1.bf16.msra.mxu0 0
        %3722 = vmatprep.subr.bf16.mxu0 0
        %3723 = vmatpush1.bf16.msra.mxu0 0
        %3724 = vmatprep.subr.bf16.mxu0 0
        %3725 = vmatpush1.bf16.msra.mxu0 0
        %3726 = vmatprep.subr.bf16.mxu0 0
        %3727 = vmatpush1.bf16.msra.mxu0 0
        %3728 = vmatprep.subr.bf16.mxu0 0
        %3729 = vmatpush1.bf16.msra.mxu0 0
        %3730 = vmatprep.subr.bf16.mxu0 0
        %3731 = vmatpush1.bf16.msra.mxu0 0
        %3732 = vmatprep.subr.bf16.mxu0 0
        %3733 = vmatpush1.bf16.msra.mxu0 0
        %3734 = vmatprep.subr.bf16.mxu0 0
        %3735 = vmatpush1.bf16.msra.mxu0 0
        %3736 = vmatprep.subr.bf16.mxu0 0
        %3737 = vmatpush1.bf16.msra.mxu0 0
        %3738 = vmatprep.subr.bf16.mxu0 0
        %3739 = vmatpush1.bf16.msra.mxu0 0
        %3740 = vmatprep.subr.bf16.mxu0 0
        %3741 = vmatpush1.bf16.msra.mxu0 0
        %3742 = vmatprep.mubr.bf16.mxu0 0
        %3743 = vmatmul.mubr.bf16.gmra.mrb[0].mxu0 %v3708
        %v3744 = vpop.f32.mrb[0].mxu0
        %v3745 = vadd.f32 0.0, %v3744
        %v3746 = vpop.f32.mrb[0].mxu0
        %v3747 = vpop.f32.mrb[0].mxu0
        %v3748 = vpop.f32.mrb[0].mxu0
        %3749 = vdwg.mxu0
        %v3750 = vadd.f32 %v3639, %v3745
        %s3751 = scalar_lea.vmem %s7, 6
        %v3752 = vld [vmem:[%s3751] sm:$0x3]
        %v3754 = vsel %vm2570, %v3752, 0
        %3756 = vmatprep.subr.bf16.mxu0 0
        %3757 = vmatpush1.bf16.msra.mxu0 %v3432
        %3758 = vmatprep.subr.bf16.mxu0 0
        %3759 = vmatpush1.bf16.msra.mxu0 0
        %3760 = vmatprep.subr.bf16.mxu0 0
        %3761 = vmatpush1.bf16.msra.mxu0 0
        %3762 = vmatprep.subr.bf16.mxu0 0
        %3763 = vmatpush1.bf16.msra.mxu0 0
        %3764 = vmatprep.subr.bf16.mxu0 0
        %3765 = vmatpush1.bf16.msra.mxu0 0
        %3766 = vmatprep.subr.bf16.mxu0 0
        %3767 = vmatpush1.bf16.msra.mxu0 0
        %3768 = vmatprep.subr.bf16.mxu0 0
        %3769 = vmatpush1.bf16.msra.mxu0 0
        %3770 = vmatprep.subr.bf16.mxu0 0
        %3771 = vmatpush1.bf16.msra.mxu0 0
        %3772 = vmatprep.subr.bf16.mxu0 0
        %3773 = vmatpush1.bf16.msra.mxu0 0
        %3774 = vmatprep.subr.bf16.mxu0 0
        %3775 = vmatpush1.bf16.msra.mxu0 0
        %3776 = vmatprep.subr.bf16.mxu0 0
        %3777 = vmatpush1.bf16.msra.mxu0 0
        %3778 = vmatprep.subr.bf16.mxu0 0
        %3779 = vmatpush1.bf16.msra.mxu0 0
        %3780 = vmatprep.subr.bf16.mxu0 0
        %3781 = vmatpush1.bf16.msra.mxu0 0
        %3782 = vmatprep.subr.bf16.mxu0 0
        %3783 = vmatpush1.bf16.msra.mxu0 0
        %3784 = vmatprep.subr.bf16.mxu0 0
        %3785 = vmatpush1.bf16.msra.mxu0 0
        %3786 = vmatprep.subr.bf16.mxu0 0
        %3787 = vmatpush1.bf16.msra.mxu0 0
        %3788 = vmatprep.mubr.bf16.mxu0 0
        %3789 = vmatmul.mubr.bf16.gmra.mrb[0].mxu0 %v3754
        %v3790 = vpop.f32.mrb[0].mxu0
        %v3791 = vadd.f32 0.0, %v3790
        %v3792 = vpop.f32.mrb[0].mxu0
        %v3793 = vpop.f32.mrb[0].mxu0
        %v3794 = vpop.f32.mrb[0].mxu0
        %3795 = vdwg.mxu0
        %v3796 = vpack.c.bf16 %v3791, %v3791
        %s3797 = scalar_lea.vmem %s8, 48
        %v3798 = vld [vmem:[%s3797] sm:$0xf]
        %v3799 = vld [vmem:[%s3797 + $0x4] sm:$0xf]
        %v3800 = vld [vmem:[%s3797 + $0x8] sm:$0xf]
        %v3801 = vld [vmem:[%s3797 + $0xc] sm:$0xf]
        %v3806 = vunpack.c.l.b16 %v3798
        %v3807 = vunpack.c.l.b16 %v3799
        %v3808 = vunpack.c.l.b16 %v3800
        %v3809 = vunpack.c.l.b16 %v3801
        %v3810 = vpack.c.b16 %v3807, %v3806
        %v3811 = vpack.c.b16 %v3809, %v3808
        %v3815 = vsel %vm3545, %v3796, 0
        %3817 = vmatprep.subr.bf16.mxu0 0
        %3818 = vmatpush1.bf16.msra.mxu0 %v3810
        %3819 = vmatprep.subr.bf16.mxu0 0
        %3820 = vmatpush1.bf16.msra.mxu0 %v3811
        %3821 = vmatprep.subr.bf16.mxu0 0
        %3822 = vmatpush1.bf16.msra.mxu0 0
        %3823 = vmatprep.subr.bf16.mxu0 0
        %3824 = vmatpush1.bf16.msra.mxu0 0
        %3825 = vmatprep.subr.bf16.mxu0 0
        %3826 = vmatpush1.bf16.msra.mxu0 0
        %3827 = vmatprep.subr.bf16.mxu0 0
        %3828 = vmatpush1.bf16.msra.mxu0 0
        %3829 = vmatprep.subr.bf16.mxu0 0
        %3830 = vmatpush1.bf16.msra.mxu0 0
        %3831 = vmatprep.subr.bf16.mxu0 0
        %3832 = vmatpush1.bf16.msra.mxu0 0
        %3833 = vmatprep.subr.bf16.mxu0 0
        %3834 = vmatpush1.bf16.msra.mxu0 0
        %3835 = vmatprep.subr.bf16.mxu0 0
        %3836 = vmatpush1.bf16.msra.mxu0 0
        %3837 = vmatprep.subr.bf16.mxu0 0
        %3838 = vmatpush1.bf16.msra.mxu0 0
        %3839 = vmatprep.subr.bf16.mxu0 0
        %3840 = vmatpush1.bf16.msra.mxu0 0
        %3841 = vmatprep.subr.bf16.mxu0 0
        %3842 = vmatpush1.bf16.msra.mxu0 0
        %3843 = vmatprep.subr.bf16.mxu0 0
        %3844 = vmatpush1.bf16.msra.mxu0 0
        %3845 = vmatprep.subr.bf16.mxu0 0
        %3846 = vmatpush1.bf16.msra.mxu0 0
        %3847 = vmatprep.subr.bf16.mxu0 0
        %3848 = vmatpush1.bf16.msra.mxu0 0
        %3849 = vmatprep.mubr.bf16.mxu0 0
        %3850 = vmatmul.mubr.bf16.gmra.mrb[0].mxu0 %v3815
        %v3851 = vpop.f32.mrb[0].mxu0
        %v3852 = vadd.f32 0.0, %v3851
        %v3853 = vpop.f32.mrb[0].mxu0
        %v3854 = vpop.f32.mrb[0].mxu0
        %v3855 = vpop.f32.mrb[0].mxu0
        %3856 = vdwg.mxu0
        %v3857 = vadd.f32 %v3750, %v3852
        %s3858 = scalar_lea.vmem %s7, 8
        %v3859 = vld [vmem:[%s3858] sm:$0x3]
        %v3861 = vsel %vm2570, %v3859, 0
        %3863 = vmatprep.subr.bf16.mxu0 0
        %3864 = vmatpush1.bf16.msra.mxu0 %v3432
        %3865 = vmatprep.subr.bf16.mxu0 0
        %3866 = vmatpush1.bf16.msra.mxu0 0
        %3867 = vmatprep.subr.bf16.mxu0 0
        %3868 = vmatpush1.bf16.msra.mxu0 0
        %3869 = vmatprep.subr.bf16.mxu0 0
        %3870 = vmatpush1.bf16.msra.mxu0 0
        %3871 = vmatprep.subr.bf16.mxu0 0
        %3872 = vmatpush1.bf16.msra.mxu0 0
        %3873 = vmatprep.subr.bf16.mxu0 0
        %3874 = vmatpush1.bf16.msra.mxu0 0
        %3875 = vmatprep.subr.bf16.mxu0 0
        %3876 = vmatpush1.bf16.msra.mxu0 0
        %3877 = vmatprep.subr.bf16.mxu0 0
        %3878 = vmatpush1.bf16.msra.mxu0 0
        %3879 = vmatprep.subr.bf16.mxu0 0
        %3880 = vmatpush1.bf16.msra.mxu0 0
        %3881 = vmatprep.subr.bf16.mxu0 0
        %3882 = vmatpush1.bf16.msra.mxu0 0
        %3883 = vmatprep.subr.bf16.mxu0 0
        %3884 = vmatpush1.bf16.msra.mxu0 0
        %3885 = vmatprep.subr.bf16.mxu0 0
        %3886 = vmatpush1.bf16.msra.mxu0 0
        %3887 = vmatprep.subr.bf16.mxu0 0
        %3888 = vmatpush1.bf16.msra.mxu0 0
        %3889 = vmatprep.subr.bf16.mxu0 0
        %3890 = vmatpush1.bf16.msra.mxu0 0
        %3891 = vmatprep.subr.bf16.mxu0 0
        %3892 = vmatpush1.bf16.msra.mxu0 0
        %3893 = vmatprep.subr.bf16.mxu0 0
        %3894 = vmatpush1.bf16.msra.mxu0 0
        %3895 = vmatprep.mubr.bf16.mxu0 0
        %3896 = vmatmul.mubr.bf16.gmra.mrb[0].mxu0 %v3861
        %v3897 = vpop.f32.mrb[0].mxu0
        %v3898 = vadd.f32 0.0, %v3897
        %v3899 = vpop.f32.mrb[0].mxu0
        %v3900 = vpop.f32.mrb[0].mxu0
        %v3901 = vpop.f32.mrb[0].mxu0
        %3902 = vdwg.mxu0
        %v3903 = vpack.c.bf16 %v3898, %v3898
        %s3904 = scalar_lea.vmem %s8, 64
        %v3905 = vld [vmem:[%s3904] sm:$0xf]
        %v3906 = vld [vmem:[%s3904 + $0x4] sm:$0xf]
        %v3907 = vld [vmem:[%s3904 + $0x8] sm:$0xf]
        %v3908 = vld [vmem:[%s3904 + $0xc] sm:$0xf]
        %v3913 = vunpack.c.l.b16 %v3905
        %v3914 = vunpack.c.l.b16 %v3906
        %v3915 = vunpack.c.l.b16 %v3907
        %v3916 = vunpack.c.l.b16 %v3908
        %v3917 = vpack.c.b16 %v3914, %v3913
        %v3918 = vpack.c.b16 %v3916, %v3915
        %v3922 = vsel %vm3545, %v3903, 0
        %3924 = vmatprep.subr.bf16.mxu0 0
        %3925 = vmatpush1.bf16.msra.mxu0 %v3917
        %3926 = vmatprep.subr.bf16.mxu0 0
        %3927 = vmatpush1.bf16.msra.mxu0 %v3918
        %3928 = vmatprep.subr.bf16.mxu0 0
        %3929 = vmatpush1.bf16.msra.mxu0 0
        %3930 = vmatprep.subr.bf16.mxu0 0
        %3931 = vmatpush1.bf16.msra.mxu0 0
        %3932 = vmatprep.subr.bf16.mxu0 0
        %3933 = vmatpush1.bf16.msra.mxu0 0
        %3934 = vmatprep.subr.bf16.mxu0 0
        %3935 = vmatpush1.bf16.msra.mxu0 0
        %3936 = vmatprep.subr.bf16.mxu0 0
        %3937 = vmatpush1.bf16.msra.mxu0 0
        %3938 = vmatprep.subr.bf16.mxu0 0
        %3939 = vmatpush1.bf16.msra.mxu0 0
        %3940 = vmatprep.subr.bf16.mxu0 0
        %3941 = vmatpush1.bf16.msra.mxu0 0
        %3942 = vmatprep.subr.bf16.mxu0 0
        %3943 = vmatpush1.bf16.msra.mxu0 0
        %3944 = vmatprep.subr.bf16.mxu0 0
        %3945 = vmatpush1.bf16.msra.mxu0 0
        %3946 = vmatprep.subr.bf16.mxu0 0
        %3947 = vmatpush1.bf16.msra.mxu0 0
        %3948 = vmatprep.subr.bf16.mxu0 0
        %3949 = vmatpush1.bf16.msra.mxu0 0
        %3950 = vmatprep.subr.bf16.mxu0 0
        %3951 = vmatpush1.bf16.msra.mxu0 0
        %3952 = vmatprep.subr.bf16.mxu0 0
        %3953 = vmatpush1.bf16.msra.mxu0 0
        %3954 = vmatprep.subr.bf16.mxu0 0
        %3955 = vmatpush1.bf16.msra.mxu0 0
        %3956 = vmatprep.mubr.bf16.mxu0 0
        %3957 = vmatmul.mubr.bf16.gmra.mrb[0].mxu0 %v3922
        %v3958 = vpop.f32.mrb[0].mxu0
        %v3959 = vadd.f32 0.0, %v3958
        %v3960 = vpop.f32.mrb[0].mxu0
        %v3961 = vpop.f32.mrb[0].mxu0
        %v3962 = vpop.f32.mrb[0].mxu0
        %3963 = vdwg.mxu0
        %v3964 = vadd.f32 %v3857, %v3959
        %s3965 = scalar_lea.vmem %s7, 10
        %v3966 = vld [vmem:[%s3965] sm:$0x3]
        %v3968 = vsel %vm2570, %v3966, 0
        %3970 = vmatprep.subr.bf16.mxu0 0
        %3971 = vmatpush1.bf16.msra.mxu0 %v3432
        %3972 = vmatprep.subr.bf16.mxu0 0
        %3973 = vmatpush1.bf16.msra.mxu0 0
        %3974 = vmatprep.subr.bf16.mxu0 0
        %3975 = vmatpush1.bf16.msra.mxu0 0
        %3976 = vmatprep.subr.bf16.mxu0 0
        %3977 = vmatpush1.bf16.msra.mxu0 0
        %3978 = vmatprep.subr.bf16.mxu0 0
        %3979 = vmatpush1.bf16.msra.mxu0 0
        %3980 = vmatprep.subr.bf16.mxu0 0
        %3981 = vmatpush1.bf16.msra.mxu0 0
        %3982 = vmatprep.subr.bf16.mxu0 0
        %3983 = vmatpush1.bf16.msra.mxu0 0
        %3984 = vmatprep.subr.bf16.mxu0 0
        %3985 = vmatpush1.bf16.msra.mxu0 0
        %3986 = vmatprep.subr.bf16.mxu0 0
        %3987 = vmatpush1.bf16.msra.mxu0 0
        %3988 = vmatprep.subr.bf16.mxu0 0
        %3989 = vmatpush1.bf16.msra.mxu0 0
        %3990 = vmatprep.subr.bf16.mxu0 0
        %3991 = vmatpush1.bf16.msra.mxu0 0
        %3992 = vmatprep.subr.bf16.mxu0 0
        %3993 = vmatpush1.bf16.msra.mxu0 0
        %3994 = vmatprep.subr.bf16.mxu0 0
        %3995 = vmatpush1.bf16.msra.mxu0 0
        %3996 = vmatprep.subr.bf16.mxu0 0
        %3997 = vmatpush1.bf16.msra.mxu0 0
        %3998 = vmatprep.subr.bf16.mxu0 0
        %3999 = vmatpush1.bf16.msra.mxu0 0
        %4000 = vmatprep.subr.bf16.mxu0 0
        %4001 = vmatpush1.bf16.msra.mxu0 0
        %4002 = vmatprep.mubr.bf16.mxu0 0
        %4003 = vmatmul.mubr.bf16.gmra.mrb[0].mxu0 %v3968
        %v4004 = vpop.f32.mrb[0].mxu0
        %v4005 = vadd.f32 0.0, %v4004
        %v4006 = vpop.f32.mrb[0].mxu0
        %v4007 = vpop.f32.mrb[0].mxu0
        %v4008 = vpop.f32.mrb[0].mxu0
        %4009 = vdwg.mxu0
        %v4010 = vpack.c.bf16 %v4005, %v4005
        %s4011 = scalar_lea.vmem %s8, 80
        %v4012 = vld [vmem:[%s4011] sm:$0xf]
        %v4013 = vld [vmem:[%s4011 + $0x4] sm:$0xf]
        %v4014 = vld [vmem:[%s4011 + $0x8] sm:$0xf]
        %v4015 = vld [vmem:[%s4011 + $0xc] sm:$0xf]
        %v4020 = vunpack.c.l.b16 %v4012
        %v4021 = vunpack.c.l.b16 %v4013
        %v4022 = vunpack.c.l.b16 %v4014
        %v4023 = vunpack.c.l.b16 %v4015
        %v4024 = vpack.c.b16 %v4021, %v4020
        %v4025 = vpack.c.b16 %v4023, %v4022
        %v4029 = vsel %vm3545, %v4010, 0
        %4031 = vmatprep.subr.bf16.mxu0 0
        %4032 = vmatpush1.bf16.msra.mxu0 %v4024
        %4033 = vmatprep.subr.bf16.mxu0 0
        %4034 = vmatpush1.bf16.msra.mxu0 %v4025
        %4035 = vmatprep.subr.bf16.mxu0 0
        %4036 = vmatpush1.bf16.msra.mxu0 0
        %4037 = vmatprep.subr.bf16.mxu0 0
        %4038 = vmatpush1.bf16.msra.mxu0 0
        %4039 = vmatprep.subr.bf16.mxu0 0
        %4040 = vmatpush1.bf16.msra.mxu0 0
        %4041 = vmatprep.subr.bf16.mxu0 0
        %4042 = vmatpush1.bf16.msra.mxu0 0
        %4043 = vmatprep.subr.bf16.mxu0 0
        %4044 = vmatpush1.bf16.msra.mxu0 0
        %4045 = vmatprep.subr.bf16.mxu0 0
        %4046 = vmatpush1.bf16.msra.mxu0 0
        %4047 = vmatprep.subr.bf16.mxu0 0
        %4048 = vmatpush1.bf16.msra.mxu0 0
        %4049 = vmatprep.subr.bf16.mxu0 0
        %4050 = vmatpush1.bf16.msra.mxu0 0
        %4051 = vmatprep.subr.bf16.mxu0 0
        %4052 = vmatpush1.bf16.msra.mxu0 0
        %4053 = vmatprep.subr.bf16.mxu0 0
        %4054 = vmatpush1.bf16.msra.mxu0 0
        %4055 = vmatprep.subr.bf16.mxu0 0
        %4056 = vmatpush1.bf16.msra.mxu0 0
        %4057 = vmatprep.subr.bf16.mxu0 0
        %4058 = vmatpush1.bf16.msra.mxu0 0
        %4059 = vmatprep.subr.bf16.mxu0 0
        %4060 = vmatpush1.bf16.msra.mxu0 0
        %4061 = vmatprep.subr.bf16.mxu0 0
        %4062 = vmatpush1.bf16.msra.mxu0 0
        %4063 = vmatprep.mubr.bf16.mxu0 0
        %4064 = vmatmul.mubr.bf16.gmra.mrb[0].mxu0 %v4029
        %v4065 = vpop.f32.mrb[0].mxu0
        %v4066 = vadd.f32 0.0, %v4065
        %v4067 = vpop.f32.mrb[0].mxu0
        %v4068 = vpop.f32.mrb[0].mxu0
        %v4069 = vpop.f32.mrb[0].mxu0
        %4070 = vdwg.mxu0
        %v4071 = vadd.f32 %v3964, %v4066
        %s4072 = scalar_lea.vmem %s7, 12
        %v4073 = vld [vmem:[%s4072] sm:$0x3]
        %v4075 = vsel %vm2570, %v4073, 0
        %4077 = vmatprep.subr.bf16.mxu0 0
        %4078 = vmatpush1.bf16.msra.mxu0 %v3432
        %4079 = vmatprep.subr.bf16.mxu0 0
        %4080 = vmatpush1.bf16.msra.mxu0 0
        %4081 = vmatprep.subr.bf16.mxu0 0
        %4082 = vmatpush1.bf16.msra.mxu0 0
        %4083 = vmatprep.subr.bf16.mxu0 0
        %4084 = vmatpush1.bf16.msra.mxu0 0
        %4085 = vmatprep.subr.bf16.mxu0 0
        %4086 = vmatpush1.bf16.msra.mxu0 0
        %4087 = vmatprep.subr.bf16.mxu0 0
        %4088 = vmatpush1.bf16.msra.mxu0 0
        %4089 = vmatprep.subr.bf16.mxu0 0
        %4090 = vmatpush1.bf16.msra.mxu0 0
        %4091 = vmatprep.subr.bf16.mxu0 0
        %4092 = vmatpush1.bf16.msra.mxu0 0
        %4093 = vmatprep.subr.bf16.mxu0 0
        %4094 = vmatpush1.bf16.msra.mxu0 0
        %4095 = vmatprep.subr.bf16.mxu0 0
        %4096 = vmatpush1.bf16.msra.mxu0 0
        %4097 = vmatprep.subr.bf16.mxu0 0
        %4098 = vmatpush1.bf16.msra.mxu0 0
        %4099 = vmatprep.subr.bf16.mxu0 0
        %4100 = vmatpush1.bf16.msra.mxu0 0
        %4101 = vmatprep.subr.bf16.mxu0 0
        %4102 = vmatpush1.bf16.msra.mxu0 0
        %4103 = vmatprep.subr.bf16.mxu0 0
        %4104 = vmatpush1.bf16.msra.mxu0 0
        %4105 = vmatprep.subr.bf16.mxu0 0
        %4106 = vmatpush1.bf16.msra.mxu0 0
        %4107 = vmatprep.subr.bf16.mxu0 0
        %4108 = vmatpush1.bf16.msra.mxu0 0
        %4109 = vmatprep.mubr.bf16.mxu0 0
        %4110 = vmatmul.mubr.bf16.gmra.mrb[0].mxu0 %v4075
        %v4111 = vpop.f32.mrb[0].mxu0
        %v4112 = vadd.f32 0.0, %v4111
        %v4113 = vpop.f32.mrb[0].mxu0
        %v4114 = vpop.f32.mrb[0].mxu0
        %v4115 = vpop.f32.mrb[0].mxu0
        %4116 = vdwg.mxu0
        %v4117 = vpack.c.bf16 %v4112, %v4112
        %s4118 = scalar_lea.vmem %s8, 96
        %v4119 = vld [vmem:[%s4118] sm:$0xf]
        %v4120 = vld [vmem:[%s4118 + $0x4] sm:$0xf]
        %v4121 = vld [vmem:[%s4118 + $0x8] sm:$0xf]
        %v4122 = vld [vmem:[%s4118 + $0xc] sm:$0xf]
        %v4127 = vunpack.c.l.b16 %v4119
        %v4128 = vunpack.c.l.b16 %v4120
        %v4129 = vunpack.c.l.b16 %v4121
        %v4130 = vunpack.c.l.b16 %v4122
        %v4131 = vpack.c.b16 %v4128, %v4127
        %v4132 = vpack.c.b16 %v4130, %v4129
        %v4136 = vsel %vm3545, %v4117, 0
        %4138 = vmatprep.subr.bf16.mxu0 0
        %4139 = vmatpush1.bf16.msra.mxu0 %v4131
        %4140 = vmatprep.subr.bf16.mxu0 0
        %4141 = vmatpush1.bf16.msra.mxu0 %v4132
        %4142 = vmatprep.subr.bf16.mxu0 0
        %4143 = vmatpush1.bf16.msra.mxu0 0
        %4144 = vmatprep.subr.bf16.mxu0 0
        %4145 = vmatpush1.bf16.msra.mxu0 0
        %4146 = vmatprep.subr.bf16.mxu0 0
        %4147 = vmatpush1.bf16.msra.mxu0 0
        %4148 = vmatprep.subr.bf16.mxu0 0
        %4149 = vmatpush1.bf16.msra.mxu0 0
        %4150 = vmatprep.subr.bf16.mxu0 0
        %4151 = vmatpush1.bf16.msra.mxu0 0
        %4152 = vmatprep.subr.bf16.mxu0 0
        %4153 = vmatpush1.bf16.msra.mxu0 0
        %4154 = vmatprep.subr.bf16.mxu0 0
        %4155 = vmatpush1.bf16.msra.mxu0 0
        %4156 = vmatprep.subr.bf16.mxu0 0
        %4157 = vmatpush1.bf16.msra.mxu0 0
        %4158 = vmatprep.subr.bf16.mxu0 0
        %4159 = vmatpush1.bf16.msra.mxu0 0
        %4160 = vmatprep.subr.bf16.mxu0 0
        %4161 = vmatpush1.bf16.msra.mxu0 0
        %4162 = vmatprep.subr.bf16.mxu0 0
        %4163 = vmatpush1.bf16.msra.mxu0 0
        %4164 = vmatprep.subr.bf16.mxu0 0
        %4165 = vmatpush1.bf16.msra.mxu0 0
        %4166 = vmatprep.subr.bf16.mxu0 0
        %4167 = vmatpush1.bf16.msra.mxu0 0
        %4168 = vmatprep.subr.bf16.mxu0 0
        %4169 = vmatpush1.bf16.msra.mxu0 0
        %4170 = vmatprep.mubr.bf16.mxu0 0
        %4171 = vmatmul.mubr.bf16.gmra.mrb[0].mxu0 %v4136
        %v4172 = vpop.f32.mrb[0].mxu0
        %v4173 = vadd.f32 0.0, %v4172
        %v4174 = vpop.f32.mrb[0].mxu0
        %v4175 = vpop.f32.mrb[0].mxu0
        %v4176 = vpop.f32.mrb[0].mxu0
        %4177 = vdwg.mxu0
        %v4178 = vadd.f32 %v4071, %v4173
        %s4179 = scalar_lea.vmem %s7, 14
        %v4180 = vld [vmem:[%s4179] sm:$0x3]
        %v4182 = vsel %vm2570, %v4180, 0
        %4184 = vmatprep.subr.bf16.mxu0 0
        %4185 = vmatpush1.bf16.msra.mxu0 %v3432
        %4186 = vmatprep.subr.bf16.mxu0 0
        %4187 = vmatpush1.bf16.msra.mxu0 0
        %4188 = vmatprep.subr.bf16.mxu0 0
        %4189 = vmatpush1.bf16.msra.mxu0 0
        %4190 = vmatprep.subr.bf16.mxu0 0
        %4191 = vmatpush1.bf16.msra.mxu0 0
        %4192 = vmatprep.subr.bf16.mxu0 0
        %4193 = vmatpush1.bf16.msra.mxu0 0
        %4194 = vmatprep.subr.bf16.mxu0 0
        %4195 = vmatpush1.bf16.msra.mxu0 0
        %4196 = vmatprep.subr.bf16.mxu0 0
        %4197 = vmatpush1.bf16.msra.mxu0 0
        %4198 = vmatprep.subr.bf16.mxu0 0
        %4199 = vmatpush1.bf16.msra.mxu0 0
        %4200 = vmatprep.subr.bf16.mxu0 0
        %4201 = vmatpush1.bf16.msra.mxu0 0
        %4202 = vmatprep.subr.bf16.mxu0 0
        %4203 = vmatpush1.bf16.msra.mxu0 0
        %4204 = vmatprep.subr.bf16.mxu0 0
        %4205 = vmatpush1.bf16.msra.mxu0 0
        %4206 = vmatprep.subr.bf16.mxu0 0
        %4207 = vmatpush1.bf16.msra.mxu0 0
        %4208 = vmatprep.subr.bf16.mxu0 0
        %4209 = vmatpush1.bf16.msra.mxu0 0
        %4210 = vmatprep.subr.bf16.mxu0 0
        %4211 = vmatpush1.bf16.msra.mxu0 0
        %4212 = vmatprep.subr.bf16.mxu0 0
        %4213 = vmatpush1.bf16.msra.mxu0 0
        %4214 = vmatprep.subr.bf16.mxu0 0
        %4215 = vmatpush1.bf16.msra.mxu0 0
        %4216 = vmatprep.mubr.bf16.mxu0 0
        %4217 = vmatmul.mubr.bf16.gmra.mrb[0].mxu0 %v4182
        %v4218 = vpop.f32.mrb[0].mxu0
        %v4219 = vadd.f32 0.0, %v4218
        %v4220 = vpop.f32.mrb[0].mxu0
        %v4221 = vpop.f32.mrb[0].mxu0
        %v4222 = vpop.f32.mrb[0].mxu0
        %4223 = vdwg.mxu0
        %v4224 = vpack.c.bf16 %v4219, %v4219
        %s4225 = scalar_lea.vmem %s8, 112
        %v4226 = vld [vmem:[%s4225] sm:$0xf]
        %v4227 = vld [vmem:[%s4225 + $0x4] sm:$0xf]
        %v4228 = vld [vmem:[%s4225 + $0x8] sm:$0xf]
        %v4229 = vld [vmem:[%s4225 + $0xc] sm:$0xf]
        %v4234 = vunpack.c.l.b16 %v4226
        %v4235 = vunpack.c.l.b16 %v4227
        %v4236 = vunpack.c.l.b16 %v4228
        %v4237 = vunpack.c.l.b16 %v4229
        %v4238 = vpack.c.b16 %v4235, %v4234
        %v4239 = vpack.c.b16 %v4237, %v4236
        %v4243 = vsel %vm3545, %v4224, 0
        %4245 = vmatprep.subr.bf16.mxu0 0
        %4246 = vmatpush1.bf16.msra.mxu0 %v4238
        %4247 = vmatprep.subr.bf16.mxu0 0
        %4248 = vmatpush1.bf16.msra.mxu0 %v4239
        %4249 = vmatprep.subr.bf16.mxu0 0
        %4250 = vmatpush1.bf16.msra.mxu0 0
        %4251 = vmatprep.subr.bf16.mxu0 0
        %4252 = vmatpush1.bf16.msra.mxu0 0
        %4253 = vmatprep.subr.bf16.mxu0 0
        %4254 = vmatpush1.bf16.msra.mxu0 0
        %4255 = vmatprep.subr.bf16.mxu0 0
        %4256 = vmatpush1.bf16.msra.mxu0 0
        %4257 = vmatprep.subr.bf16.mxu0 0
        %4258 = vmatpush1.bf16.msra.mxu0 0
        %4259 = vmatprep.subr.bf16.mxu0 0
        %4260 = vmatpush1.bf16.msra.mxu0 0
        %4261 = vmatprep.subr.bf16.mxu0 0
        %4262 = vmatpush1.bf16.msra.mxu0 0
        %4263 = vmatprep.subr.bf16.mxu0 0
        %4264 = vmatpush1.bf16.msra.mxu0 0
        %4265 = vmatprep.subr.bf16.mxu0 0
        %4266 = vmatpush1.bf16.msra.mxu0 0
        %4267 = vmatprep.subr.bf16.mxu0 0
        %4268 = vmatpush1.bf16.msra.mxu0 0
        %4269 = vmatprep.subr.bf16.mxu0 0
        %4270 = vmatpush1.bf16.msra.mxu0 0
        %4271 = vmatprep.subr.bf16.mxu0 0
        %4272 = vmatpush1.bf16.msra.mxu0 0
        %4273 = vmatprep.subr.bf16.mxu0 0
        %4274 = vmatpush1.bf16.msra.mxu0 0
        %4275 = vmatprep.subr.bf16.mxu0 0
        %4276 = vmatpush1.bf16.msra.mxu0 0
        %4277 = vmatprep.mubr.bf16.mxu0 0
        %4278 = vmatmul.mubr.bf16.gmra.mrb[0].mxu0 %v4243
        %v4279 = vpop.f32.mrb[0].mxu0
        %v4280 = vadd.f32 0.0, %v4279
        %v4281 = vpop.f32.mrb[0].mxu0
        %v4282 = vpop.f32.mrb[0].mxu0
        %v4283 = vpop.f32.mrb[0].mxu0
        %4284 = vdwg.mxu0
        %v4285 = vadd.f32 %v4178, %v4280
        %s4286 = scalar_lea.vmem %s7, 16
        %v4287 = vld [vmem:[%s4286] sm:$0x3]
        %v4289 = vsel %vm2570, %v4287, 0
        %4291 = vmatprep.subr.bf16.mxu0 0
        %4292 = vmatpush1.bf16.msra.mxu0 %v3432
        %4293 = vmatprep.subr.bf16.mxu0 0
        %4294 = vmatpush1.bf16.msra.mxu0 0
        %4295 = vmatprep.subr.bf16.mxu0 0
        %4296 = vmatpush1.bf16.msra.mxu0 0
        %4297 = vmatprep.subr.bf16.mxu0 0
        %4298 = vmatpush1.bf16.msra.mxu0 0
        %4299 = vmatprep.subr.bf16.mxu0 0
        %4300 = vmatpush1.bf16.msra.mxu0 0
        %4301 = vmatprep.subr.bf16.mxu0 0
        %4302 = vmatpush1.bf16.msra.mxu0 0
        %4303 = vmatprep.subr.bf16.mxu0 0
        %4304 = vmatpush1.bf16.msra.mxu0 0
        %4305 = vmatprep.subr.bf16.mxu0 0
        %4306 = vmatpush1.bf16.msra.mxu0 0
        %4307 = vmatprep.subr.bf16.mxu0 0
        %4308 = vmatpush1.bf16.msra.mxu0 0
        %4309 = vmatprep.subr.bf16.mxu0 0
        %4310 = vmatpush1.bf16.msra.mxu0 0
        %4311 = vmatprep.subr.bf16.mxu0 0
        %4312 = vmatpush1.bf16.msra.mxu0 0
        %4313 = vmatprep.subr.bf16.mxu0 0
        %4314 = vmatpush1.bf16.msra.mxu0 0
        %4315 = vmatprep.subr.bf16.mxu0 0
        %4316 = vmatpush1.bf16.msra.mxu0 0
        %4317 = vmatprep.subr.bf16.mxu0 0
        %4318 = vmatpush1.bf16.msra.mxu0 0
        %4319 = vmatprep.subr.bf16.mxu0 0
        %4320 = vmatpush1.bf16.msra.mxu0 0
        %4321 = vmatprep.subr.bf16.mxu0 0
        %4322 = vmatpush1.bf16.msra.mxu0 0
        %4323 = vmatprep.mubr.bf16.mxu0 0
        %4324 = vmatmul.mubr.bf16.gmra.mrb[0].mxu0 %v4289
        %v4325 = vpop.f32.mrb[0].mxu0
        %v4326 = vadd.f32 0.0, %v4325
        %v4327 = vpop.f32.mrb[0].mxu0
        %v4328 = vpop.f32.mrb[0].mxu0
        %v4329 = vpop.f32.mrb[0].mxu0
        %4330 = vdwg.mxu0
        %v4331 = vpack.c.bf16 %v4326, %v4326
        %s4332 = scalar_lea.vmem %s8, 128
        %v4333 = vld [vmem:[%s4332] sm:$0xf]
        %v4334 = vld [vmem:[%s4332 + $0x4] sm:$0xf]
        %v4335 = vld [vmem:[%s4332 + $0x8] sm:$0xf]
        %v4336 = vld [vmem:[%s4332 + $0xc] sm:$0xf]
        %v4341 = vunpack.c.l.b16 %v4333
        %v4342 = vunpack.c.l.b16 %v4334
        %v4343 = vunpack.c.l.b16 %v4335
        %v4344 = vunpack.c.l.b16 %v4336
        %v4345 = vpack.c.b16 %v4342, %v4341
        %v4346 = vpack.c.b16 %v4344, %v4343
        %v4350 = vsel %vm3545, %v4331, 0
        %4352 = vmatprep.subr.bf16.mxu0 0
        %4353 = vmatpush1.bf16.msra.mxu0 %v4345
        %4354 = vmatprep.subr.bf16.mxu0 0
        %4355 = vmatpush1.bf16.msra.mxu0 %v4346
        %4356 = vmatprep.subr.bf16.mxu0 0
        %4357 = vmatpush1.bf16.msra.mxu0 0
        %4358 = vmatprep.subr.bf16.mxu0 0
        %4359 = vmatpush1.bf16.msra.mxu0 0
        %4360 = vmatprep.subr.bf16.mxu0 0
        %4361 = vmatpush1.bf16.msra.mxu0 0
        %4362 = vmatprep.subr.bf16.mxu0 0
        %4363 = vmatpush1.bf16.msra.mxu0 0
        %4364 = vmatprep.subr.bf16.mxu0 0
        %4365 = vmatpush1.bf16.msra.mxu0 0
        %4366 = vmatprep.subr.bf16.mxu0 0
        %4367 = vmatpush1.bf16.msra.mxu0 0
        %4368 = vmatprep.subr.bf16.mxu0 0
        %4369 = vmatpush1.bf16.msra.mxu0 0
        %4370 = vmatprep.subr.bf16.mxu0 0
        %4371 = vmatpush1.bf16.msra.mxu0 0
        %4372 = vmatprep.subr.bf16.mxu0 0
        %4373 = vmatpush1.bf16.msra.mxu0 0
        %4374 = vmatprep.subr.bf16.mxu0 0
        %4375 = vmatpush1.bf16.msra.mxu0 0
        %4376 = vmatprep.subr.bf16.mxu0 0
        %4377 = vmatpush1.bf16.msra.mxu0 0
        %4378 = vmatprep.subr.bf16.mxu0 0
        %4379 = vmatpush1.bf16.msra.mxu0 0
        %4380 = vmatprep.subr.bf16.mxu0 0
        %4381 = vmatpush1.bf16.msra.mxu0 0
        %4382 = vmatprep.subr.bf16.mxu0 0
        %4383 = vmatpush1.bf16.msra.mxu0 0
        %4384 = vmatprep.mubr.bf16.mxu0 0
        %4385 = vmatmul.mubr.bf16.gmra.mrb[0].mxu0 %v4350
        %v4386 = vpop.f32.mrb[0].mxu0
        %v4387 = vadd.f32 0.0, %v4386
        %v4388 = vpop.f32.mrb[0].mxu0
        %v4389 = vpop.f32.mrb[0].mxu0
        %v4390 = vpop.f32.mrb[0].mxu0
        %4391 = vdwg.mxu0
        %v4392 = vadd.f32 %v4285, %v4387
        %v4393 = vld [vmem:[%s9] sm:$0x1]
        %v4395 = vlaneseq
        %v4396 = vshrl.u32 %v4395, 7
        %v4397 = vsub.s32 0, %v4396
        %v4398 = vrot.slane %v4393, %v4397
        %v4400 = vadd.f32 %v4392, %v4398
        %v4401 = vmax.f32 %v4400, 0.0
        %v4402 = vpack.c.bf16 %v4401, %v4401
        %v4403 = vld [vmem:[%s10] sm:$0x1]
        %vm4404 = vcmask 31744
        %v4406 = vsel %vm4404, %v4403, 0
        %v4409 = vsel %vm819, %v4402, 0
        %4411 = vmatprep.subr.bf16.mxu0 0
        %4412 = vmatpush1.bf16.msra.mxu0 %v4409
        %4413 = vmatprep.subr.bf16.mxu0 0
        %4414 = vmatpush1.bf16.msra.mxu0 0
        %4415 = vmatprep.subr.bf16.mxu0 0
        %4416 = vmatpush1.bf16.msra.mxu0 0
        %4417 = vmatprep.subr.bf16.mxu0 0
        %4418 = vmatpush1.bf16.msra.mxu0 0
        %4419 = vmatprep.subr.bf16.mxu0 0
        %4420 = vmatpush1.bf16.msra.mxu0 0
        %4421 = vmatprep.subr.bf16.mxu0 0
        %4422 = vmatpush1.bf16.msra.mxu0 0
        %4423 = vmatprep.subr.bf16.mxu0 0
        %4424 = vmatpush1.bf16.msra.mxu0 0
        %4425 = vmatprep.subr.bf16.mxu0 0
        %4426 = vmatpush1.bf16.msra.mxu0 0
        %4427 = vmatprep.subr.bf16.mxu0 0
        %4428 = vmatpush1.bf16.msra.mxu0 0
        %4429 = vmatprep.subr.bf16.mxu0 0
        %4430 = vmatpush1.bf16.msra.mxu0 0
        %4431 = vmatprep.subr.bf16.mxu0 0
        %4432 = vmatpush1.bf16.msra.mxu0 0
        %4433 = vmatprep.subr.bf16.mxu0 0
        %4434 = vmatpush1.bf16.msra.mxu0 0
        %4435 = vmatprep.subr.bf16.mxu0 0
        %4436 = vmatpush1.bf16.msra.mxu0 0
        %4437 = vmatprep.subr.bf16.mxu0 0
        %4438 = vmatpush1.bf16.msra.mxu0 0
        %4439 = vmatprep.subr.bf16.mxu0 0
        %4440 = vmatpush1.bf16.msra.mxu0 0
        %4441 = vmatprep.subr.bf16.mxu0 0
        %4442 = vmatpush1.bf16.msra.mxu0 0
        %4443 = vmatprep.mubr.bf16.mxu0 0
        %4444 = vmatmul.mubr.bf16.gmra.mrb[0].mxu0 %v4406
        %v4445 = vpop.f32.mrb[0].mxu0
        %v4446 = vadd.f32 0.0, %v4445
        %v4447 = vpop.f32.mrb[0].mxu0
        %v4448 = vpop.f32.mrb[0].mxu0
        %v4449 = vpop.f32.mrb[0].mxu0
        %4450 = vdwg.mxu0
        %v4451 = vpack.c.bf16 %v4446, %v4446
        %v4452 = vld [vmem:[%s11] sm:$0xf]
        %v4453 = vld [vmem:[%s11 + $0x4] sm:$0xf]
        %v4454 = vld [vmem:[%s11 + $0x8] sm:$0xf]
        %v4455 = vld [vmem:[%s11 + $0xc] sm:$0xf]
        %v4456 = vld [vmem:[%s11 + $0x10] sm:$0xf]
        %v4457 = vld [vmem:[%s11 + $0x14] sm:$0xf]
        %v4458 = vld [vmem:[%s11 + $0x18] sm:$0xf]
        %v4459 = vld [vmem:[%s11 + $0x1c] sm:$0xf]
        %s4460 = scalar_lea.vmem %s10, 1
        %v4461 = vld [vmem:[%s4460] sm:$0x1]
        %v4463 = vsel %vm4404, %v4461, 0
        %4465 = vmatprep.subr.bf16.mxu0 0
        %4466 = vmatpush1.bf16.msra.mxu0 %v4409
        %4467 = vmatprep.subr.bf16.mxu0 0
        %4468 = vmatpush1.bf16.msra.mxu0 0
        %4469 = vmatprep.subr.bf16.mxu0 0
        %4470 = vmatpush1.bf16.msra.mxu0 0
        %4471 = vmatprep.subr.bf16.mxu0 0
        %4472 = vmatpush1.bf16.msra.mxu0 0
        %4473 = vmatprep.subr.bf16.mxu0 0
        %4474 = vmatpush1.bf16.msra.mxu0 0
        %4475 = vmatprep.subr.bf16.mxu0 0
        %4476 = vmatpush1.bf16.msra.mxu0 0
        %4477 = vmatprep.subr.bf16.mxu0 0
        %4478 = vmatpush1.bf16.msra.mxu0 0
        %4479 = vmatprep.subr.bf16.mxu0 0
        %4480 = vmatpush1.bf16.msra.mxu0 0
        %4481 = vmatprep.subr.bf16.mxu0 0
        %4482 = vmatpush1.bf16.msra.mxu0 0
        %4483 = vmatprep.subr.bf16.mxu0 0
        %4484 = vmatpush1.bf16.msra.mxu0 0
        %4485 = vmatprep.subr.bf16.mxu0 0
        %4486 = vmatpush1.bf16.msra.mxu0 0
        %4487 = vmatprep.subr.bf16.mxu0 0
        %4488 = vmatpush1.bf16.msra.mxu0 0
        %4489 = vmatprep.subr.bf16.mxu0 0
        %4490 = vmatpush1.bf16.msra.mxu0 0
        %4491 = vmatprep.subr.bf16.mxu0 0
        %4492 = vmatpush1.bf16.msra.mxu0 0
        %4493 = vmatprep.subr.bf16.mxu0 0
        %4494 = vmatpush1.bf16.msra.mxu0 0
        %4495 = vmatprep.subr.bf16.mxu0 0
        %4496 = vmatpush1.bf16.msra.mxu0 0
        %4497 = vmatprep.mubr.bf16.mxu0 0
        %4498 = vmatmul.mubr.bf16.gmra.mrb[0].mxu0 %v4463
        %v4499 = vpop.f32.mrb[0].mxu0
        %v4500 = vadd.f32 0.0, %v4499
        %v4501 = vpop.f32.mrb[0].mxu0
        %v4502 = vpop.f32.mrb[0].mxu0
        %v4503 = vpop.f32.mrb[0].mxu0
        %4504 = vdwg.mxu0
        %v4505 = vpack.c.bf16 %v4500, %v4500
        %s4506 = scalar_lea.vmem %s11, 32
        %v4507 = vld [vmem:[%s4506] sm:$0xf]
        %v4508 = vld [vmem:[%s4506 + $0x4] sm:$0xf]
        %v4509 = vld [vmem:[%s4506 + $0x8] sm:$0xf]
        %v4510 = vld [vmem:[%s4506 + $0xc] sm:$0xf]
        %v4511 = vld [vmem:[%s4506 + $0x10] sm:$0xf]
        %v4512 = vld [vmem:[%s4506 + $0x14] sm:$0xf]
        %v4513 = vld [vmem:[%s4506 + $0x18] sm:$0xf]
        %v4514 = vld [vmem:[%s4506 + $0x1c] sm:$0xf]
        %v4523 = vunpack.c.l.b16 %v4507
        %v4524 = vunpack.c.l.b16 %v4508
        %v4525 = vunpack.c.l.b16 %v4509
        %v4526 = vunpack.c.l.b16 %v4510
        %v4527 = vunpack.c.l.b16 %v4511
        %v4528 = vunpack.c.l.b16 %v4512
        %v4529 = vunpack.c.l.b16 %v4513
        %v4530 = vunpack.c.l.b16 %v4514
        %v4531 = vpack.c.b16 %v4524, %v4523
        %v4532 = vpack.c.b16 %v4526, %v4525
        %v4533 = vpack.c.b16 %v4528, %v4527
        %v4534 = vpack.c.b16 %v4530, %v4529
        %v4540 = vsel %vm2460, %v4505, 0
        %4542 = vmatprep.subr.bf16.mxu0 0
        %4543 = vmatpush1.bf16.msra.mxu0 %v4531
        %4544 = vmatprep.subr.bf16.mxu0 0
        %4545 = vmatpush1.bf16.msra.mxu0 %v4532
        %4546 = vmatprep.subr.bf16.mxu0 0
        %4547 = vmatpush1.bf16.msra.mxu0 %v4533
        %4548 = vmatprep.subr.bf16.mxu0 0
        %4549 = vmatpush1.bf16.msra.mxu0 %v4534
        %4550 = vmatprep.subr.bf16.mxu0 0
        %4551 = vmatpush1.bf16.msra.mxu0 0
        %4552 = vmatprep.subr.bf16.mxu0 0
        %4553 = vmatpush1.bf16.msra.mxu0 0
        %4554 = vmatprep.subr.bf16.mxu0 0
        %4555 = vmatpush1.bf16.msra.mxu0 0
        %4556 = vmatprep.subr.bf16.mxu0 0
        %4557 = vmatpush1.bf16.msra.mxu0 0
        %4558 = vmatprep.subr.bf16.mxu0 0
        %4559 = vmatpush1.bf16.msra.mxu0 0
        %4560 = vmatprep.subr.bf16.mxu0 0
        %4561 = vmatpush1.bf16.msra.mxu0 0
        %4562 = vmatprep.subr.bf16.mxu0 0
        %4563 = vmatpush1.bf16.msra.mxu0 0
        %4564 = vmatprep.subr.bf16.mxu0 0
        %4565 = vmatpush1.bf16.msra.mxu0 0
        %4566 = vmatprep.subr.bf16.mxu0 0
        %4567 = vmatpush1.bf16.msra.mxu0 0
        %4568 = vmatprep.subr.bf16.mxu0 0
        %4569 = vmatpush1.bf16.msra.mxu0 0
        %4570 = vmatprep.subr.bf16.mxu0 0
        %4571 = vmatpush1.bf16.msra.mxu0 0
        %4572 = vmatprep.subr.bf16.mxu0 0
        %4573 = vmatpush1.bf16.msra.mxu0 0
        %4574 = vmatprep.mubr.bf16.mxu0 0
        %4575 = vmatmul.mubr.bf16.gmra.mrb[0].mxu0 %v4540
        %v4576 = vpop.f32.mrb[0].mxu0
        %v4577 = vadd.f32 0.0, %v4576
        %v4578 = vpop.f32.mrb[0].mxu0
        %v4579 = vpop.f32.mrb[0].mxu0
        %v4580 = vpop.f32.mrb[0].mxu0
        %4581 = vdwg.mxu0
        %v4590 = vunpack.c.l.b16 %v4452
        %v4591 = vunpack.c.l.b16 %v4453
        %v4592 = vunpack.c.l.b16 %v4454
        %v4593 = vunpack.c.l.b16 %v4455
        %v4594 = vunpack.c.l.b16 %v4456
        %v4595 = vunpack.c.l.b16 %v4457
        %v4596 = vunpack.c.l.b16 %v4458
        %v4597 = vunpack.c.l.b16 %v4459
        %v4598 = vpack.c.b16 %v4591, %v4590
        %v4599 = vpack.c.b16 %v4593, %v4592
        %v4600 = vpack.c.b16 %v4595, %v4594
        %v4601 = vpack.c.b16 %v4597, %v4596
        %v4607 = vsel %vm2460, %v4451, 0
        %4609 = vmatprep.subr.bf16.mxu0 0
        %4610 = vmatpush1.bf16.msra.mxu0 %v4598
        %4611 = vmatprep.subr.bf16.mxu0 0
        %4612 = vmatpush1.bf16.msra.mxu0 %v4599
        %4613 = vmatprep.subr.bf16.mxu0 0
        %4614 = vmatpush1.bf16.msra.mxu0 %v4600
        %4615 = vmatprep.subr.bf16.mxu0 0
        %4616 = vmatpush1.bf16.msra.mxu0 %v4601
        %4617 = vmatprep.subr.bf16.mxu0 0
        %4618 = vmatpush1.bf16.msra.mxu0 0
        %4619 = vmatprep.subr.bf16.mxu0 0
        %4620 = vmatpush1.bf16.msra.mxu0 0
        %4621 = vmatprep.subr.bf16.mxu0 0
        %4622 = vmatpush1.bf16.msra.mxu0 0
        %4623 = vmatprep.subr.bf16.mxu0 0
        %4624 = vmatpush1.bf16.msra.mxu0 0
        %4625 = vmatprep.subr.bf16.mxu0 0
        %4626 = vmatpush1.bf16.msra.mxu0 0
        %4627 = vmatprep.subr.bf16.mxu0 0
        %4628 = vmatpush1.bf16.msra.mxu0 0
        %4629 = vmatprep.subr.bf16.mxu0 0
        %4630 = vmatpush1.bf16.msra.mxu0 0
        %4631 = vmatprep.subr.bf16.mxu0 0
        %4632 = vmatpush1.bf16.msra.mxu0 0
        %4633 = vmatprep.subr.bf16.mxu0 0
        %4634 = vmatpush1.bf16.msra.mxu0 0
        %4635 = vmatprep.subr.bf16.mxu0 0
        %4636 = vmatpush1.bf16.msra.mxu0 0
        %4637 = vmatprep.subr.bf16.mxu0 0
        %4638 = vmatpush1.bf16.msra.mxu0 0
        %4639 = vmatprep.subr.bf16.mxu0 0
        %4640 = vmatpush1.bf16.msra.mxu0 0
        %4641 = vmatprep.mubr.bf16.mxu0 0
        %4642 = vmatmul.mubr.bf16.gmra.mrb[0].mxu0 %v4607
        %v4643 = vpop.f32.mrb[0].mxu0
        %v4644 = vadd.f32 %v4577, %v4643
        %v4645 = vpop.f32.mrb[0].mxu0
        %v4646 = vpop.f32.mrb[0].mxu0
        %v4647 = vpop.f32.mrb[0].mxu0
        %4648 = vdwg.mxu0
        %s4649 = scalar_lea.vmem %s10, 2
        %v4650 = vld [vmem:[%s4649] sm:$0x1]
        %v4652 = vsel %vm4404, %v4650, 0
        %4654 = vmatprep.subr.bf16.mxu0 0
        %4655 = vmatpush1.bf16.msra.mxu0 %v4409
        %4656 = vmatprep.subr.bf16.mxu0 0
        %4657 = vmatpush1.bf16.msra.mxu0 0
        %4658 = vmatprep.subr.bf16.mxu0 0
        %4659 = vmatpush1.bf16.msra.mxu0 0
        %4660 = vmatprep.subr.bf16.mxu0 0
        %4661 = vmatpush1.bf16.msra.mxu0 0
        %4662 = vmatprep.subr.bf16.mxu0 0
        %4663 = vmatpush1.bf16.msra.mxu0 0
        %4664 = vmatprep.subr.bf16.mxu0 0
        %4665 = vmatpush1.bf16.msra.mxu0 0
        %4666 = vmatprep.subr.bf16.mxu0 0
        %4667 = vmatpush1.bf16.msra.mxu0 0
        %4668 = vmatprep.subr.bf16.mxu0 0
        %4669 = vmatpush1.bf16.msra.mxu0 0
        %4670 = vmatprep.subr.bf16.mxu0 0
        %4671 = vmatpush1.bf16.msra.mxu0 0
        %4672 = vmatprep.subr.bf16.mxu0 0
        %4673 = vmatpush1.bf16.msra.mxu0 0
        %4674 = vmatprep.subr.bf16.mxu0 0
        %4675 = vmatpush1.bf16.msra.mxu0 0
        %4676 = vmatprep.subr.bf16.mxu0 0
        %4677 = vmatpush1.bf16.msra.mxu0 0
        %4678 = vmatprep.subr.bf16.mxu0 0
        %4679 = vmatpush1.bf16.msra.mxu0 0
        %4680 = vmatprep.subr.bf16.mxu0 0
        %4681 = vmatpush1.bf16.msra.mxu0 0
        %4682 = vmatprep.subr.bf16.mxu0 0
        %4683 = vmatpush1.bf16.msra.mxu0 0
        %4684 = vmatprep.subr.bf16.mxu0 0
        %4685 = vmatpush1.bf16.msra.mxu0 0
        %4686 = vmatprep.mubr.bf16.mxu0 0
        %4687 = vmatmul.mubr.bf16.gmra.mrb[0].mxu0 %v4652
        %v4688 = vpop.f32.mrb[0].mxu0
        %v4689 = vadd.f32 0.0, %v4688
        %v4690 = vpop.f32.mrb[0].mxu0
        %v4691 = vpop.f32.mrb[0].mxu0
        %v4692 = vpop.f32.mrb[0].mxu0
        %4693 = vdwg.mxu0
        %v4694 = vpack.c.bf16 %v4689, %v4689
        %s4695 = scalar_lea.vmem %s11, 64
        %v4696 = vld [vmem:[%s4695] sm:$0xf]
        %v4697 = vld [vmem:[%s4695 + $0x4] sm:$0xf]
        %v4698 = vld [vmem:[%s4695 + $0x8] sm:$0xf]
        %v4699 = vld [vmem:[%s4695 + $0xc] sm:$0xf]
        %v4700 = vld [vmem:[%s4695 + $0x10] sm:$0xf]
        %v4701 = vld [vmem:[%s4695 + $0x14] sm:$0xf]
        %v4702 = vld [vmem:[%s4695 + $0x18] sm:$0xf]
        %v4703 = vld [vmem:[%s4695 + $0x1c] sm:$0xf]
        %v4712 = vunpack.c.l.b16 %v4696
        %v4713 = vunpack.c.l.b16 %v4697
        %v4714 = vunpack.c.l.b16 %v4698
        %v4715 = vunpack.c.l.b16 %v4699
        %v4716 = vunpack.c.l.b16 %v4700
        %v4717 = vunpack.c.l.b16 %v4701
        %v4718 = vunpack.c.l.b16 %v4702
        %v4719 = vunpack.c.l.b16 %v4703
        %v4720 = vpack.c.b16 %v4713, %v4712
        %v4721 = vpack.c.b16 %v4715, %v4714
        %v4722 = vpack.c.b16 %v4717, %v4716
        %v4723 = vpack.c.b16 %v4719, %v4718
        %v4729 = vsel %vm2460, %v4694, 0
        %4731 = vmatprep.subr.bf16.mxu0 0
        %4732 = vmatpush1.bf16.msra.mxu0 %v4720
        %4733 = vmatprep.subr.bf16.mxu0 0
        %4734 = vmatpush1.bf16.msra.mxu0 %v4721
        %4735 = vmatprep.subr.bf16.mxu0 0
        %4736 = vmatpush1.bf16.msra.mxu0 %v4722
        %4737 = vmatprep.subr.bf16.mxu0 0
        %4738 = vmatpush1.bf16.msra.mxu0 %v4723
        %4739 = vmatprep.subr.bf16.mxu0 0
        %4740 = vmatpush1.bf16.msra.mxu0 0
        %4741 = vmatprep.subr.bf16.mxu0 0
        %4742 = vmatpush1.bf16.msra.mxu0 0
        %4743 = vmatprep.subr.bf16.mxu0 0
        %4744 = vmatpush1.bf16.msra.mxu0 0
        %4745 = vmatprep.subr.bf16.mxu0 0
        %4746 = vmatpush1.bf16.msra.mxu0 0
        %4747 = vmatprep.subr.bf16.mxu0 0
        %4748 = vmatpush1.bf16.msra.mxu0 0
        %4749 = vmatprep.subr.bf16.mxu0 0
        %4750 = vmatpush1.bf16.msra.mxu0 0
        %4751 = vmatprep.subr.bf16.mxu0 0
        %4752 = vmatpush1.bf16.msra.mxu0 0
        %4753 = vmatprep.subr.bf16.mxu0 0
        %4754 = vmatpush1.bf16.msra.mxu0 0
        %4755 = vmatprep.subr.bf16.mxu0 0
        %4756 = vmatpush1.bf16.msra.mxu0 0
        %4757 = vmatprep.subr.bf16.mxu0 0
        %4758 = vmatpush1.bf16.msra.mxu0 0
        %4759 = vmatprep.subr.bf16.mxu0 0
        %4760 = vmatpush1.bf16.msra.mxu0 0
        %4761 = vmatprep.subr.bf16.mxu0 0
        %4762 = vmatpush1.bf16.msra.mxu0 0
        %4763 = vmatprep.mubr.bf16.mxu0 0
        %4764 = vmatmul.mubr.bf16.gmra.mrb[0].mxu0 %v4729
        %v4765 = vpop.f32.mrb[0].mxu0
        %v4766 = vadd.f32 0.0, %v4765
        %v4767 = vpop.f32.mrb[0].mxu0
        %v4768 = vpop.f32.mrb[0].mxu0
        %v4769 = vpop.f32.mrb[0].mxu0
        %4770 = vdwg.mxu0
        %v4771 = vadd.f32 %v4644, %v4766
        %s4772 = scalar_lea.vmem %s10, 3
        %v4773 = vld [vmem:[%s4772] sm:$0x1]
        %v4775 = vsel %vm4404, %v4773, 0
        %4777 = vmatprep.subr.bf16.mxu0 0
        %4778 = vmatpush1.bf16.msra.mxu0 %v4409
        %4779 = vmatprep.subr.bf16.mxu0 0
        %4780 = vmatpush1.bf16.msra.mxu0 0
        %4781 = vmatprep.subr.bf16.mxu0 0
        %4782 = vmatpush1.bf16.msra.mxu0 0
        %4783 = vmatprep.subr.bf16.mxu0 0
        %4784 = vmatpush1.bf16.msra.mxu0 0
        %4785 = vmatprep.subr.bf16.mxu0 0
        %4786 = vmatpush1.bf16.msra.mxu0 0
        %4787 = vmatprep.subr.bf16.mxu0 0
        %4788 = vmatpush1.bf16.msra.mxu0 0
        %4789 = vmatprep.subr.bf16.mxu0 0
        %4790 = vmatpush1.bf16.msra.mxu0 0
        %4791 = vmatprep.subr.bf16.mxu0 0
        %4792 = vmatpush1.bf16.msra.mxu0 0
        %4793 = vmatprep.subr.bf16.mxu0 0
        %4794 = vmatpush1.bf16.msra.mxu0 0
        %4795 = vmatprep.subr.bf16.mxu0 0
        %4796 = vmatpush1.bf16.msra.mxu0 0
        %4797 = vmatprep.subr.bf16.mxu0 0
        %4798 = vmatpush1.bf16.msra.mxu0 0
        %4799 = vmatprep.subr.bf16.mxu0 0
        %4800 = vmatpush1.bf16.msra.mxu0 0
        %4801 = vmatprep.subr.bf16.mxu0 0
        %4802 = vmatpush1.bf16.msra.mxu0 0
        %4803 = vmatprep.subr.bf16.mxu0 0
        %4804 = vmatpush1.bf16.msra.mxu0 0
        %4805 = vmatprep.subr.bf16.mxu0 0
        %4806 = vmatpush1.bf16.msra.mxu0 0
        %4807 = vmatprep.subr.bf16.mxu0 0
        %4808 = vmatpush1.bf16.msra.mxu0 0
        %4809 = vmatprep.mubr.bf16.mxu0 0
        %4810 = vmatmul.mubr.bf16.gmra.mrb[0].mxu0 %v4775
        %v4811 = vpop.f32.mrb[0].mxu0
        %v4812 = vadd.f32 0.0, %v4811
        %v4813 = vpop.f32.mrb[0].mxu0
        %v4814 = vpop.f32.mrb[0].mxu0
        %v4815 = vpop.f32.mrb[0].mxu0
        %4816 = vdwg.mxu0
        %v4817 = vpack.c.bf16 %v4812, %v4812
        %s4818 = scalar_lea.vmem %s11, 96
        %v4819 = vld [vmem:[%s4818] sm:$0xf]
        %v4820 = vld [vmem:[%s4818 + $0x4] sm:$0xf]
        %v4821 = vld [vmem:[%s4818 + $0x8] sm:$0xf]
        %v4822 = vld [vmem:[%s4818 + $0xc] sm:$0xf]
        %v4823 = vld [vmem:[%s4818 + $0x10] sm:$0xf]
        %v4824 = vld [vmem:[%s4818 + $0x14] sm:$0xf]
        %v4825 = vld [vmem:[%s4818 + $0x18] sm:$0xf]
        %v4826 = vld [vmem:[%s4818 + $0x1c] sm:$0xf]
        %v4835 = vunpack.c.l.b16 %v4819
        %v4836 = vunpack.c.l.b16 %v4820
        %v4837 = vunpack.c.l.b16 %v4821
        %v4838 = vunpack.c.l.b16 %v4822
        %v4839 = vunpack.c.l.b16 %v4823
        %v4840 = vunpack.c.l.b16 %v4824
        %v4841 = vunpack.c.l.b16 %v4825
        %v4842 = vunpack.c.l.b16 %v4826
        %v4843 = vpack.c.b16 %v4836, %v4835
        %v4844 = vpack.c.b16 %v4838, %v4837
        %v4845 = vpack.c.b16 %v4840, %v4839
        %v4846 = vpack.c.b16 %v4842, %v4841
        %v4852 = vsel %vm2460, %v4817, 0
        %4854 = vmatprep.subr.bf16.mxu0 0
        %4855 = vmatpush1.bf16.msra.mxu0 %v4843
        %4856 = vmatprep.subr.bf16.mxu0 0
        %4857 = vmatpush1.bf16.msra.mxu0 %v4844
        %4858 = vmatprep.subr.bf16.mxu0 0
        %4859 = vmatpush1.bf16.msra.mxu0 %v4845
        %4860 = vmatprep.subr.bf16.mxu0 0
        %4861 = vmatpush1.bf16.msra.mxu0 %v4846
        %4862 = vmatprep.subr.bf16.mxu0 0
        %4863 = vmatpush1.bf16.msra.mxu0 0
        %4864 = vmatprep.subr.bf16.mxu0 0
        %4865 = vmatpush1.bf16.msra.mxu0 0
        %4866 = vmatprep.subr.bf16.mxu0 0
        %4867 = vmatpush1.bf16.msra.mxu0 0
        %4868 = vmatprep.subr.bf16.mxu0 0
        %4869 = vmatpush1.bf16.msra.mxu0 0
        %4870 = vmatprep.subr.bf16.mxu0 0
        %4871 = vmatpush1.bf16.msra.mxu0 0
        %4872 = vmatprep.subr.bf16.mxu0 0
        %4873 = vmatpush1.bf16.msra.mxu0 0
        %4874 = vmatprep.subr.bf16.mxu0 0
        %4875 = vmatpush1.bf16.msra.mxu0 0
        %4876 = vmatprep.subr.bf16.mxu0 0
        %4877 = vmatpush1.bf16.msra.mxu0 0
        %4878 = vmatprep.subr.bf16.mxu0 0
        %4879 = vmatpush1.bf16.msra.mxu0 0
        %4880 = vmatprep.subr.bf16.mxu0 0
        %4881 = vmatpush1.bf16.msra.mxu0 0
        %4882 = vmatprep.subr.bf16.mxu0 0
        %4883 = vmatpush1.bf16.msra.mxu0 0
        %4884 = vmatprep.subr.bf16.mxu0 0
        %4885 = vmatpush1.bf16.msra.mxu0 0
        %4886 = vmatprep.mubr.bf16.mxu0 0
        %4887 = vmatmul.mubr.bf16.gmra.mrb[0].mxu0 %v4852
        %v4888 = vpop.f32.mrb[0].mxu0
        %v4889 = vadd.f32 0.0, %v4888
        %v4890 = vpop.f32.mrb[0].mxu0
        %v4891 = vpop.f32.mrb[0].mxu0
        %v4892 = vpop.f32.mrb[0].mxu0
        %4893 = vdwg.mxu0
        %v4894 = vadd.f32 %v4771, %v4889
        %s4895 = scalar_lea.vmem %s10, 4
        %v4896 = vld [vmem:[%s4895] sm:$0x1]
        %v4898 = vsel %vm4404, %v4896, 0
        %4900 = vmatprep.subr.bf16.mxu0 0
        %4901 = vmatpush1.bf16.msra.mxu0 %v4409
        %4902 = vmatprep.subr.bf16.mxu0 0
        %4903 = vmatpush1.bf16.msra.mxu0 0
        %4904 = vmatprep.subr.bf16.mxu0 0
        %4905 = vmatpush1.bf16.msra.mxu0 0
        %4906 = vmatprep.subr.bf16.mxu0 0
        %4907 = vmatpush1.bf16.msra.mxu0 0
        %4908 = vmatprep.subr.bf16.mxu0 0
        %4909 = vmatpush1.bf16.msra.mxu0 0
        %4910 = vmatprep.subr.bf16.mxu0 0
        %4911 = vmatpush1.bf16.msra.mxu0 0
        %4912 = vmatprep.subr.bf16.mxu0 0
        %4913 = vmatpush1.bf16.msra.mxu0 0
        %4914 = vmatprep.subr.bf16.mxu0 0
        %4915 = vmatpush1.bf16.msra.mxu0 0
        %4916 = vmatprep.subr.bf16.mxu0 0
        %4917 = vmatpush1.bf16.msra.mxu0 0
        %4918 = vmatprep.subr.bf16.mxu0 0
        %4919 = vmatpush1.bf16.msra.mxu0 0
        %4920 = vmatprep.subr.bf16.mxu0 0
        %4921 = vmatpush1.bf16.msra.mxu0 0
        %4922 = vmatprep.subr.bf16.mxu0 0
        %4923 = vmatpush1.bf16.msra.mxu0 0
        %4924 = vmatprep.subr.bf16.mxu0 0
        %4925 = vmatpush1.bf16.msra.mxu0 0
        %4926 = vmatprep.subr.bf16.mxu0 0
        %4927 = vmatpush1.bf16.msra.mxu0 0
        %4928 = vmatprep.subr.bf16.mxu0 0
        %4929 = vmatpush1.bf16.msra.mxu0 0
        %4930 = vmatprep.subr.bf16.mxu0 0
        %4931 = vmatpush1.bf16.msra.mxu0 0
        %4932 = vmatprep.mubr.bf16.mxu0 0
        %4933 = vmatmul.mubr.bf16.gmra.mrb[0].mxu0 %v4898
        %v4934 = vpop.f32.mrb[0].mxu0
        %v4935 = vadd.f32 0.0, %v4934
        %v4936 = vpop.f32.mrb[0].mxu0
        %v4937 = vpop.f32.mrb[0].mxu0
        %v4938 = vpop.f32.mrb[0].mxu0
        %4939 = vdwg.mxu0
        %v4940 = vpack.c.bf16 %v4935, %v4935
        %s4941 = scalar_lea.vmem %s11, 128
        %v4942 = vld [vmem:[%s4941] sm:$0xf]
        %v4943 = vld [vmem:[%s4941 + $0x4] sm:$0xf]
        %v4944 = vld [vmem:[%s4941 + $0x8] sm:$0xf]
        %v4945 = vld [vmem:[%s4941 + $0xc] sm:$0xf]
        %v4946 = vld [vmem:[%s4941 + $0x10] sm:$0xf]
        %v4947 = vld [vmem:[%s4941 + $0x14] sm:$0xf]
        %v4948 = vld [vmem:[%s4941 + $0x18] sm:$0xf]
        %v4949 = vld [vmem:[%s4941 + $0x1c] sm:$0xf]
        %v4958 = vunpack.c.l.b16 %v4942
        %v4959 = vunpack.c.l.b16 %v4943
        %v4960 = vunpack.c.l.b16 %v4944
        %v4961 = vunpack.c.l.b16 %v4945
        %v4962 = vunpack.c.l.b16 %v4946
        %v4963 = vunpack.c.l.b16 %v4947
        %v4964 = vunpack.c.l.b16 %v4948
        %v4965 = vunpack.c.l.b16 %v4949
        %v4966 = vpack.c.b16 %v4959, %v4958
        %v4967 = vpack.c.b16 %v4961, %v4960
        %v4968 = vpack.c.b16 %v4963, %v4962
        %v4969 = vpack.c.b16 %v4965, %v4964
        %v4975 = vsel %vm2460, %v4940, 0
        %4977 = vmatprep.subr.bf16.mxu0 0
        %4978 = vmatpush1.bf16.msra.mxu0 %v4966
        %4979 = vmatprep.subr.bf16.mxu0 0
        %4980 = vmatpush1.bf16.msra.mxu0 %v4967
        %4981 = vmatprep.subr.bf16.mxu0 0
        %4982 = vmatpush1.bf16.msra.mxu0 %v4968
        %4983 = vmatprep.subr.bf16.mxu0 0
        %4984 = vmatpush1.bf16.msra.mxu0 %v4969
        %4985 = vmatprep.subr.bf16.mxu0 0
        %4986 = vmatpush1.bf16.msra.mxu0 0
        %4987 = vmatprep.subr.bf16.mxu0 0
        %4988 = vmatpush1.bf16.msra.mxu0 0
        %4989 = vmatprep.subr.bf16.mxu0 0
        %4990 = vmatpush1.bf16.msra.mxu0 0
        %4991 = vmatprep.subr.bf16.mxu0 0
        %4992 = vmatpush1.bf16.msra.mxu0 0
        %4993 = vmatprep.subr.bf16.mxu0 0
        %4994 = vmatpush1.bf16.msra.mxu0 0
        %4995 = vmatprep.subr.bf16.mxu0 0
        %4996 = vmatpush1.bf16.msra.mxu0 0
        %4997 = vmatprep.subr.bf16.mxu0 0
        %4998 = vmatpush1.bf16.msra.mxu0 0
        %4999 = vmatprep.subr.bf16.mxu0 0
        %5000 = vmatpush1.bf16.msra.mxu0 0
        %5001 = vmatprep.subr.bf16.mxu0 0
        %5002 = vmatpush1.bf16.msra.mxu0 0
        %5003 = vmatprep.subr.bf16.mxu0 0
        %5004 = vmatpush1.bf16.msra.mxu0 0
        %5005 = vmatprep.subr.bf16.mxu0 0
        %5006 = vmatpush1.bf16.msra.mxu0 0
        %5007 = vmatprep.subr.bf16.mxu0 0
        %5008 = vmatpush1.bf16.msra.mxu0 0
        %5009 = vmatprep.mubr.bf16.mxu0 0
        %5010 = vmatmul.mubr.bf16.gmra.mrb[0].mxu0 %v4975
        %v5011 = vpop.f32.mrb[0].mxu0
        %v5012 = vadd.f32 0.0, %v5011
        %v5013 = vpop.f32.mrb[0].mxu0
        %v5014 = vpop.f32.mrb[0].mxu0
        %v5015 = vpop.f32.mrb[0].mxu0
        %5016 = vdwg.mxu0
        %v5017 = vadd.f32 %v4894, %v5012
        %s5018 = scalar_lea.vmem %s10, 5
        %v5019 = vld [vmem:[%s5018] sm:$0x1]
        %v5021 = vsel %vm4404, %v5019, 0
        %5023 = vmatprep.subr.bf16.mxu0 0
        %5024 = vmatpush1.bf16.msra.mxu0 %v4409
        %5025 = vmatprep.subr.bf16.mxu0 0
        %5026 = vmatpush1.bf16.msra.mxu0 0
        %5027 = vmatprep.subr.bf16.mxu0 0
        %5028 = vmatpush1.bf16.msra.mxu0 0
        %5029 = vmatprep.subr.bf16.mxu0 0
        %5030 = vmatpush1.bf16.msra.mxu0 0
        %5031 = vmatprep.subr.bf16.mxu0 0
        %5032 = vmatpush1.bf16.msra.mxu0 0
        %5033 = vmatprep.subr.bf16.mxu0 0
        %5034 = vmatpush1.bf16.msra.mxu0 0
        %5035 = vmatprep.subr.bf16.mxu0 0
        %5036 = vmatpush1.bf16.msra.mxu0 0
        %5037 = vmatprep.subr.bf16.mxu0 0
        %5038 = vmatpush1.bf16.msra.mxu0 0
        %5039 = vmatprep.subr.bf16.mxu0 0
        %5040 = vmatpush1.bf16.msra.mxu0 0
        %5041 = vmatprep.subr.bf16.mxu0 0
        %5042 = vmatpush1.bf16.msra.mxu0 0
        %5043 = vmatprep.subr.bf16.mxu0 0
        %5044 = vmatpush1.bf16.msra.mxu0 0
        %5045 = vmatprep.subr.bf16.mxu0 0
        %5046 = vmatpush1.bf16.msra.mxu0 0
        %5047 = vmatprep.subr.bf16.mxu0 0
        %5048 = vmatpush1.bf16.msra.mxu0 0
        %5049 = vmatprep.subr.bf16.mxu0 0
        %5050 = vmatpush1.bf16.msra.mxu0 0
        %5051 = vmatprep.subr.bf16.mxu0 0
        %5052 = vmatpush1.bf16.msra.mxu0 0
        %5053 = vmatprep.subr.bf16.mxu0 0
        %5054 = vmatpush1.bf16.msra.mxu0 0
        %5055 = vmatprep.mubr.bf16.mxu0 0
        %5056 = vmatmul.mubr.bf16.gmra.mrb[0].mxu0 %v5021
        %v5057 = vpop.f32.mrb[0].mxu0
        %v5058 = vadd.f32 0.0, %v5057
        %v5059 = vpop.f32.mrb[0].mxu0
        %v5060 = vpop.f32.mrb[0].mxu0
        %v5061 = vpop.f32.mrb[0].mxu0
        %5062 = vdwg.mxu0
        %v5063 = vpack.c.bf16 %v5058, %v5058
        %s5064 = scalar_lea.vmem %s11, 160
        %v5065 = vld [vmem:[%s5064] sm:$0xf]
        %v5066 = vld [vmem:[%s5064 + $0x4] sm:$0xf]
        %v5067 = vld [vmem:[%s5064 + $0x8] sm:$0xf]
        %v5068 = vld [vmem:[%s5064 + $0xc] sm:$0xf]
        %v5069 = vld [vmem:[%s5064 + $0x10] sm:$0xf]
        %v5070 = vld [vmem:[%s5064 + $0x14] sm:$0xf]
        %v5071 = vld [vmem:[%s5064 + $0x18] sm:$0xf]
        %v5072 = vld [vmem:[%s5064 + $0x1c] sm:$0xf]
        %v5081 = vunpack.c.l.b16 %v5065
        %v5082 = vunpack.c.l.b16 %v5066
        %v5083 = vunpack.c.l.b16 %v5067
        %v5084 = vunpack.c.l.b16 %v5068
        %v5085 = vunpack.c.l.b16 %v5069
        %v5086 = vunpack.c.l.b16 %v5070
        %v5087 = vunpack.c.l.b16 %v5071
        %v5088 = vunpack.c.l.b16 %v5072
        %v5089 = vpack.c.b16 %v5082, %v5081
        %v5090 = vpack.c.b16 %v5084, %v5083
        %v5091 = vpack.c.b16 %v5086, %v5085
        %v5092 = vpack.c.b16 %v5088, %v5087
        %v5098 = vsel %vm2460, %v5063, 0
        %5100 = vmatprep.subr.bf16.mxu0 0
        %5101 = vmatpush1.bf16.msra.mxu0 %v5089
        %5102 = vmatprep.subr.bf16.mxu0 0
        %5103 = vmatpush1.bf16.msra.mxu0 %v5090
        %5104 = vmatprep.subr.bf16.mxu0 0
        %5105 = vmatpush1.bf16.msra.mxu0 %v5091
        %5106 = vmatprep.subr.bf16.mxu0 0
        %5107 = vmatpush1.bf16.msra.mxu0 %v5092
        %5108 = vmatprep.subr.bf16.mxu0 0
        %5109 = vmatpush1.bf16.msra.mxu0 0
        %5110 = vmatprep.subr.bf16.mxu0 0
        %5111 = vmatpush1.bf16.msra.mxu0 0
        %5112 = vmatprep.subr.bf16.mxu0 0
        %5113 = vmatpush1.bf16.msra.mxu0 0
        %5114 = vmatprep.subr.bf16.mxu0 0
        %5115 = vmatpush1.bf16.msra.mxu0 0
        %5116 = vmatprep.subr.bf16.mxu0 0
        %5117 = vmatpush1.bf16.msra.mxu0 0
        %5118 = vmatprep.subr.bf16.mxu0 0
        %5119 = vmatpush1.bf16.msra.mxu0 0
        %5120 = vmatprep.subr.bf16.mxu0 0
        %5121 = vmatpush1.bf16.msra.mxu0 0
        %5122 = vmatprep.subr.bf16.mxu0 0
        %5123 = vmatpush1.bf16.msra.mxu0 0
        %5124 = vmatprep.subr.bf16.mxu0 0
        %5125 = vmatpush1.bf16.msra.mxu0 0
        %5126 = vmatprep.subr.bf16.mxu0 0
        %5127 = vmatpush1.bf16.msra.mxu0 0
        %5128 = vmatprep.subr.bf16.mxu0 0
        %5129 = vmatpush1.bf16.msra.mxu0 0
        %5130 = vmatprep.subr.bf16.mxu0 0
        %5131 = vmatpush1.bf16.msra.mxu0 0
        %5132 = vmatprep.mubr.bf16.mxu0 0
        %5133 = vmatmul.mubr.bf16.gmra.mrb[0].mxu0 %v5098
        %v5134 = vpop.f32.mrb[0].mxu0
        %v5135 = vadd.f32 0.0, %v5134
        %v5136 = vpop.f32.mrb[0].mxu0
        %v5137 = vpop.f32.mrb[0].mxu0
        %v5138 = vpop.f32.mrb[0].mxu0
        %5139 = vdwg.mxu0
        %v5140 = vadd.f32 %v5017, %v5135
        %s5141 = scalar_lea.vmem %s10, 6
        %v5142 = vld [vmem:[%s5141] sm:$0x1]
        %v5144 = vsel %vm4404, %v5142, 0
        %5146 = vmatprep.subr.bf16.mxu0 0
        %5147 = vmatpush1.bf16.msra.mxu0 %v4409
        %5148 = vmatprep.subr.bf16.mxu0 0
        %5149 = vmatpush1.bf16.msra.mxu0 0
        %5150 = vmatprep.subr.bf16.mxu0 0
        %5151 = vmatpush1.bf16.msra.mxu0 0
        %5152 = vmatprep.subr.bf16.mxu0 0
        %5153 = vmatpush1.bf16.msra.mxu0 0
        %5154 = vmatprep.subr.bf16.mxu0 0
        %5155 = vmatpush1.bf16.msra.mxu0 0
        %5156 = vmatprep.subr.bf16.mxu0 0
        %5157 = vmatpush1.bf16.msra.mxu0 0
        %5158 = vmatprep.subr.bf16.mxu0 0
        %5159 = vmatpush1.bf16.msra.mxu0 0
        %5160 = vmatprep.subr.bf16.mxu0 0
        %5161 = vmatpush1.bf16.msra.mxu0 0
        %5162 = vmatprep.subr.bf16.mxu0 0
        %5163 = vmatpush1.bf16.msra.mxu0 0
        %5164 = vmatprep.subr.bf16.mxu0 0
        %5165 = vmatpush1.bf16.msra.mxu0 0
        %5166 = vmatprep.subr.bf16.mxu0 0
        %5167 = vmatpush1.bf16.msra.mxu0 0
        %5168 = vmatprep.subr.bf16.mxu0 0
        %5169 = vmatpush1.bf16.msra.mxu0 0
        %5170 = vmatprep.subr.bf16.mxu0 0
        %5171 = vmatpush1.bf16.msra.mxu0 0
        %5172 = vmatprep.subr.bf16.mxu0 0
        %5173 = vmatpush1.bf16.msra.mxu0 0
        %5174 = vmatprep.subr.bf16.mxu0 0
        %5175 = vmatpush1.bf16.msra.mxu0 0
        %5176 = vmatprep.subr.bf16.mxu0 0
        %5177 = vmatpush1.bf16.msra.mxu0 0
        %5178 = vmatprep.mubr.bf16.mxu0 0
        %5179 = vmatmul.mubr.bf16.gmra.mrb[0].mxu0 %v5144
        %v5180 = vpop.f32.mrb[0].mxu0
        %v5181 = vadd.f32 0.0, %v5180
        %v5182 = vpop.f32.mrb[0].mxu0
        %v5183 = vpop.f32.mrb[0].mxu0
        %v5184 = vpop.f32.mrb[0].mxu0
        %5185 = vdwg.mxu0
        %v5186 = vpack.c.bf16 %v5181, %v5181
        %s5187 = scalar_lea.vmem %s11, 192
        %v5188 = vld [vmem:[%s5187] sm:$0xf]
        %v5189 = vld [vmem:[%s5187 + $0x4] sm:$0xf]
        %v5190 = vld [vmem:[%s5187 + $0x8] sm:$0xf]
        %v5191 = vld [vmem:[%s5187 + $0xc] sm:$0xf]
        %v5192 = vld [vmem:[%s5187 + $0x10] sm:$0xf]
        %v5193 = vld [vmem:[%s5187 + $0x14] sm:$0xf]
        %v5194 = vld [vmem:[%s5187 + $0x18] sm:$0xf]
        %v5195 = vld [vmem:[%s5187 + $0x1c] sm:$0xf]
        %v5204 = vunpack.c.l.b16 %v5188
        %v5205 = vunpack.c.l.b16 %v5189
        %v5206 = vunpack.c.l.b16 %v5190
        %v5207 = vunpack.c.l.b16 %v5191
        %v5208 = vunpack.c.l.b16 %v5192
        %v5209 = vunpack.c.l.b16 %v5193
        %v5210 = vunpack.c.l.b16 %v5194
        %v5211 = vunpack.c.l.b16 %v5195
        %v5212 = vpack.c.b16 %v5205, %v5204
        %v5213 = vpack.c.b16 %v5207, %v5206
        %v5214 = vpack.c.b16 %v5209, %v5208
        %v5215 = vpack.c.b16 %v5211, %v5210
        %v5221 = vsel %vm2460, %v5186, 0
        %5223 = vmatprep.subr.bf16.mxu0 0
        %5224 = vmatpush1.bf16.msra.mxu0 %v5212
        %5225 = vmatprep.subr.bf16.mxu0 0
        %5226 = vmatpush1.bf16.msra.mxu0 %v5213
        %5227 = vmatprep.subr.bf16.mxu0 0
        %5228 = vmatpush1.bf16.msra.mxu0 %v5214
        %5229 = vmatprep.subr.bf16.mxu0 0
        %5230 = vmatpush1.bf16.msra.mxu0 %v5215
        %5231 = vmatprep.subr.bf16.mxu0 0
        %5232 = vmatpush1.bf16.msra.mxu0 0
        %5233 = vmatprep.subr.bf16.mxu0 0
        %5234 = vmatpush1.bf16.msra.mxu0 0
        %5235 = vmatprep.subr.bf16.mxu0 0
        %5236 = vmatpush1.bf16.msra.mxu0 0
        %5237 = vmatprep.subr.bf16.mxu0 0
        %5238 = vmatpush1.bf16.msra.mxu0 0
        %5239 = vmatprep.subr.bf16.mxu0 0
        %5240 = vmatpush1.bf16.msra.mxu0 0
        %5241 = vmatprep.subr.bf16.mxu0 0
        %5242 = vmatpush1.bf16.msra.mxu0 0
        %5243 = vmatprep.subr.bf16.mxu0 0
        %5244 = vmatpush1.bf16.msra.mxu0 0
        %5245 = vmatprep.subr.bf16.mxu0 0
        %5246 = vmatpush1.bf16.msra.mxu0 0
        %5247 = vmatprep.subr.bf16.mxu0 0
        %5248 = vmatpush1.bf16.msra.mxu0 0
        %5249 = vmatprep.subr.bf16.mxu0 0
        %5250 = vmatpush1.bf16.msra.mxu0 0
        %5251 = vmatprep.subr.bf16.mxu0 0
        %5252 = vmatpush1.bf16.msra.mxu0 0
        %5253 = vmatprep.subr.bf16.mxu0 0
        %5254 = vmatpush1.bf16.msra.mxu0 0
        %5255 = vmatprep.mubr.bf16.mxu0 0
        %5256 = vmatmul.mubr.bf16.gmra.mrb[0].mxu0 %v5221
        %v5257 = vpop.f32.mrb[0].mxu0
        %v5258 = vadd.f32 0.0, %v5257
        %v5259 = vpop.f32.mrb[0].mxu0
        %v5260 = vpop.f32.mrb[0].mxu0
        %v5261 = vpop.f32.mrb[0].mxu0
        %5262 = vdwg.mxu0
        %v5263 = vadd.f32 %v5140, %v5258
        %s5264 = scalar_lea.vmem %s10, 7
        %v5265 = vld [vmem:[%s5264] sm:$0x1]
        %v5267 = vsel %vm4404, %v5265, 0
        %5269 = vmatprep.subr.bf16.mxu0 0
        %5270 = vmatpush1.bf16.msra.mxu0 %v4409
        %5271 = vmatprep.subr.bf16.mxu0 0
        %5272 = vmatpush1.bf16.msra.mxu0 0
        %5273 = vmatprep.subr.bf16.mxu0 0
        %5274 = vmatpush1.bf16.msra.mxu0 0
        %5275 = vmatprep.subr.bf16.mxu0 0
        %5276 = vmatpush1.bf16.msra.mxu0 0
        %5277 = vmatprep.subr.bf16.mxu0 0
        %5278 = vmatpush1.bf16.msra.mxu0 0
        %5279 = vmatprep.subr.bf16.mxu0 0
        %5280 = vmatpush1.bf16.msra.mxu0 0
        %5281 = vmatprep.subr.bf16.mxu0 0
        %5282 = vmatpush1.bf16.msra.mxu0 0
        %5283 = vmatprep.subr.bf16.mxu0 0
        %5284 = vmatpush1.bf16.msra.mxu0 0
        %5285 = vmatprep.subr.bf16.mxu0 0
        %5286 = vmatpush1.bf16.msra.mxu0 0
        %5287 = vmatprep.subr.bf16.mxu0 0
        %5288 = vmatpush1.bf16.msra.mxu0 0
        %5289 = vmatprep.subr.bf16.mxu0 0
        %5290 = vmatpush1.bf16.msra.mxu0 0
        %5291 = vmatprep.subr.bf16.mxu0 0
        %5292 = vmatpush1.bf16.msra.mxu0 0
        %5293 = vmatprep.subr.bf16.mxu0 0
        %5294 = vmatpush1.bf16.msra.mxu0 0
        %5295 = vmatprep.subr.bf16.mxu0 0
        %5296 = vmatpush1.bf16.msra.mxu0 0
        %5297 = vmatprep.subr.bf16.mxu0 0
        %5298 = vmatpush1.bf16.msra.mxu0 0
        %5299 = vmatprep.subr.bf16.mxu0 0
        %5300 = vmatpush1.bf16.msra.mxu0 0
        %5301 = vmatprep.mubr.bf16.mxu0 0
        %5302 = vmatmul.mubr.bf16.gmra.mrb[0].mxu0 %v5267
        %v5303 = vpop.f32.mrb[0].mxu0
        %v5304 = vadd.f32 0.0, %v5303
        %v5305 = vpop.f32.mrb[0].mxu0
        %v5306 = vpop.f32.mrb[0].mxu0
        %v5307 = vpop.f32.mrb[0].mxu0
        %5308 = vdwg.mxu0
        %v5309 = vpack.c.bf16 %v5304, %v5304
        %s5310 = scalar_lea.vmem %s11, 224
        %v5311 = vld [vmem:[%s5310] sm:$0xf]
        %v5312 = vld [vmem:[%s5310 + $0x4] sm:$0xf]
        %v5313 = vld [vmem:[%s5310 + $0x8] sm:$0xf]
        %v5314 = vld [vmem:[%s5310 + $0xc] sm:$0xf]
        %v5315 = vld [vmem:[%s5310 + $0x10] sm:$0xf]
        %v5316 = vld [vmem:[%s5310 + $0x14] sm:$0xf]
        %v5317 = vld [vmem:[%s5310 + $0x18] sm:$0xf]
        %v5318 = vld [vmem:[%s5310 + $0x1c] sm:$0xf]
        %v5327 = vunpack.c.l.b16 %v5311
        %v5328 = vunpack.c.l.b16 %v5312
        %v5329 = vunpack.c.l.b16 %v5313
        %v5330 = vunpack.c.l.b16 %v5314
        %v5331 = vunpack.c.l.b16 %v5315
        %v5332 = vunpack.c.l.b16 %v5316
        %v5333 = vunpack.c.l.b16 %v5317
        %v5334 = vunpack.c.l.b16 %v5318
        %v5335 = vpack.c.b16 %v5328, %v5327
        %v5336 = vpack.c.b16 %v5330, %v5329
        %v5337 = vpack.c.b16 %v5332, %v5331
        %v5338 = vpack.c.b16 %v5334, %v5333
        %v5344 = vsel %vm2460, %v5309, 0
        %5346 = vmatprep.subr.bf16.mxu0 0
        %5347 = vmatpush1.bf16.msra.mxu0 %v5335
        %5348 = vmatprep.subr.bf16.mxu0 0
        %5349 = vmatpush1.bf16.msra.mxu0 %v5336
        %5350 = vmatprep.subr.bf16.mxu0 0
        %5351 = vmatpush1.bf16.msra.mxu0 %v5337
        %5352 = vmatprep.subr.bf16.mxu0 0
        %5353 = vmatpush1.bf16.msra.mxu0 %v5338
        %5354 = vmatprep.subr.bf16.mxu0 0
        %5355 = vmatpush1.bf16.msra.mxu0 0
        %5356 = vmatprep.subr.bf16.mxu0 0
        %5357 = vmatpush1.bf16.msra.mxu0 0
        %5358 = vmatprep.subr.bf16.mxu0 0
        %5359 = vmatpush1.bf16.msra.mxu0 0
        %5360 = vmatprep.subr.bf16.mxu0 0
        %5361 = vmatpush1.bf16.msra.mxu0 0
        %5362 = vmatprep.subr.bf16.mxu0 0
        %5363 = vmatpush1.bf16.msra.mxu0 0
        %5364 = vmatprep.subr.bf16.mxu0 0
        %5365 = vmatpush1.bf16.msra.mxu0 0
        %5366 = vmatprep.subr.bf16.mxu0 0
        %5367 = vmatpush1.bf16.msra.mxu0 0
        %5368 = vmatprep.subr.bf16.mxu0 0
        %5369 = vmatpush1.bf16.msra.mxu0 0
        %5370 = vmatprep.subr.bf16.mxu0 0
        %5371 = vmatpush1.bf16.msra.mxu0 0
        %5372 = vmatprep.subr.bf16.mxu0 0
        %5373 = vmatpush1.bf16.msra.mxu0 0
        %5374 = vmatprep.subr.bf16.mxu0 0
        %5375 = vmatpush1.bf16.msra.mxu0 0
        %5376 = vmatprep.subr.bf16.mxu0 0
        %5377 = vmatpush1.bf16.msra.mxu0 0
        %5378 = vmatprep.mubr.bf16.mxu0 0
        %5379 = vmatmul.mubr.bf16.gmra.mrb[0].mxu0 %v5344
        %v5380 = vpop.f32.mrb[0].mxu0
        %v5381 = vadd.f32 0.0, %v5380
        %v5382 = vpop.f32.mrb[0].mxu0
        %v5383 = vpop.f32.mrb[0].mxu0
        %v5384 = vpop.f32.mrb[0].mxu0
        %5385 = vdwg.mxu0
        %v5386 = vadd.f32 %v5263, %v5381
        %s5387 = scalar_lea.vmem %s10, 8
        %v5388 = vld [vmem:[%s5387] sm:$0x1]
        %v5390 = vsel %vm4404, %v5388, 0
        %5392 = vmatprep.subr.bf16.mxu0 0
        %5393 = vmatpush1.bf16.msra.mxu0 %v4409
        %5394 = vmatprep.subr.bf16.mxu0 0
        %5395 = vmatpush1.bf16.msra.mxu0 0
        %5396 = vmatprep.subr.bf16.mxu0 0
        %5397 = vmatpush1.bf16.msra.mxu0 0
        %5398 = vmatprep.subr.bf16.mxu0 0
        %5399 = vmatpush1.bf16.msra.mxu0 0
        %5400 = vmatprep.subr.bf16.mxu0 0
        %5401 = vmatpush1.bf16.msra.mxu0 0
        %5402 = vmatprep.subr.bf16.mxu0 0
        %5403 = vmatpush1.bf16.msra.mxu0 0
        %5404 = vmatprep.subr.bf16.mxu0 0
        %5405 = vmatpush1.bf16.msra.mxu0 0
        %5406 = vmatprep.subr.bf16.mxu0 0
        %5407 = vmatpush1.bf16.msra.mxu0 0
        %5408 = vmatprep.subr.bf16.mxu0 0
        %5409 = vmatpush1.bf16.msra.mxu0 0
        %5410 = vmatprep.subr.bf16.mxu0 0
        %5411 = vmatpush1.bf16.msra.mxu0 0
        %5412 = vmatprep.subr.bf16.mxu0 0
        %5413 = vmatpush1.bf16.msra.mxu0 0
        %5414 = vmatprep.subr.bf16.mxu0 0
        %5415 = vmatpush1.bf16.msra.mxu0 0
        %5416 = vmatprep.subr.bf16.mxu0 0
        %5417 = vmatpush1.bf16.msra.mxu0 0
        %5418 = vmatprep.subr.bf16.mxu0 0
        %5419 = vmatpush1.bf16.msra.mxu0 0
        %5420 = vmatprep.subr.bf16.mxu0 0
        %5421 = vmatpush1.bf16.msra.mxu0 0
        %5422 = vmatprep.subr.bf16.mxu0 0
        %5423 = vmatpush1.bf16.msra.mxu0 0
        %5424 = vmatprep.mubr.bf16.mxu0 0
        %5425 = vmatmul.mubr.bf16.gmra.mrb[0].mxu0 %v5390
        %v5426 = vpop.f32.mrb[0].mxu0
        %v5427 = vadd.f32 0.0, %v5426
        %v5428 = vpop.f32.mrb[0].mxu0
        %v5429 = vpop.f32.mrb[0].mxu0
        %v5430 = vpop.f32.mrb[0].mxu0
        %5431 = vdwg.mxu0
        %v5432 = vpack.c.bf16 %v5427, %v5427
        %s5433 = scalar_lea.vmem %s11, 256
        %v5434 = vld [vmem:[%s5433] sm:$0xf]
        %v5435 = vld [vmem:[%s5433 + $0x4] sm:$0xf]
        %v5436 = vld [vmem:[%s5433 + $0x8] sm:$0xf]
        %v5437 = vld [vmem:[%s5433 + $0xc] sm:$0xf]
        %v5438 = vld [vmem:[%s5433 + $0x10] sm:$0xf]
        %v5439 = vld [vmem:[%s5433 + $0x14] sm:$0xf]
        %v5440 = vld [vmem:[%s5433 + $0x18] sm:$0xf]
        %v5441 = vld [vmem:[%s5433 + $0x1c] sm:$0xf]
        %v5450 = vunpack.c.l.b16 %v5434
        %v5451 = vunpack.c.l.b16 %v5435
        %v5452 = vunpack.c.l.b16 %v5436
        %v5453 = vunpack.c.l.b16 %v5437
        %v5454 = vunpack.c.l.b16 %v5438
        %v5455 = vunpack.c.l.b16 %v5439
        %v5456 = vunpack.c.l.b16 %v5440
        %v5457 = vunpack.c.l.b16 %v5441
        %v5458 = vpack.c.b16 %v5451, %v5450
        %v5459 = vpack.c.b16 %v5453, %v5452
        %v5460 = vpack.c.b16 %v5455, %v5454
        %v5461 = vpack.c.b16 %v5457, %v5456
        %v5467 = vsel %vm2460, %v5432, 0
        %5469 = vmatprep.subr.bf16.mxu0 0
        %5470 = vmatpush1.bf16.msra.mxu0 %v5458
        %5471 = vmatprep.subr.bf16.mxu0 0
        %5472 = vmatpush1.bf16.msra.mxu0 %v5459
        %5473 = vmatprep.subr.bf16.mxu0 0
        %5474 = vmatpush1.bf16.msra.mxu0 %v5460
        %5475 = vmatprep.subr.bf16.mxu0 0
        %5476 = vmatpush1.bf16.msra.mxu0 %v5461
        %5477 = vmatprep.subr.bf16.mxu0 0
        %5478 = vmatpush1.bf16.msra.mxu0 0
        %5479 = vmatprep.subr.bf16.mxu0 0
        %5480 = vmatpush1.bf16.msra.mxu0 0
        %5481 = vmatprep.subr.bf16.mxu0 0
        %5482 = vmatpush1.bf16.msra.mxu0 0
        %5483 = vmatprep.subr.bf16.mxu0 0
        %5484 = vmatpush1.bf16.msra.mxu0 0
        %5485 = vmatprep.subr.bf16.mxu0 0
        %5486 = vmatpush1.bf16.msra.mxu0 0
        %5487 = vmatprep.subr.bf16.mxu0 0
        %5488 = vmatpush1.bf16.msra.mxu0 0
        %5489 = vmatprep.subr.bf16.mxu0 0
        %5490 = vmatpush1.bf16.msra.mxu0 0
        %5491 = vmatprep.subr.bf16.mxu0 0
        %5492 = vmatpush1.bf16.msra.mxu0 0
        %5493 = vmatprep.subr.bf16.mxu0 0
        %5494 = vmatpush1.bf16.msra.mxu0 0
        %5495 = vmatprep.subr.bf16.mxu0 0
        %5496 = vmatpush1.bf16.msra.mxu0 0
        %5497 = vmatprep.subr.bf16.mxu0 0
        %5498 = vmatpush1.bf16.msra.mxu0 0
        %5499 = vmatprep.subr.bf16.mxu0 0
        %5500 = vmatpush1.bf16.msra.mxu0 0
        %5501 = vmatprep.mubr.bf16.mxu0 0
        %5502 = vmatmul.mubr.bf16.gmra.mrb[0].mxu0 %v5467
        %v5503 = vpop.f32.mrb[0].mxu0
        %v5504 = vadd.f32 0.0, %v5503
        %v5505 = vpop.f32.mrb[0].mxu0
        %v5506 = vpop.f32.mrb[0].mxu0
        %v5507 = vpop.f32.mrb[0].mxu0
        %5508 = vdwg.mxu0
        %v5509 = vadd.f32 %v5386, %v5504
        %v5510 = vld [vmem:[%s12] sm:$0x1]
        %v5511 = vadd.f32 %v5509, %v5510
        %v5512 = vmax.f32 %v5511, 0.0
        %5513 = vst [vmem:[%s432] sm:$0x1] %v5512
        %s5514 = sand.u32 %s313, 1
        %s5515 = scalar_lea.sflag [#allocation3], %s5514
        %s5516 = sand.u32 %s313, 1
        %s5517 = scalar_lea.vmem [#allocation2], %s5516
        // Predicated region
        $region73: #{downsample_net_forward.1} parent=71 // pred_check
          %p5518 = pneg %p323
        $region74: #{downsample_net_forward.1} parent=71 // pred_check_branch
          %5520 = sbr.rel (%p5518) target = $region76
        $region75: #{downsample_net_forward.1} parent=71 // pred_region
          %s5522 = ssub.s32 16, 16
          %5523 = vsyncadd %s5515, %s5522
          %s5524 = smul.addr %s27, 16
          %s5525 = scalar_lea.hbm %s13, %s5524
          %s5527 = sshll.u32 %s5517, 4
          %s5528 = int_to_ptr.vmem [resolvable:$true] %s5527
          %5530 = dma.vmem_to_hbm [thread:$0]  %s5528, 16, %s5525, %s5515
        $region76: #{downsample_net_forward.1} parent=71 // pred_fallthru
          _
      $region72: #{downsample_net_forward.1} parent=5 // pred_fallthru
        _
      %p5531 = scmp.le.s32.totalorder 2, %s22
      // Predicated region
      $region77: #{downsample_net_forward.1} parent=5 // pred_check
        %p5532 = pneg %p5531
      $region78: #{downsample_net_forward.1} parent=5 // pred_check_branch
        %5534 = sbr.rel (%p5532) target = $region80
      $region79: #{downsample_net_forward.1} parent=5 // pred_region
        %s5535 = ssub.s32 %s22, 2
        // Predicated region
        $region81: #{downsample_net_forward.1} parent=79 // pred_check
          %p5536 = pneg %p329
        $region82: #{downsample_net_forward.1} parent=79 // pred_check_branch
          %5538 = sbr.rel (%p5536) target = $region84
        $region83: #{downsample_net_forward.1} parent=79 // pred_region
          %s5539 = sand.u32 %s314, 1
          %s5540 = scalar_lea.sflag [#allocation3], %s5539
          %s5541 = sand.u32 %s314, 1
          %s5542 = scalar_lea.vmem [#allocation2], %s5541
          %5543 = dma.done %s5540, 16
        $region84: #{downsample_net_forward.1} parent=79 // pred_fallthru
          _
      $region80: #{downsample_net_forward.1} parent=5 // pred_fallthru
        _
    $region6: #{downsample_net_forward.1} parent=1 // loop_footer
      %s26 = sadd.s32 1, %s22
    $region7: #{downsample_net_forward.1} parent=1 // loop_footer_branch
      %21 = sbr.rel target = $region3
    $region8: #{downsample_net_forward.1} parent=1 // loop_exit
      _
    %5544 = vsyncpa [#allocation3], 1
    %s5545 = scalar_lea.sflag [#allocation3], 1
    %5546 = vsyncpa %s5545, 1

</llo_original>
